<compile_context>
chip_gen: v5e
topology: v5e:2x2
jax: 0.10.0
libtpu: 0.0.40
codegen_flags: <defaults>
</compile_context>

<pallas_src>
from functools import partial

import numpy as np
import jax
import jax.numpy as jnp
from jax import lax
from jax.experimental import pallas as pl
from jax.experimental.pallas import tpu as pltpu


# ---------------------------------------------------------------------------
# Model constants
# ---------------------------------------------------------------------------
KH = KW = 5
H_IN = W_IN = 32
C_IN = 3
C1 = 6                 # conv1 output channels
C2 = 16                # conv2 output channels
H1 = 28                # conv1 valid output height/width
HP1 = 14               # after pool1
H2 = 10                # conv2 valid output
HP2 = 5                # after pool2
FC1 = 120              # fc1 width
FEAT = 512             # fc2 / feature width (hidden_dims[1])
ATT_HID = 256          # att projection hidden width
N_CLASSES = 10

K1 = KH * W_IN * C_IN  # 480  conv1 row-band contraction width (kh, wi, ci)
N1 = 256               # conv1 out lanes: (col parity, col/2 in 16 slots, channel in 8 slots)
K2 = 128               # conv2 contraction lanes: (pooled col in 16 slots, channel in 8 slots)
N2 = 256               # conv2 out lanes: (col parity, col/2 in 8 slots, channel in 16 slots)
KF1 = 128              # fc1 contraction lanes: (pooled col in 8 slots, channel in 16 slots)
NF1 = 128              # fc1 out (120 padded to 128)
NCLS_P = 128           # classifier padded to a full lane width

MXU_DTYPE = jnp.bfloat16          # MXU operand dtype (f32 accumulation everywhere)

# Per-grid-step VMEM footprint is ~9 MiB at TB=32 (input tile ~0.9 MiB x2 buffers,
# ~1.5 MiB of bf16 weights x2, <4 MiB of f32 intermediates) -> 32 MiB is ample and
# safe on every generation including v7x's 64 MiB physical VMEM.
_VMEM_LIMIT_BYTES = 32 * 1024 * 1024


# ---------------------------------------------------------------------------
# The fused Pallas kernel
# ---------------------------------------------------------------------------
def _fedcon_fused_kernel(
        x_ref,                      # (28*TB, 480)  row-band im2col'd input, bf16
        w1_ref, b1_ref,             # (480, 256) bf16, (1, 256) f32
        w2_ref, b2_ref,             # (5, 128, 256) bf16, (1, 256) f32
        wf1_ref, bf1_ref,           # (5, 128, 128) bf16, (1, 128) f32
        wf2_ref, bf2_ref,           # (128, 512) bf16, (1, 512) f32
        wl1_ref, bl1_ref,           # (512, 256) bf16, (1, 256) f32
        wl2_ref, bl2_ref,           # (256, 512) bf16, (1, 512) f32
        wl3_ref, bl3_ref,           # (512, 128) bf16, (1, 128) f32
        h_ref, x2_ref, y_ref):      # (TB, 512), (TB, 512), (TB, 128)  f32
    f32 = jnp.float32
    cdt = MXU_DTYPE
    tb = h_ref.shape[0]

    # ---- conv1 + ReLU: one banded matmul (merged K over kh, column, channel) ----
    # rows = (oh, tb); output lanes = parity*128 + (ow//2)*8 + channel.
    t1 = jnp.dot(x_ref[...], w1_ref[...], preferred_element_type=f32) + b1_ref[...]
    t1 = jnp.maximum(t1, 0.0)                                       # (28*tb, 256)

    # ---- 2x2 max-pool #1: aligned lane halves (column pairs) + row-block pairs ----
    t1 = jnp.maximum(t1[:, :K2], t1[:, K2:])                        # (28*tb, 128)
    t1 = t1.reshape(HP1, 2, tb, K2)
    p1 = jnp.maximum(t1[:, 0], t1[:, 1]).reshape(HP1 * tb, K2)      # (14*tb, 128) f32

    # ---- conv2 + ReLU: 5 banded matmuls (one per kernel row), first-tap init ----
    acc = None
    for kh in range(KH):
        lhs = p1[kh * tb:(kh + H2) * tb].astype(cdt)                # (10*tb, 128)
        part = jnp.dot(lhs, w2_ref[kh], preferred_element_type=f32)
        acc = part if acc is None else acc + part
    t2 = jnp.maximum(acc + b2_ref[...], 0.0)                        # (10*tb, 256)

    # ---- 2x2 max-pool #2 ----
    t2 = jnp.maximum(t2[:, :KF1], t2[:, KF1:])                      # (10*tb, 128)
    t2 = t2.reshape(HP2, 2, tb, KF1)
    p2 = jnp.maximum(t2[:, 0], t2[:, 1]).reshape(HP2 * tb, KF1)     # (5*tb, 128) f32

    # ---- fc1: 5 dots (one per pooled row); torch (C,H,W) flatten is folded into Wf1 ----
    accf = None
    for r in range(HP2):
        part = jnp.dot(p2[r * tb:(r + 1) * tb].astype(cdt), wf1_ref[r],
                       preferred_element_type=f32)
        accf = part if accf is None else accf + part
    a1 = jnp.maximum(accf + bf1_ref[...], 0.0)                      # (tb, 128)

    # ---- fc2 -> features h ----
    h = jnp.dot(a1.astype(cdt), wf2_ref[...], preferred_element_type=f32) + bf2_ref[...]
    h = jnp.maximum(h, 0.0)                                         # (tb, 512)
    h_ref[...] = h

    # ---- attention head ----
    # TODO(synk): SelfAttnLayer(512, 4, [256, 512], 10) source is not in the spec;
    # approximated as a 512->256(ReLU)->512 projection (= x2) plus a linear 512->10
    # classifier (= y), same as the pure-JAX reference below.
    t = jnp.maximum(
        jnp.dot(h.astype(cdt), wl1_ref[...], preferred_element_type=f32) + bl1_ref[...],
        0.0)
    x2 = jnp.dot(t.astype(cdt), wl2_ref[...], preferred_element_type=f32) + bl2_ref[...]
    x2_ref[...] = x2
    y_ref[...] = (jnp.dot(x2.astype(cdt), wl3_ref[...], preferred_element_type=f32)
                  + bl3_ref[...])


# ---------------------------------------------------------------------------
# One-time parameter re-layout (numpy; hoisted out of the jitted forward)
# ---------------------------------------------------------------------------
def prepare_params(p):
    f32 = np.float32

    def gp(name):
        return np.asarray(jax.device_get(p[name]), f32)

    w1, b1 = gp("conv1_w"), gp("conv1_b")        # (6,3,5,5), (6,)
    w2, b2 = gp("conv2_w"), gp("conv2_b")        # (16,6,5,5), (16,)
    wf1, bf1 = gp("fc1_w"), gp("fc1_b")          # (120,400), (120,)
    wf2, bf2 = gp("fc2_w"), gp("fc2_b")          # (512,120), (512,)
    wl1, bl1 = gp("l1_w"), gp("l1_b")            # (256,512), (256,)
    wl2, bl2 = gp("l2_w"), gp("l2_b")            # (512,256), (512,)
    wl3, bl3 = gp("l3_w"), gp("l3_b")            # (10,512), (10,)

    # conv1 banded weight: K = kh*96 + wi*3 + ci, N = pw*128 + ow2*8 + c (ow = 2*ow2+pw)
    W1b = np.zeros((KH, W_IN, C_IN, 2, 16, 8), f32)
    for ow2 in range(HP1):
        for pw in range(2):
            ow = 2 * ow2 + pw
            for kw in range(KW):
                W1b[:, ow + kw, :, pw, ow2, :C1] = np.transpose(w1[:, :, :, kw], (2, 1, 0))
    W1b = W1b.reshape(K1, N1)
    B1b = np.zeros((2, 16, 8), f32)
    B1b[:, :HP1, :C1] = b1
    B1b = B1b.reshape(1, N1)

    # conv2 banded weights (one per kh): K = ow2_in*8 + c, N = pw'*128 + ow2'*16 + co
    W2b = np.zeros((KH, 16, 8, 2, 8, C2), f32)
    for ow2p in range(HP2):
        for pwp in range(2):
            owp = 2 * ow2p + pwp
            for kw in range(KW):
                W2b[:, owp + kw, :C1, pwp, ow2p, :] = np.transpose(w2[:, :, :, kw],
                                                                   (2, 1, 0))
    W2b = W2b.reshape(KH, K2, N2)
    B2b = np.zeros((2, 8, C2), f32)
    B2b[:, :HP2, :] = b2
    B2b = B2b.reshape(1, N2)

    # fc1: torch flattens (C,H,W) -> column c*25 + h*5 + w; fold into per-row weights.
    wf1r = wf1.reshape(FC1, C2, HP2, HP2)                   # [f, co, h, w]
    Wf1b = np.zeros((HP2, 8, C2, NF1), f32)                 # [h, ow2'_slot, co, f]
    Wf1b[:, :HP2, :, :FC1] = np.transpose(wf1r, (2, 3, 1, 0))
    Wf1b = Wf1b.reshape(HP2, KF1, NF1)
    Bf1b = np.zeros((1, NF1), f32)
    Bf1b[0, :FC1] = bf1

    # fc2 (512, 120) -> (128, 512) (zero rows for the fc1 pad lanes)
    Wf2b = np.zeros((NF1, FEAT), f32)
    Wf2b[:FC1, :] = wf2.T
    Bf2b = bf2.reshape(1, FEAT)

    # att head (see TODO(synk) in the kernel)
    Wl1b = wl1.T                                            # (512, 256)
    Bl1b = bl1.reshape(1, ATT_HID)
    Wl2b = wl2.T                                            # (256, 512)
    Bl2b = bl2.reshape(1, FEAT)
    Wl3b = np.zeros((FEAT, NCLS_P), f32)
    Wl3b[:, :N_CLASSES] = wl3.T
    Bl3b = np.zeros((1, NCLS_P), f32)
    Bl3b[0, :N_CLASSES] = bl3

    cdt = MXU_DTYPE
    return (
        jnp.asarray(W1b, cdt), jnp.asarray(B1b, jnp.float32),
        jnp.asarray(W2b, cdt), jnp.asarray(B2b, jnp.float32),
        jnp.asarray(Wf1b, cdt), jnp.asarray(Bf1b, jnp.float32),
        jnp.asarray(Wf2b, cdt), jnp.asarray(Bf2b, jnp.float32),
        jnp.asarray(Wl1b, cdt), jnp.asarray(Bl1b, jnp.float32),
        jnp.asarray(Wl2b, cdt), jnp.asarray(Bl2b, jnp.float32),
        jnp.asarray(Wl3b, cdt), jnp.asarray(Bl3b, jnp.float32),
    )


# ---------------------------------------------------------------------------
# Forward wrapper
# ---------------------------------------------------------------------------
def _pick_tiling(batch):
    # TB up to 32 (good MXU row utilisation), rounded to sublane multiples, and the
    # grid always has >= 2 steps so both v7x TensorCores get work for small batches.
    tb_cap = 32
    n_tiles = max(2, -(-batch // tb_cap))
    tb = -(-batch // n_tiles)
    tb = max(8, 8 * (-(-tb // 8)))
    return tb, n_tiles


@partial(jax.jit, static_argnums=(2, 3))
def _forward_impl(weights, x_nchw, TB, n_tiles):
    B = x_nchw.shape[0]
    B_pad = TB * n_tiles
    x = x_nchw.astype(jnp.float32)
    if B_pad != B:
        x = jnp.pad(x, ((0, B_pad - B), (0, 0), (0, 0), (0, 0)))

    # Row-band im2col for conv1 (cheap, wrapper-side XLA): for each output row oh the
    # 5 contributing input rows are flattened to a lane-dense 480-wide contraction
    # ordered (kh, column, channel).  Rows in the pallas input are (tile, oh, tb).
    xt = jnp.transpose(x, (0, 2, 3, 1))                               # (B_pad, 32, 32, 3)
    xr = jnp.stack([xt[:, d:d + H1] for d in range(KH)], axis=2)      # (B_pad, 28, 5, 32, 3)
    xr = xr.reshape(B_pad, H1, K1)
    xr = xr.reshape(n_tiles, TB, H1, K1).transpose(0, 2, 1, 3)
    xr = xr.reshape(n_tiles * H1 * TB, K1).astype(MXU_DTYPE)

    def _full(a):
        nd = a.ndim
        return pl.BlockSpec(a.shape, lambda i, _nd=nd: (0,) * _nd)

    w_list = list(weights)

    flops_per_img = 2 * (H1 * K1 * N1 + KH * H2 * K2 * N2 + HP2 * KF1 * NF1
                         + NF1 * FEAT + FEAT * ATT_HID + ATT_HID * FEAT + FEAT * NCLS_P)
    bytes_weights = sum(int(np.prod(a.shape)) * a.dtype.itemsize for a in w_list)
    bytes_accessed = (xr.size * xr.dtype.itemsize + bytes_weights
                      + B_pad * (2 * FEAT + NCLS_P) * 4)

    h, x2, y = pl.pallas_call(
        _fedcon_fused_kernel,
        out_shape=(
            jax.ShapeDtypeStruct((B_pad, FEAT), jnp.float32),
            jax.ShapeDtypeStruct((B_pad, FEAT), jnp.float32),
            jax.ShapeDtypeStruct((B_pad, NCLS_P), jnp.float32),
        ),
        grid=(n_tiles,),
        in_specs=[pl.BlockSpec((H1 * TB, K1), lambda i: (i, 0))]
                 + [_full(a) for a in w_list],
        out_specs=(
            pl.BlockSpec((TB, FEAT), lambda i: (i, 0)),
            pl.BlockSpec((TB, FEAT), lambda i: (i, 0)),
            pl.BlockSpec((TB, NCLS_P), lambda i: (i, 0)),
        ),
        compiler_params=pltpu.CompilerParams(
            dimension_semantics=("parallel",),
            vmem_limit_bytes=_VMEM_LIMIT_BYTES,
        ),
        cost_estimate=pl.CostEstimate(
            flops=int(flops_per_img) * int(B_pad),
            transcendentals=0,
            bytes_accessed=int(bytes_accessed),
        ),
    )(xr, *w_list)

    h, x2, y = h[:B], x2[:B], y[:B, :N_CLASSES]
    if B == 1:   # mimic torch `h = h.squeeze()` for batch size 1
        h, x2, y = h[0], x2[0], y[0]
    return h, x2, y


def model_fedcon_att_forward(weights, x_nchw):
    TB, n_tiles = _pick_tiling(int(x_nchw.shape[0]))
    return _forward_impl(weights, x_nchw, TB, n_tiles)


# ---------------------------------------------------------------------------
# Parameter init + pure-JAX reference (for correctness validation)
# ---------------------------------------------------------------------------
def init_params(key):
    ks = jax.random.split(key, 14)

    def wmat(k, shape, fan_in):
        return jax.random.normal(k, shape, jnp.float32) / jnp.sqrt(float(fan_in))

    def bvec(k, n):
        return 0.1 * jax.random.normal(k, (n,), jnp.float32)

    return {
        "conv1_w": wmat(ks[0], (6, 3, 5, 5), 75),         "conv1_b": bvec(ks[1], 6),
        "conv2_w": wmat(ks[2], (16, 6, 5, 5), 150),       "conv2_b": bvec(ks[3], 16),
        "fc1_w":   wmat(ks[4], (120, 400), 400),          "fc1_b":   bvec(ks[5], 120),
        "fc2_w":   wmat(ks[6], (FEAT, 120), 120),         "fc2_b":   bvec(ks[7], FEAT),
        "l1_w":    wmat(ks[8], (ATT_HID, FEAT), FEAT),    "l1_b":    bvec(ks[9], ATT_HID),
        "l2_w":    wmat(ks[10], (FEAT, ATT_HID), ATT_HID), "l2_b":   bvec(ks[11], FEAT),
        "l3_w":    wmat(ks[12], (N_CLASSES, FEAT), FEAT),  "l3_b":   bvec(ks[13], N_CLASSES),
    }


def reference_forward(params, x_nchw):
    dn = ("NCHW", "OIHW", "NCHW")
    x = x_nchw.astype(jnp.float32)
    y = lax.conv_general_dilated(x, params["conv1_w"], (1, 1), "VALID",
                                 dimension_numbers=dn)
    y = jax.nn.relu(y + params["conv1_b"][None, :, None, None])
    y = lax.reduce_window(y, -jnp.inf, lax.max, (1, 1, 2, 2), (1, 1, 2, 2), "VALID")
    y = lax.conv_general_dilated(y, params["conv2_w"], (1, 1), "VALID",
                                 dimension_numbers=dn)
    y = jax.nn.relu(y + params["conv2_b"][None, :, None, None])
    y = lax.reduce_window(y, -jnp.inf, lax.max, (1, 1, 2, 2), (1, 1, 2, 2), "VALID")
    f = y.reshape(x.shape[0], 400)
    a1 = jax.nn.relu(f @ params["fc1_w"].T + params["fc1_b"])
    h = jax.nn.relu(a1 @ params["fc2_w"].T + params["fc2_b"])
    t = jax.nn.relu(h @ params["l1_w"].T + params["l1_b"])
    x2 = t @ params["l2_w"].T + params["l2_b"]
    yc = x2 @ params["l3_w"].T + params["l3_b"]
    return h, x2, yc


if __name__ == "__main__":
    key = jax.random.PRNGKey(0)
    pkey, xkey = jax.random.split(key)

    params = init_params(pkey)
    weights = prepare_params(params)

    # simple-cnn base model requires 3x32x32 inputs (16*5*5 flatten); batch = 2.
    x = jax.random.normal(xkey, (2, 3, 32, 32), dtype=jnp.float32)

    h, x2, y = model_fedcon_att_forward(weights, x)
    jax.block_until_ready((h, x2, y))

    assert h.shape == (2, FEAT) and x2.shape == (2, FEAT) and y.shape == (2, N_CLASSES)
    assert bool(jnp.all(jnp.isfinite(h)))
    assert bool(jnp.all(jnp.isfinite(x2)))
    assert bool(jnp.all(jnp.isfinite(y)))

    # Numerical parity against a pure-JAX (XLA) f32 reference of the same forward pass.
    # Tolerance accounts for bf16 MXU operands (f32 accumulation) in the kernel.
    h_r, x2_r, y_r = reference_forward(params, x)
    tol = 5e-2 if MXU_DTYPE == jnp.bfloat16 else 1e-4
    for got, ref in ((h, h_r), (x2, x2_r), (y, y_r)):
        err = float(jnp.max(jnp.abs(got - ref)))
        assert bool(jnp.allclose(got, ref, atol=tol, rtol=tol)), err

    print("KERNEL_OK")
</pallas_src>

<mosaic_0001>
module attributes {stable_mosaic.version = 11 : i64} {
  func.func @_fedcon_fused_kernel(%arg0: i32, %arg1: memref<224x480xbf16, #tpu.memory_space<vmem>>, %arg2: memref<480x256xbf16, #tpu.memory_space<vmem>>, %arg3: memref<1x256xf32, #tpu.memory_space<vmem>>, %arg4: memref<5x128x256xbf16, #tpu.memory_space<vmem>>, %arg5: memref<1x256xf32, #tpu.memory_space<vmem>>, %arg6: memref<5x128x128xbf16, #tpu.memory_space<vmem>>, %arg7: memref<1x128xf32, #tpu.memory_space<vmem>>, %arg8: memref<128x512xbf16, #tpu.memory_space<vmem>>, %arg9: memref<1x512xf32, #tpu.memory_space<vmem>>, %arg10: memref<512x256xbf16, #tpu.memory_space<vmem>>, %arg11: memref<1x256xf32, #tpu.memory_space<vmem>>, %arg12: memref<256x512xbf16, #tpu.memory_space<vmem>>, %arg13: memref<1x512xf32, #tpu.memory_space<vmem>>, %arg14: memref<512x128xbf16, #tpu.memory_space<vmem>>, %arg15: memref<1x128xf32, #tpu.memory_space<vmem>>, %arg16: memref<8x512xf32, #tpu.memory_space<vmem>>, %arg17: memref<8x512xf32, #tpu.memory_space<vmem>>, %arg18: memref<8x128xf32, #tpu.memory_space<vmem>>) attributes {dimension_semantics = [#tpu.dimension_semantics<parallel>], iteration_bounds = array<i64: 2>, scalar_prefetch = 0 : i64, scratch_operands = 0 : i64, tpu.core_type = #tpu.core_type<tc>, window_params = [{transform_indices = @transform_0, window_bounds = array<i64: 224, 480>}, {pipeline_mode = #tpu.pipeline_mode<synchronous>, transform_indices = @transform_1, window_bounds = array<i64: 480, 256>}, {pipeline_mode = #tpu.pipeline_mode<synchronous>, transform_indices = @transform_2, window_bounds = array<i64: 1, 256>}, {pipeline_mode = #tpu.pipeline_mode<synchronous>, transform_indices = @transform_3, window_bounds = array<i64: 5, 128, 256>}, {pipeline_mode = #tpu.pipeline_mode<synchronous>, transform_indices = @transform_4, window_bounds = array<i64: 1, 256>}, {pipeline_mode = #tpu.pipeline_mode<synchronous>, transform_indices = @transform_5, window_bounds = array<i64: 5, 128, 128>}, {pipeline_mode = #tpu.pipeline_mode<synchronous>, transform_indices = @transform_6, window_bounds = array<i64: 1, 128>}, {pipeline_mode = #tpu.pipeline_mode<synchronous>, transform_indices = @transform_7, window_bounds = array<i64: 128, 512>}, {pipeline_mode = #tpu.pipeline_mode<synchronous>, transform_indices = @transform_8, window_bounds = array<i64: 1, 512>}, {pipeline_mode = #tpu.pipeline_mode<synchronous>, transform_indices = @transform_9, window_bounds = array<i64: 512, 256>}, {pipeline_mode = #tpu.pipeline_mode<synchronous>, transform_indices = @transform_10, window_bounds = array<i64: 1, 256>}, {pipeline_mode = #tpu.pipeline_mode<synchronous>, transform_indices = @transform_11, window_bounds = array<i64: 256, 512>}, {pipeline_mode = #tpu.pipeline_mode<synchronous>, transform_indices = @transform_12, window_bounds = array<i64: 1, 512>}, {pipeline_mode = #tpu.pipeline_mode<synchronous>, transform_indices = @transform_13, window_bounds = array<i64: 512, 128>}, {pipeline_mode = #tpu.pipeline_mode<synchronous>, transform_indices = @transform_14, window_bounds = array<i64: 1, 128>}, {transform_indices = @transform_15, window_bounds = array<i64: 8, 512>}, {transform_indices = @transform_16, window_bounds = array<i64: 8, 512>}, {transform_indices = @transform_17, window_bounds = array<i64: 8, 128>}]} {
    %c0 = arith.constant 0 : index
    %c0_0 = arith.constant 0 : index
    %0 = vector.load %arg1[%c0, %c0_0] : memref<224x480xbf16, #tpu.memory_space<vmem>>, vector<224x480xbf16>
    %c0_1 = arith.constant 0 : index
    %c0_2 = arith.constant 0 : index
    %1 = vector.load %arg2[%c0_1, %c0_2] : memref<480x256xbf16, #tpu.memory_space<vmem>>, vector<480x256xbf16>
    %cst = arith.constant dense<0.000000e+00> : vector<224x256xf32>
    %2 = tpu.matmul %0, %1, %cst {dimension_numbers = #tpu.dot_dimension_numbers<[1], [0], [0], [1], [0, 0, 1, 1], [], []>} : vector<224x480xbf16>, vector<480x256xbf16>, vector<224x256xf32> -> vector<224x256xf32>
    %c0_3 = arith.constant 0 : index
    %c0_4 = arith.constant 0 : index
    %3 = vector.load %arg3[%c0_3, %c0_4] : memref<1x256xf32, #tpu.memory_space<vmem>>, vector<1x256xf32>
    %4 = vector.broadcast %3 : vector<1x256xf32> to vector<224x256xf32>
    %5 = arith.addf %2, %4 : vector<224x256xf32>
    %cst_5 = arith.constant 0.000000e+00 : f32
    %6 = vector.broadcast %cst_5 : f32 to vector<224x256xf32>
    %7 = arith.maximumf %5, %6 : vector<224x256xf32>
    %8 = vector.extract_strided_slice %7 {offsets = [0, 0], sizes = [224, 128], strides = [1, 1]} : vector<224x256xf32> to vector<224x128xf32>
    %9 = vector.extract_strided_slice %7 {offsets = [0, 128], sizes = [224, 128], strides = [1, 1]} : vector<224x256xf32> to vector<224x128xf32>
    %10 = arith.maximumf %8, %9 : vector<224x128xf32>
    %11 = vector.shape_cast %10 : vector<224x128xf32> to vector<14x2x8x128xf32>
    %12 = vector.extract_strided_slice %11 {offsets = [0, 0, 0, 0], sizes = [14, 1, 8, 128], strides = [1, 1, 1, 1]} : vector<14x2x8x128xf32> to vector<14x1x8x128xf32>
    %13 = vector.shape_cast %12 : vector<14x1x8x128xf32> to vector<14x8x128xf32>
    %14 = vector.extract_strided_slice %11 {offsets = [0, 1, 0, 0], sizes = [14, 1, 8, 128], strides = [1, 1, 1, 1]} : vector<14x2x8x128xf32> to vector<14x1x8x128xf32>
    %15 = vector.shape_cast %14 : vector<14x1x8x128xf32> to vector<14x8x128xf32>
    %16 = arith.maximumf %13, %15 : vector<14x8x128xf32>
    %17 = vector.shape_cast %16 : vector<14x8x128xf32> to vector<112x128xf32>
    %18 = vector.extract_strided_slice %17 {offsets = [0, 0], sizes = [80, 128], strides = [1, 1]} : vector<112x128xf32> to vector<80x128xf32>
    %19 = arith.truncf %18 : vector<80x128xf32> to vector<80x128xbf16>
    %c0_6 = arith.constant 0 : index
    %c0_7 = arith.constant 0 : index
    %c0_8 = arith.constant 0 : index
    %20 = vector.load %arg4[%c0_6, %c0_7, %c0_8] : memref<5x128x256xbf16, #tpu.memory_space<vmem>>, vector<1x128x256xbf16>
    %21 = vector.shape_cast %20 : vector<1x128x256xbf16> to vector<128x256xbf16>
    %cst_9 = arith.constant dense<0.000000e+00> : vector<80x256xf32>
    %22 = tpu.matmul %19, %21, %cst_9 {dimension_numbers = #tpu.dot_dimension_numbers<[1], [0], [0], [1], [0, 0, 1, 1], [], []>} : vector<80x128xbf16>, vector<128x256xbf16>, vector<80x256xf32> -> vector<80x256xf32>
    %23 = vector.extract_strided_slice %17 {offsets = [8, 0], sizes = [80, 128], strides = [1, 1]} : vector<112x128xf32> to vector<80x128xf32>
    %24 = arith.truncf %23 : vector<80x128xf32> to vector<80x128xbf16>
    %c1 = arith.constant 1 : index
    %c0_10 = arith.constant 0 : index
    %c0_11 = arith.constant 0 : index
    %25 = vector.load %arg4[%c1, %c0_10, %c0_11] : memref<5x128x256xbf16, #tpu.memory_space<vmem>>, vector<1x128x256xbf16>
    %26 = vector.shape_cast %25 : vector<1x128x256xbf16> to vector<128x256xbf16>
    %cst_12 = arith.constant dense<0.000000e+00> : vector<80x256xf32>
    %27 = tpu.matmul %24, %26, %cst_12 {dimension_numbers = #tpu.dot_dimension_numbers<[1], [0], [0], [1], [0, 0, 1, 1], [], []>} : vector<80x128xbf16>, vector<128x256xbf16>, vector<80x256xf32> -> vector<80x256xf32>
    %28 = arith.addf %22, %27 : vector<80x256xf32>
    %29 = vector.extract_strided_slice %17 {offsets = [16, 0], sizes = [80, 128], strides = [1, 1]} : vector<112x128xf32> to vector<80x128xf32>
    %30 = arith.truncf %29 : vector<80x128xf32> to vector<80x128xbf16>
    %c2 = arith.constant 2 : index
    %c0_13 = arith.constant 0 : index
    %c0_14 = arith.constant 0 : index
    %31 = vector.load %arg4[%c2, %c0_13, %c0_14] : memref<5x128x256xbf16, #tpu.memory_space<vmem>>, vector<1x128x256xbf16>
    %32 = vector.shape_cast %31 : vector<1x128x256xbf16> to vector<128x256xbf16>
    %cst_15 = arith.constant dense<0.000000e+00> : vector<80x256xf32>
    %33 = tpu.matmul %30, %32, %cst_15 {dimension_numbers = #tpu.dot_dimension_numbers<[1], [0], [0], [1], [0, 0, 1, 1], [], []>} : vector<80x128xbf16>, vector<128x256xbf16>, vector<80x256xf32> -> vector<80x256xf32>
    %34 = arith.addf %28, %33 : vector<80x256xf32>
    %35 = vector.extract_strided_slice %17 {offsets = [24, 0], sizes = [80, 128], strides = [1, 1]} : vector<112x128xf32> to vector<80x128xf32>
    %36 = arith.truncf %35 : vector<80x128xf32> to vector<80x128xbf16>
    %c3 = arith.constant 3 : index
    %c0_16 = arith.constant 0 : index
    %c0_17 = arith.constant 0 : index
    %37 = vector.load %arg4[%c3, %c0_16, %c0_17] : memref<5x128x256xbf16, #tpu.memory_space<vmem>>, vector<1x128x256xbf16>
    %38 = vector.shape_cast %37 : vector<1x128x256xbf16> to vector<128x256xbf16>
    %cst_18 = arith.constant dense<0.000000e+00> : vector<80x256xf32>
    %39 = tpu.matmul %36, %38, %cst_18 {dimension_numbers = #tpu.dot_dimension_numbers<[1], [0], [0], [1], [0, 0, 1, 1], [], []>} : vector<80x128xbf16>, vector<128x256xbf16>, vector<80x256xf32> -> vector<80x256xf32>
    %40 = arith.addf %34, %39 : vector<80x256xf32>
    %41 = vector.extract_strided_slice %17 {offsets = [32, 0], sizes = [80, 128], strides = [1, 1]} : vector<112x128xf32> to vector<80x128xf32>
    %42 = arith.truncf %41 : vector<80x128xf32> to vector<80x128xbf16>
    %c4 = arith.constant 4 : index
    %c0_19 = arith.constant 0 : index
    %c0_20 = arith.constant 0 : index
    %43 = vector.load %arg4[%c4, %c0_19, %c0_20] : memref<5x128x256xbf16, #tpu.memory_space<vmem>>, vector<1x128x256xbf16>
    %44 = vector.shape_cast %43 : vector<1x128x256xbf16> to vector<128x256xbf16>
    %cst_21 = arith.constant dense<0.000000e+00> : vector<80x256xf32>
    %45 = tpu.matmul %42, %44, %cst_21 {dimension_numbers = #tpu.dot_dimension_numbers<[1], [0], [0], [1], [0, 0, 1, 1], [], []>} : vector<80x128xbf16>, vector<128x256xbf16>, vector<80x256xf32> -> vector<80x256xf32>
    %46 = arith.addf %40, %45 : vector<80x256xf32>
    %c0_22 = arith.constant 0 : index
    %c0_23 = arith.constant 0 : index
    %47 = vector.load %arg5[%c0_22, %c0_23] : memref<1x256xf32, #tpu.memory_space<vmem>>, vector<1x256xf32>
    %48 = vector.broadcast %47 : vector<1x256xf32> to vector<80x256xf32>
    %49 = arith.addf %46, %48 : vector<80x256xf32>
    %cst_24 = arith.constant 0.000000e+00 : f32
    %50 = vector.broadcast %cst_24 : f32 to vector<80x256xf32>
    %51 = arith.maximumf %49, %50 : vector<80x256xf32>
    %52 = vector.extract_strided_slice %51 {offsets = [0, 0], sizes = [80, 128], strides = [1, 1]} : vector<80x256xf32> to vector<80x128xf32>
    %53 = vector.extract_strided_slice %51 {offsets = [0, 128], sizes = [80, 128], strides = [1, 1]} : vector<80x256xf32> to vector<80x128xf32>
    %54 = arith.maximumf %52, %53 : vector<80x128xf32>
    %55 = vector.shape_cast %54 : vector<80x128xf32> to vector<5x2x8x128xf32>
    %56 = vector.extract_strided_slice %55 {offsets = [0, 0, 0, 0], sizes = [5, 1, 8, 128], strides = [1, 1, 1, 1]} : vector<5x2x8x128xf32> to vector<5x1x8x128xf32>
    %57 = vector.shape_cast %56 : vector<5x1x8x128xf32> to vector<5x8x128xf32>
    %58 = vector.extract_strided_slice %55 {offsets = [0, 1, 0, 0], sizes = [5, 1, 8, 128], strides = [1, 1, 1, 1]} : vector<5x2x8x128xf32> to vector<5x1x8x128xf32>
    %59 = vector.shape_cast %58 : vector<5x1x8x128xf32> to vector<5x8x128xf32>
    %60 = arith.maximumf %57, %59 : vector<5x8x128xf32>
    %61 = vector.shape_cast %60 : vector<5x8x128xf32> to vector<40x128xf32>
    %62 = vector.extract_strided_slice %61 {offsets = [0, 0], sizes = [8, 128], strides = [1, 1]} : vector<40x128xf32> to vector<8x128xf32>
    %63 = arith.truncf %62 : vector<8x128xf32> to vector<8x128xbf16>
    %c0_25 = arith.constant 0 : index
    %c0_26 = arith.constant 0 : index
    %c0_27 = arith.constant 0 : index
    %64 = vector.load %arg6[%c0_25, %c0_26, %c0_27] : memref<5x128x128xbf16, #tpu.memory_space<vmem>>, vector<1x128x128xbf16>
    %65 = vector.shape_cast %64 : vector<1x128x128xbf16> to vector<128x128xbf16>
    %cst_28 = arith.constant dense<0.000000e+00> : vector<8x128xf32>
    %66 = tpu.matmul %63, %65, %cst_28 {dimension_numbers = #tpu.dot_dimension_numbers<[1], [0], [0], [1], [0, 0, 1, 1], [], []>} : vector<8x128xbf16>, vector<128x128xbf16>, vector<8x128xf32> -> vector<8x128xf32>
    %67 = vector.extract_strided_slice %61 {offsets = [8, 0], sizes = [8, 128], strides = [1, 1]} : vector<40x128xf32> to vector<8x128xf32>
    %68 = arith.truncf %67 : vector<8x128xf32> to vector<8x128xbf16>
    %c1_29 = arith.constant 1 : index
    %c0_30 = arith.constant 0 : index
    %c0_31 = arith.constant 0 : index
    %69 = vector.load %arg6[%c1_29, %c0_30, %c0_31] : memref<5x128x128xbf16, #tpu.memory_space<vmem>>, vector<1x128x128xbf16>
    %70 = vector.shape_cast %69 : vector<1x128x128xbf16> to vector<128x128xbf16>
    %cst_32 = arith.constant dense<0.000000e+00> : vector<8x128xf32>
    %71 = tpu.matmul %68, %70, %cst_32 {dimension_numbers = #tpu.dot_dimension_numbers<[1], [0], [0], [1], [0, 0, 1, 1], [], []>} : vector<8x128xbf16>, vector<128x128xbf16>, vector<8x128xf32> -> vector<8x128xf32>
    %72 = arith.addf %66, %71 : vector<8x128xf32>
    %73 = vector.extract_strided_slice %61 {offsets = [16, 0], sizes = [8, 128], strides = [1, 1]} : vector<40x128xf32> to vector<8x128xf32>
    %74 = arith.truncf %73 : vector<8x128xf32> to vector<8x128xbf16>
    %c2_33 = arith.constant 2 : index
    %c0_34 = arith.constant 0 : index
    %c0_35 = arith.constant 0 : index
    %75 = vector.load %arg6[%c2_33, %c0_34, %c0_35] : memref<5x128x128xbf16, #tpu.memory_space<vmem>>, vector<1x128x128xbf16>
    %76 = vector.shape_cast %75 : vector<1x128x128xbf16> to vector<128x128xbf16>
    %cst_36 = arith.constant dense<0.000000e+00> : vector<8x128xf32>
    %77 = tpu.matmul %74, %76, %cst_36 {dimension_numbers = #tpu.dot_dimension_numbers<[1], [0], [0], [1], [0, 0, 1, 1], [], []>} : vector<8x128xbf16>, vector<128x128xbf16>, vector<8x128xf32> -> vector<8x128xf32>
    %78 = arith.addf %72, %77 : vector<8x128xf32>
    %79 = vector.extract_strided_slice %61 {offsets = [24, 0], sizes = [8, 128], strides = [1, 1]} : vector<40x128xf32> to vector<8x128xf32>
    %80 = arith.truncf %79 : vector<8x128xf32> to vector<8x128xbf16>
    %c3_37 = arith.constant 3 : index
    %c0_38 = arith.constant 0 : index
    %c0_39 = arith.constant 0 : index
    %81 = vector.load %arg6[%c3_37, %c0_38, %c0_39] : memref<5x128x128xbf16, #tpu.memory_space<vmem>>, vector<1x128x128xbf16>
    %82 = vector.shape_cast %81 : vector<1x128x128xbf16> to vector<128x128xbf16>
    %cst_40 = arith.constant dense<0.000000e+00> : vector<8x128xf32>
    %83 = tpu.matmul %80, %82, %cst_40 {dimension_numbers = #tpu.dot_dimension_numbers<[1], [0], [0], [1], [0, 0, 1, 1], [], []>} : vector<8x128xbf16>, vector<128x128xbf16>, vector<8x128xf32> -> vector<8x128xf32>
    %84 = arith.addf %78, %83 : vector<8x128xf32>
    %85 = vector.extract_strided_slice %61 {offsets = [32, 0], sizes = [8, 128], strides = [1, 1]} : vector<40x128xf32> to vector<8x128xf32>
    %86 = arith.truncf %85 : vector<8x128xf32> to vector<8x128xbf16>
    %c4_41 = arith.constant 4 : index
    %c0_42 = arith.constant 0 : index
    %c0_43 = arith.constant 0 : index
    %87 = vector.load %arg6[%c4_41, %c0_42, %c0_43] : memref<5x128x128xbf16, #tpu.memory_space<vmem>>, vector<1x128x128xbf16>
    %88 = vector.shape_cast %87 : vector<1x128x128xbf16> to vector<128x128xbf16>
    %cst_44 = arith.constant dense<0.000000e+00> : vector<8x128xf32>
    %89 = tpu.matmul %86, %88, %cst_44 {dimension_numbers = #tpu.dot_dimension_numbers<[1], [0], [0], [1], [0, 0, 1, 1], [], []>} : vector<8x128xbf16>, vector<128x128xbf16>, vector<8x128xf32> -> vector<8x128xf32>
    %90 = arith.addf %84, %89 : vector<8x128xf32>
    %c0_45 = arith.constant 0 : index
    %c0_46 = arith.constant 0 : index
    %91 = vector.load %arg7[%c0_45, %c0_46] : memref<1x128xf32, #tpu.memory_space<vmem>>, vector<1x128xf32>
    %92 = vector.broadcast %91 : vector<1x128xf32> to vector<8x128xf32>
    %93 = arith.addf %90, %92 : vector<8x128xf32>
    %cst_47 = arith.constant 0.000000e+00 : f32
    %94 = vector.broadcast %cst_47 : f32 to vector<8x128xf32>
    %95 = arith.maximumf %93, %94 : vector<8x128xf32>
    %96 = arith.truncf %95 : vector<8x128xf32> to vector<8x128xbf16>
    %c0_48 = arith.constant 0 : index
    %c0_49 = arith.constant 0 : index
    %97 = vector.load %arg8[%c0_48, %c0_49] : memref<128x512xbf16, #tpu.memory_space<vmem>>, vector<128x512xbf16>
    %cst_50 = arith.constant dense<0.000000e+00> : vector<8x512xf32>
    %98 = tpu.matmul %96, %97, %cst_50 {dimension_numbers = #tpu.dot_dimension_numbers<[1], [0], [0], [1], [0, 0, 1, 1], [], []>} : vector<8x128xbf16>, vector<128x512xbf16>, vector<8x512xf32> -> vector<8x512xf32>
    %c0_51 = arith.constant 0 : index
    %c0_52 = arith.constant 0 : index
    %99 = vector.load %arg9[%c0_51, %c0_52] : memref<1x512xf32, #tpu.memory_space<vmem>>, vector<1x512xf32>
    %100 = vector.broadcast %99 : vector<1x512xf32> to vector<8x512xf32>
    %101 = arith.addf %98, %100 : vector<8x512xf32>
    %cst_53 = arith.constant 0.000000e+00 : f32
    %102 = vector.broadcast %cst_53 : f32 to vector<8x512xf32>
    %103 = arith.maximumf %101, %102 : vector<8x512xf32>
    %c0_54 = arith.constant 0 : index
    %c0_55 = arith.constant 0 : index
    %104 = vector.load %arg16[%c0_54, %c0_55] : memref<8x512xf32, #tpu.memory_space<vmem>>, vector<8x512xf32>
    tpu.vector_store %arg16[%c0_54, %c0_55], %103 {strides = array<i32>} : memref<8x512xf32, #tpu.memory_space<vmem>>, vector<8x512xf32>,
    %105 = arith.truncf %103 : vector<8x512xf32> to vector<8x512xbf16>
    %c0_56 = arith.constant 0 : index
    %c0_57 = arith.constant 0 : index
    %106 = vector.load %arg10[%c0_56, %c0_57] : memref<512x256xbf16, #tpu.memory_space<vmem>>, vector<512x256xbf16>
    %cst_58 = arith.constant dense<0.000000e+00> : vector<8x256xf32>
    %107 = tpu.matmul %105, %106, %cst_58 {dimension_numbers = #tpu.dot_dimension_numbers<[1], [0], [0], [1], [0, 0, 1, 1], [], []>} : vector<8x512xbf16>, vector<512x256xbf16>, vector<8x256xf32> -> vector<8x256xf32>
    %c0_59 = arith.constant 0 : index
    %c0_60 = arith.constant 0 : index
    %108 = vector.load %arg11[%c0_59, %c0_60] : memref<1x256xf32, #tpu.memory_space<vmem>>, vector<1x256xf32>
    %109 = vector.broadcast %108 : vector<1x256xf32> to vector<8x256xf32>
    %110 = arith.addf %107, %109 : vector<8x256xf32>
    %cst_61 = arith.constant 0.000000e+00 : f32
    %111 = vector.broadcast %cst_61 : f32 to vector<8x256xf32>
    %112 = arith.maximumf %110, %111 : vector<8x256xf32>
    %113 = arith.truncf %112 : vector<8x256xf32> to vector<8x256xbf16>
    %c0_62 = arith.constant 0 : index
    %c0_63 = arith.constant 0 : index
    %114 = vector.load %arg12[%c0_62, %c0_63] : memref<256x512xbf16, #tpu.memory_space<vmem>>, vector<256x512xbf16>
    %cst_64 = arith.constant dense<0.000000e+00> : vector<8x512xf32>
    %115 = tpu.matmul %113, %114, %cst_64 {dimension_numbers = #tpu.dot_dimension_numbers<[1], [0], [0], [1], [0, 0, 1, 1], [], []>} : vector<8x256xbf16>, vector<256x512xbf16>, vector<8x512xf32> -> vector<8x512xf32>
    %c0_65 = arith.constant 0 : index
    %c0_66 = arith.constant 0 : index
    %116 = vector.load %arg13[%c0_65, %c0_66] : memref<1x512xf32, #tpu.memory_space<vmem>>, vector<1x512xf32>
    %117 = vector.broadcast %116 : vector<1x512xf32> to vector<8x512xf32>
    %118 = arith.addf %115, %117 : vector<8x512xf32>
    %c0_67 = arith.constant 0 : index
    %c0_68 = arith.constant 0 : index
    %119 = vector.load %arg17[%c0_67, %c0_68] : memref<8x512xf32, #tpu.memory_space<vmem>>, vector<8x512xf32>
    tpu.vector_store %arg17[%c0_67, %c0_68], %118 {strides = array<i32>} : memref<8x512xf32, #tpu.memory_space<vmem>>, vector<8x512xf32>,
    %120 = arith.truncf %118 : vector<8x512xf32> to vector<8x512xbf16>
    %c0_69 = arith.constant 0 : index
    %c0_70 = arith.constant 0 : index
    %121 = vector.load %arg14[%c0_69, %c0_70] : memref<512x128xbf16, #tpu.memory_space<vmem>>, vector<512x128xbf16>
    %cst_71 = arith.constant dense<0.000000e+00> : vector<8x128xf32>
    %122 = tpu.matmul %120, %121, %cst_71 {dimension_numbers = #tpu.dot_dimension_numbers<[1], [0], [0], [1], [0, 0, 1, 1], [], []>} : vector<8x512xbf16>, vector<512x128xbf16>, vector<8x128xf32> -> vector<8x128xf32>
    %c0_72 = arith.constant 0 : index
    %c0_73 = arith.constant 0 : index
    %123 = vector.load %arg15[%c0_72, %c0_73] : memref<1x128xf32, #tpu.memory_space<vmem>>, vector<1x128xf32>
    %124 = vector.broadcast %123 : vector<1x128xf32> to vector<8x128xf32>
    %125 = arith.addf %122, %124 : vector<8x128xf32>
    %c0_74 = arith.constant 0 : index
    %c0_75 = arith.constant 0 : index
    %126 = vector.load %arg18[%c0_74, %c0_75] : memref<8x128xf32, #tpu.memory_space<vmem>>, vector<8x128xf32>
    tpu.vector_store %arg18[%c0_74, %c0_75], %125 {strides = array<i32>} : memref<8x128xf32, #tpu.memory_space<vmem>>, vector<8x128xf32>,
    return
  }
  func.func @transform_0(%arg0: i32) -> (i32, i32) {
    %c0_i32 = arith.constant 0 : i32
    %c0_i32_0 = arith.constant 0 : i32
    return %arg0, %c0_i32 : i32, i32
  }
  func.func @transform_1(%arg0: i32) -> (i32, i32) {
    %c0_i32 = arith.constant 0 : i32
    %c0_i32_0 = arith.constant 0 : i32
    %c0_i32_1 = arith.constant 0 : i32
    return %c0_i32, %c0_i32_0 : i32, i32
  }
  func.func @transform_2(%arg0: i32) -> (i32, i32) {
    %c0_i32 = arith.constant 0 : i32
    %c0_i32_0 = arith.constant 0 : i32
    %c0_i32_1 = arith.constant 0 : i32
    return %c0_i32, %c0_i32_0 : i32, i32
  }
  func.func @transform_3(%arg0: i32) -> (i32, i32, i32) {
    %c0_i32 = arith.constant 0 : i32
    %c0_i32_0 = arith.constant 0 : i32
    %c0_i32_1 = arith.constant 0 : i32
    %c0_i32_2 = arith.constant 0 : i32
    return %c0_i32, %c0_i32_0, %c0_i32_1 : i32, i32, i32
  }
  func.func @transform_4(%arg0: i32) -> (i32, i32) {
    %c0_i32 = arith.constant 0 : i32
    %c0_i32_0 = arith.constant 0 : i32
    %c0_i32_1 = arith.constant 0 : i32
    return %c0_i32, %c0_i32_0 : i32, i32
  }
  func.func @transform_5(%arg0: i32) -> (i32, i32, i32) {
    %c0_i32 = arith.constant 0 : i32
    %c0_i32_0 = arith.constant 0 : i32
    %c0_i32_1 = arith.constant 0 : i32
    %c0_i32_2 = arith.constant 0 : i32
    return %c0_i32, %c0_i32_0, %c0_i32_1 : i32, i32, i32
  }
  func.func @transform_6(%arg0: i32) -> (i32, i32) {
    %c0_i32 = arith.constant 0 : i32
    %c0_i32_0 = arith.constant 0 : i32
    %c0_i32_1 = arith.constant 0 : i32
    return %c0_i32, %c0_i32_0 : i32, i32
  }
  func.func @transform_7(%arg0: i32) -> (i32, i32) {
    %c0_i32 = arith.constant 0 : i32
    %c0_i32_0 = arith.constant 0 : i32
    %c0_i32_1 = arith.constant 0 : i32
    return %c0_i32, %c0_i32_0 : i32, i32
  }
  func.func @transform_8(%arg0: i32) -> (i32, i32) {
    %c0_i32 = arith.constant 0 : i32
    %c0_i32_0 = arith.constant 0 : i32
    %c0_i32_1 = arith.constant 0 : i32
    return %c0_i32, %c0_i32_0 : i32, i32
  }
  func.func @transform_9(%arg0: i32) -> (i32, i32) {
    %c0_i32 = arith.constant 0 : i32
    %c0_i32_0 = arith.constant 0 : i32
    %c0_i32_1 = arith.constant 0 : i32
    return %c0_i32, %c0_i32_0 : i32, i32
  }
  func.func @transform_10(%arg0: i32) -> (i32, i32) {
    %c0_i32 = arith.constant 0 : i32
    %c0_i32_0 = arith.constant 0 : i32
    %c0_i32_1 = arith.constant 0 : i32
    return %c0_i32, %c0_i32_0 : i32, i32
  }
  func.func @transform_11(%arg0: i32) -> (i32, i32) {
    %c0_i32 = arith.constant 0 : i32
    %c0_i32_0 = arith.constant 0 : i32
    %c0_i32_1 = arith.constant 0 : i32
    return %c0_i32, %c0_i32_0 : i32, i32
  }
  func.func @transform_12(%arg0: i32) -> (i32, i32) {
    %c0_i32 = arith.constant 0 : i32
    %c0_i32_0 = arith.constant 0 : i32
    %c0_i32_1 = arith.constant 0 : i32
    return %c0_i32, %c0_i32_0 : i32, i32
  }
  func.func @transform_13(%arg0: i32) -> (i32, i32) {
    %c0_i32 = arith.constant 0 : i32
    %c0_i32_0 = arith.constant 0 : i32
    %c0_i32_1 = arith.constant 0 : i32
    return %c0_i32, %c0_i32_0 : i32, i32
  }
  func.func @transform_14(%arg0: i32) -> (i32, i32) {
    %c0_i32 = arith.constant 0 : i32
    %c0_i32_0 = arith.constant 0 : i32
    %c0_i32_1 = arith.constant 0 : i32
    return %c0_i32, %c0_i32_0 : i32, i32
  }
  func.func @transform_15(%arg0: i32) -> (i32, i32) {
    %c0_i32 = arith.constant 0 : i32
    %c0_i32_0 = arith.constant 0 : i32
    return %arg0, %c0_i32 : i32, i32
  }
  func.func @transform_16(%arg0: i32) -> (i32, i32) {
    %c0_i32 = arith.constant 0 : i32
    %c0_i32_0 = arith.constant 0 : i32
    return %arg0, %c0_i32 : i32, i32
  }
  func.func @transform_17(%arg0: i32) -> (i32, i32) {
    %c0_i32 = arith.constant 0 : i32
    %c0_i32_0 = arith.constant 0 : i32
    return %arg0, %c0_i32 : i32, i32
  }
}

</mosaic_0001>

<llo_original>
// kernel: _forward_impl.1
$region0: #{_forward_impl.1}
  #allocation0 [shape = 'u32[]', space=smem, size = 0x4, offset = 0x4, fixed_abs, tag = 'smem constant byte address 0x4 - core index']
  #allocation1 [shape = 'u32[72,128]{1,0:T(1,128)}', space=vmem, size = 0x9000, scoped, tag = 'internal scratch']
  %s0 = inlined_call_operand.vmem [shape: bf16[448,480], index: 0, kind: input, shape index: {}]
  %s1 = inlined_call_operand.vmem [shape: bf16[480,256], index: 1, kind: input, shape index: {}]
  %s2 = inlined_call_operand.vmem [shape: f32[1,256], index: 2, kind: input, shape index: {}]
  %s3 = inlined_call_operand.vmem [shape: bf16[5,128,256], index: 3, kind: input, shape index: {}]
  %s4 = inlined_call_operand.vmem [shape: f32[1,256], index: 4, kind: input, shape index: {}]
  %s5 = inlined_call_operand.vmem [shape: bf16[5,128,128], index: 5, kind: input, shape index: {}]
  %s6 = inlined_call_operand.vmem [shape: f32[1,128], index: 6, kind: input, shape index: {}]
  %s7 = inlined_call_operand.vmem [shape: bf16[128,512], index: 7, kind: input, shape index: {}]
  %s8 = inlined_call_operand.vmem [shape: f32[1,512], index: 8, kind: input, shape index: {}]
  %s9 = inlined_call_operand.vmem [shape: bf16[512,256], index: 9, kind: input, shape index: {}]
  %s10 = inlined_call_operand.vmem [shape: f32[1,256], index: 10, kind: input, shape index: {}]
  %s11 = inlined_call_operand.vmem [shape: bf16[256,512], index: 11, kind: input, shape index: {}]
  %s12 = inlined_call_operand.vmem [shape: f32[1,512], index: 12, kind: input, shape index: {}]
  %s13 = inlined_call_operand.vmem [shape: bf16[512,128], index: 13, kind: input, shape index: {}]
  %s14 = inlined_call_operand.vmem [shape: f32[1,128], index: 14, kind: input, shape index: {}]
  %s15 = inlined_call_operand.vmem [shape: f32[16,512], index: 15, kind: output, shape index: {0}]
  %s16 = inlined_call_operand.vmem [shape: f32[16,512], index: 16, kind: output, shape index: {1}]
  %s17 = inlined_call_operand.vmem [shape: f32[16,128], index: 17, kind: output, shape index: {2}]
  %18 = xla_tuple %s15, %s16, %s17
  %s19 = sld [smem:[#allocation0]]
  $region109: #{_forward_impl.1} parent=0
    _
  %s21 = ssub.s32 1, %s19
  %s22 = scalar_select 0, %s21, %s19
  loop: start=0, step=1, limit=4
  $region2: #{_forward_impl.1} parent=0 // loop_pre_header
    _
  $region3: #{_forward_impl.1} parent=0 // loop_header
    %s24 = sphi 0, %s28
    %p25 = scmp.ge.s32.totalorder %s24, 4
    %s34 = sphi 0, %s36
    %s37 = sphi 0, %s34
    %s38 = sphi 0, %s37
    %s54 = sphi 0, %s38
    %s58 = sphi 0, %s58
    %s60 = sphi 0, %s58
    %s61 = sphi 0, %s60
    %s75 = sphi 0, %s61
    %s79 = sphi 0, %s79
    %s81 = sphi 0, %s79
    %s82 = sphi 0, %s81
    %s96 = sphi 0, %s82
    %s100 = sphi 0, %s100
    %s102 = sphi 0, %s100
    %s103 = sphi 0, %s102
    %s117 = sphi 0, %s103
    %s121 = sphi 0, %s121
    %s123 = sphi 0, %s121
    %s124 = sphi 0, %s123
    %s138 = sphi 0, %s124
    %s142 = sphi 0, %s142
    %s144 = sphi 0, %s142
    %s145 = sphi 0, %s144
    %s159 = sphi 0, %s145
    %s163 = sphi 0, %s163
    %s165 = sphi 0, %s163
    %s166 = sphi 0, %s165
    %s180 = sphi 0, %s166
    %s184 = sphi 0, %s184
    %s186 = sphi 0, %s184
    %s187 = sphi 0, %s186
    %s201 = sphi 0, %s187
    %s205 = sphi 0, %s205
    %s207 = sphi 0, %s205
    %s208 = sphi 0, %s207
    %s222 = sphi 0, %s208
    %s226 = sphi 0, %s226
    %s228 = sphi 0, %s226
    %s229 = sphi 0, %s228
    %s243 = sphi 0, %s229
    %s247 = sphi 0, %s247
    %s249 = sphi 0, %s247
    %s250 = sphi 0, %s249
    %s264 = sphi 0, %s250
    %s268 = sphi 0, %s268
    %s270 = sphi 0, %s268
    %s271 = sphi 0, %s270
    %s285 = sphi 0, %s271
    %s289 = sphi 0, %s289
    %s291 = sphi 0, %s289
    %s292 = sphi 0, %s291
    %s306 = sphi 0, %s292
    %s310 = sphi 0, %s310
    %s312 = sphi 0, %s310
    %s313 = sphi 0, %s312
    %s327 = sphi 0, %s313
    %s331 = sphi 0, %s331
    %s333 = sphi 0, %s331
    %s334 = sphi 0, %s333
    %s348 = sphi 0, %s334
    %s354 = sphi 0, %s356
    %s357 = sphi 0, %s354
    %s358 = sphi 0, %s357
    %s374 = sphi 0, %s358
    %s380 = sphi 0, %s382
    %s383 = sphi 0, %s380
    %s384 = sphi 0, %s383
    %s400 = sphi 0, %s384
    %s406 = sphi 0, %s408
    %s409 = sphi 0, %s406
    %s410 = sphi 0, %s409
    %s426 = sphi 0, %s410
  $region4: #{_forward_impl.1} parent=0 // loop_header_branch
    %27 = sbr.rel (%p25) target = $region8
  $region5: #{_forward_impl.1} parent=0 // loop_body
    %s29 = ssub.s32 %s24, 1
    %s30 = ssub.s32 %s24, 2
    %s31 = sadd.s32 %s24, 1
    %s32 = ssub.s32 %s24, %s31
    %p33 = scmp.eq.s32.totalorder %s32, 0
    %s35 = sadd.s32 %s34, 1
    %s36 = scalar_select %p33, %s34, %s35
    %p39 = pneg %p33
    %p40 = scmp.eq.s32.totalorder %s24, 1
    %p41 = por %p39, %p40
    %p42 = scmp.ne.s32.totalorder %s34, %s37
    %p43 = scmp.eq.s32.totalorder %s24, 0
    %p44 = por %p42, %p43
    %p45 = scmp.ne.s32.totalorder %s34, %s37
    %p46 = scmp.eq.s32.totalorder %s29, 1
    %p47 = por %p45, %p46
    %p48 = scmp.ne.s32.totalorder %s37, %s38
    %p49 = scmp.eq.s32.totalorder %s29, 0
    %p50 = por %p48, %p49
    %p51 = scmp.ne.s32.totalorder %s37, %s38
    %p52 = scmp.eq.s32.totalorder %s30, 1
    %p53 = por %p51, %p52
    %p55 = scmp.ne.s32.totalorder %s38, %s54
    %p56 = scmp.eq.s32.totalorder %s30, 0
    %p57 = por %p55, %p56
    %s59 = sadd.s32 %s58, 1
    %p62 = scmp.eq.s32.totalorder %s24, 1
    %p63 = scmp.ne.s32.totalorder %s58, %s60
    %p64 = scmp.eq.s32.totalorder %s24, 0
    %p65 = por %p63, %p64
    %p66 = scmp.ne.s32.totalorder %s58, %s60
    %p67 = scmp.eq.s32.totalorder %s29, 1
    %p68 = por %p66, %p67
    %p69 = scmp.ne.s32.totalorder %s60, %s61
    %p70 = scmp.eq.s32.totalorder %s29, 0
    %p71 = por %p69, %p70
    %p72 = scmp.ne.s32.totalorder %s60, %s61
    %p73 = scmp.eq.s32.totalorder %s30, 1
    %p74 = por %p72, %p73
    %p76 = scmp.ne.s32.totalorder %s61, %s75
    %p77 = scmp.eq.s32.totalorder %s30, 0
    %p78 = por %p76, %p77
    %s80 = sadd.s32 %s79, 1
    %p83 = scmp.eq.s32.totalorder %s24, 1
    %p84 = scmp.ne.s32.totalorder %s79, %s81
    %p85 = scmp.eq.s32.totalorder %s24, 0
    %p86 = por %p84, %p85
    %p87 = scmp.ne.s32.totalorder %s79, %s81
    %p88 = scmp.eq.s32.totalorder %s29, 1
    %p89 = por %p87, %p88
    %p90 = scmp.ne.s32.totalorder %s81, %s82
    %p91 = scmp.eq.s32.totalorder %s29, 0
    %p92 = por %p90, %p91
    %p93 = scmp.ne.s32.totalorder %s81, %s82
    %p94 = scmp.eq.s32.totalorder %s30, 1
    %p95 = por %p93, %p94
    %p97 = scmp.ne.s32.totalorder %s82, %s96
    %p98 = scmp.eq.s32.totalorder %s30, 0
    %p99 = por %p97, %p98
    %s101 = sadd.s32 %s100, 1
    %p104 = scmp.eq.s32.totalorder %s24, 1
    %p105 = scmp.ne.s32.totalorder %s100, %s102
    %p106 = scmp.eq.s32.totalorder %s24, 0
    %p107 = por %p105, %p106
    %p108 = scmp.ne.s32.totalorder %s100, %s102
    %p109 = scmp.eq.s32.totalorder %s29, 1
    %p110 = por %p108, %p109
    %p111 = scmp.ne.s32.totalorder %s102, %s103
    %p112 = scmp.eq.s32.totalorder %s29, 0
    %p113 = por %p111, %p112
    %p114 = scmp.ne.s32.totalorder %s102, %s103
    %p115 = scmp.eq.s32.totalorder %s30, 1
    %p116 = por %p114, %p115
    %p118 = scmp.ne.s32.totalorder %s103, %s117
    %p119 = scmp.eq.s32.totalorder %s30, 0
    %p120 = por %p118, %p119
    %s122 = sadd.s32 %s121, 1
    %p125 = scmp.eq.s32.totalorder %s24, 1
    %p126 = scmp.ne.s32.totalorder %s121, %s123
    %p127 = scmp.eq.s32.totalorder %s24, 0
    %p128 = por %p126, %p127
    %p129 = scmp.ne.s32.totalorder %s121, %s123
    %p130 = scmp.eq.s32.totalorder %s29, 1
    %p131 = por %p129, %p130
    %p132 = scmp.ne.s32.totalorder %s123, %s124
    %p133 = scmp.eq.s32.totalorder %s29, 0
    %p134 = por %p132, %p133
    %p135 = scmp.ne.s32.totalorder %s123, %s124
    %p136 = scmp.eq.s32.totalorder %s30, 1
    %p137 = por %p135, %p136
    %p139 = scmp.ne.s32.totalorder %s124, %s138
    %p140 = scmp.eq.s32.totalorder %s30, 0
    %p141 = por %p139, %p140
    %s143 = sadd.s32 %s142, 1
    %p146 = scmp.eq.s32.totalorder %s24, 1
    %p147 = scmp.ne.s32.totalorder %s142, %s144
    %p148 = scmp.eq.s32.totalorder %s24, 0
    %p149 = por %p147, %p148
    %p150 = scmp.ne.s32.totalorder %s142, %s144
    %p151 = scmp.eq.s32.totalorder %s29, 1
    %p152 = por %p150, %p151
    %p153 = scmp.ne.s32.totalorder %s144, %s145
    %p154 = scmp.eq.s32.totalorder %s29, 0
    %p155 = por %p153, %p154
    %p156 = scmp.ne.s32.totalorder %s144, %s145
    %p157 = scmp.eq.s32.totalorder %s30, 1
    %p158 = por %p156, %p157
    %p160 = scmp.ne.s32.totalorder %s145, %s159
    %p161 = scmp.eq.s32.totalorder %s30, 0
    %p162 = por %p160, %p161
    %s164 = sadd.s32 %s163, 1
    %p167 = scmp.eq.s32.totalorder %s24, 1
    %p168 = scmp.ne.s32.totalorder %s163, %s165
    %p169 = scmp.eq.s32.totalorder %s24, 0
    %p170 = por %p168, %p169
    %p171 = scmp.ne.s32.totalorder %s163, %s165
    %p172 = scmp.eq.s32.totalorder %s29, 1
    %p173 = por %p171, %p172
    %p174 = scmp.ne.s32.totalorder %s165, %s166
    %p175 = scmp.eq.s32.totalorder %s29, 0
    %p176 = por %p174, %p175
    %p177 = scmp.ne.s32.totalorder %s165, %s166
    %p178 = scmp.eq.s32.totalorder %s30, 1
    %p179 = por %p177, %p178
    %p181 = scmp.ne.s32.totalorder %s166, %s180
    %p182 = scmp.eq.s32.totalorder %s30, 0
    %p183 = por %p181, %p182
    %s185 = sadd.s32 %s184, 1
    %p188 = scmp.eq.s32.totalorder %s24, 1
    %p189 = scmp.ne.s32.totalorder %s184, %s186
    %p190 = scmp.eq.s32.totalorder %s24, 0
    %p191 = por %p189, %p190
    %p192 = scmp.ne.s32.totalorder %s184, %s186
    %p193 = scmp.eq.s32.totalorder %s29, 1
    %p194 = por %p192, %p193
    %p195 = scmp.ne.s32.totalorder %s186, %s187
    %p196 = scmp.eq.s32.totalorder %s29, 0
    %p197 = por %p195, %p196
    %p198 = scmp.ne.s32.totalorder %s186, %s187
    %p199 = scmp.eq.s32.totalorder %s30, 1
    %p200 = por %p198, %p199
    %p202 = scmp.ne.s32.totalorder %s187, %s201
    %p203 = scmp.eq.s32.totalorder %s30, 0
    %p204 = por %p202, %p203
    %s206 = sadd.s32 %s205, 1
    %p209 = scmp.eq.s32.totalorder %s24, 1
    %p210 = scmp.ne.s32.totalorder %s205, %s207
    %p211 = scmp.eq.s32.totalorder %s24, 0
    %p212 = por %p210, %p211
    %p213 = scmp.ne.s32.totalorder %s205, %s207
    %p214 = scmp.eq.s32.totalorder %s29, 1
    %p215 = por %p213, %p214
    %p216 = scmp.ne.s32.totalorder %s207, %s208
    %p217 = scmp.eq.s32.totalorder %s29, 0
    %p218 = por %p216, %p217
    %p219 = scmp.ne.s32.totalorder %s207, %s208
    %p220 = scmp.eq.s32.totalorder %s30, 1
    %p221 = por %p219, %p220
    %p223 = scmp.ne.s32.totalorder %s208, %s222
    %p224 = scmp.eq.s32.totalorder %s30, 0
    %p225 = por %p223, %p224
    %s227 = sadd.s32 %s226, 1
    %p230 = scmp.eq.s32.totalorder %s24, 1
    %p231 = scmp.ne.s32.totalorder %s226, %s228
    %p232 = scmp.eq.s32.totalorder %s24, 0
    %p233 = por %p231, %p232
    %p234 = scmp.ne.s32.totalorder %s226, %s228
    %p235 = scmp.eq.s32.totalorder %s29, 1
    %p236 = por %p234, %p235
    %p237 = scmp.ne.s32.totalorder %s228, %s229
    %p238 = scmp.eq.s32.totalorder %s29, 0
    %p239 = por %p237, %p238
    %p240 = scmp.ne.s32.totalorder %s228, %s229
    %p241 = scmp.eq.s32.totalorder %s30, 1
    %p242 = por %p240, %p241
    %p244 = scmp.ne.s32.totalorder %s229, %s243
    %p245 = scmp.eq.s32.totalorder %s30, 0
    %p246 = por %p244, %p245
    %s248 = sadd.s32 %s247, 1
    %p251 = scmp.eq.s32.totalorder %s24, 1
    %p252 = scmp.ne.s32.totalorder %s247, %s249
    %p253 = scmp.eq.s32.totalorder %s24, 0
    %p254 = por %p252, %p253
    %p255 = scmp.ne.s32.totalorder %s247, %s249
    %p256 = scmp.eq.s32.totalorder %s29, 1
    %p257 = por %p255, %p256
    %p258 = scmp.ne.s32.totalorder %s249, %s250
    %p259 = scmp.eq.s32.totalorder %s29, 0
    %p260 = por %p258, %p259
    %p261 = scmp.ne.s32.totalorder %s249, %s250
    %p262 = scmp.eq.s32.totalorder %s30, 1
    %p263 = por %p261, %p262
    %p265 = scmp.ne.s32.totalorder %s250, %s264
    %p266 = scmp.eq.s32.totalorder %s30, 0
    %p267 = por %p265, %p266
    %s269 = sadd.s32 %s268, 1
    %p272 = scmp.eq.s32.totalorder %s24, 1
    %p273 = scmp.ne.s32.totalorder %s268, %s270
    %p274 = scmp.eq.s32.totalorder %s24, 0
    %p275 = por %p273, %p274
    %p276 = scmp.ne.s32.totalorder %s268, %s270
    %p277 = scmp.eq.s32.totalorder %s29, 1
    %p278 = por %p276, %p277
    %p279 = scmp.ne.s32.totalorder %s270, %s271
    %p280 = scmp.eq.s32.totalorder %s29, 0
    %p281 = por %p279, %p280
    %p282 = scmp.ne.s32.totalorder %s270, %s271
    %p283 = scmp.eq.s32.totalorder %s30, 1
    %p284 = por %p282, %p283
    %p286 = scmp.ne.s32.totalorder %s271, %s285
    %p287 = scmp.eq.s32.totalorder %s30, 0
    %p288 = por %p286, %p287
    %s290 = sadd.s32 %s289, 1
    %p293 = scmp.eq.s32.totalorder %s24, 1
    %p294 = scmp.ne.s32.totalorder %s289, %s291
    %p295 = scmp.eq.s32.totalorder %s24, 0
    %p296 = por %p294, %p295
    %p297 = scmp.ne.s32.totalorder %s289, %s291
    %p298 = scmp.eq.s32.totalorder %s29, 1
    %p299 = por %p297, %p298
    %p300 = scmp.ne.s32.totalorder %s291, %s292
    %p301 = scmp.eq.s32.totalorder %s29, 0
    %p302 = por %p300, %p301
    %p303 = scmp.ne.s32.totalorder %s291, %s292
    %p304 = scmp.eq.s32.totalorder %s30, 1
    %p305 = por %p303, %p304
    %p307 = scmp.ne.s32.totalorder %s292, %s306
    %p308 = scmp.eq.s32.totalorder %s30, 0
    %p309 = por %p307, %p308
    %s311 = sadd.s32 %s310, 1
    %p314 = scmp.eq.s32.totalorder %s24, 1
    %p315 = scmp.ne.s32.totalorder %s310, %s312
    %p316 = scmp.eq.s32.totalorder %s24, 0
    %p317 = por %p315, %p316
    %p318 = scmp.ne.s32.totalorder %s310, %s312
    %p319 = scmp.eq.s32.totalorder %s29, 1
    %p320 = por %p318, %p319
    %p321 = scmp.ne.s32.totalorder %s312, %s313
    %p322 = scmp.eq.s32.totalorder %s29, 0
    %p323 = por %p321, %p322
    %p324 = scmp.ne.s32.totalorder %s312, %s313
    %p325 = scmp.eq.s32.totalorder %s30, 1
    %p326 = por %p324, %p325
    %p328 = scmp.ne.s32.totalorder %s313, %s327
    %p329 = scmp.eq.s32.totalorder %s30, 0
    %p330 = por %p328, %p329
    %s332 = sadd.s32 %s331, 1
    %p335 = scmp.eq.s32.totalorder %s24, 1
    %p336 = scmp.ne.s32.totalorder %s331, %s333
    %p337 = scmp.eq.s32.totalorder %s24, 0
    %p338 = por %p336, %p337
    %p339 = scmp.ne.s32.totalorder %s331, %s333
    %p340 = scmp.eq.s32.totalorder %s29, 1
    %p341 = por %p339, %p340
    %p342 = scmp.ne.s32.totalorder %s333, %s334
    %p343 = scmp.eq.s32.totalorder %s29, 0
    %p344 = por %p342, %p343
    %p345 = scmp.ne.s32.totalorder %s333, %s334
    %p346 = scmp.eq.s32.totalorder %s30, 1
    %p347 = por %p345, %p346
    %p349 = scmp.ne.s32.totalorder %s334, %s348
    %p350 = scmp.eq.s32.totalorder %s30, 0
    %p351 = por %p349, %p350
    %s352 = ssub.s32 %s24, %s31
    %p353 = scmp.eq.s32.totalorder %s352, 0
    %s355 = sadd.s32 %s354, 1
    %s356 = scalar_select %p353, %s354, %s355
    %p359 = pneg %p353
    %p360 = scmp.eq.s32.totalorder %s24, 1
    %p361 = por %p359, %p360
    %p362 = scmp.ne.s32.totalorder %s354, %s357
    %p363 = scmp.eq.s32.totalorder %s24, 0
    %p364 = por %p362, %p363
    %p365 = scmp.ne.s32.totalorder %s354, %s357
    %p366 = scmp.eq.s32.totalorder %s29, 1
    %p367 = por %p365, %p366
    %p368 = scmp.ne.s32.totalorder %s357, %s358
    %p369 = scmp.eq.s32.totalorder %s29, 0
    %p370 = por %p368, %p369
    %p371 = scmp.ne.s32.totalorder %s357, %s358
    %p372 = scmp.eq.s32.totalorder %s30, 1
    %p373 = por %p371, %p372
    %p375 = scmp.ne.s32.totalorder %s358, %s374
    %p376 = scmp.eq.s32.totalorder %s30, 0
    %p377 = por %p375, %p376
    %s378 = ssub.s32 %s24, %s31
    %p379 = scmp.eq.s32.totalorder %s378, 0
    %s381 = sadd.s32 %s380, 1
    %s382 = scalar_select %p379, %s380, %s381
    %p385 = pneg %p379
    %p386 = scmp.eq.s32.totalorder %s24, 1
    %p387 = por %p385, %p386
    %p388 = scmp.ne.s32.totalorder %s380, %s383
    %p389 = scmp.eq.s32.totalorder %s24, 0
    %p390 = por %p388, %p389
    %p391 = scmp.ne.s32.totalorder %s380, %s383
    %p392 = scmp.eq.s32.totalorder %s29, 1
    %p393 = por %p391, %p392
    %p394 = scmp.ne.s32.totalorder %s383, %s384
    %p395 = scmp.eq.s32.totalorder %s29, 0
    %p396 = por %p394, %p395
    %p397 = scmp.ne.s32.totalorder %s383, %s384
    %p398 = scmp.eq.s32.totalorder %s30, 1
    %p399 = por %p397, %p398
    %p401 = scmp.ne.s32.totalorder %s384, %s400
    %p402 = scmp.eq.s32.totalorder %s30, 0
    %p403 = por %p401, %p402
    %s404 = ssub.s32 %s24, %s31
    %p405 = scmp.eq.s32.totalorder %s404, 0
    %s407 = sadd.s32 %s406, 1
    %s408 = scalar_select %p405, %s406, %s407
    %p411 = pneg %p405
    %p412 = scmp.eq.s32.totalorder %s24, 1
    %p413 = por %p411, %p412
    %p414 = scmp.ne.s32.totalorder %s406, %s409
    %p415 = scmp.eq.s32.totalorder %s24, 0
    %p416 = por %p414, %p415
    %p417 = scmp.ne.s32.totalorder %s406, %s409
    %p418 = scmp.eq.s32.totalorder %s29, 1
    %p419 = por %p417, %p418
    %p420 = scmp.ne.s32.totalorder %s409, %s410
    %p421 = scmp.eq.s32.totalorder %s29, 0
    %p422 = por %p420, %p421
    %p423 = scmp.ne.s32.totalorder %s409, %s410
    %p424 = scmp.eq.s32.totalorder %s30, 1
    %p425 = por %p423, %p424
    %p427 = scmp.ne.s32.totalorder %s410, %s426
    %p428 = scmp.eq.s32.totalorder %s30, 0
    %p429 = por %p427, %p428
    %p430 = scmp.le.s32.totalorder 1, %s24
    %p431 = scmp.lt.s32.totalorder %s24, 3
    %p432 = pnand %p430, %p431
    %p433 = pneg %p432
    // Predicated region
    $region9: #{_forward_impl.1} parent=5 // pred_check
      _
    $region10: #{_forward_impl.1} parent=5 // pred_check_branch
      %435 = sbr.rel (%p432) target = $region12
    $region11: #{_forward_impl.1} parent=5 // pred_region
      %s436 = ssub.s32 %s24, 1
      // Predicated region
      $region13: #{_forward_impl.1} parent=11 // pred_check
        %p437 = pneg %p71
      $region14: #{_forward_impl.1} parent=11 // pred_check_branch
        %439 = sbr.rel (%p437) target = $region16
      $region15: #{_forward_impl.1} parent=11 // pred_region
        _
      $region16: #{_forward_impl.1} parent=11 // pred_fallthru
        _
      // Predicated region
      $region17: #{_forward_impl.1} parent=11 // pred_check
        %p440 = pneg %p92
      $region18: #{_forward_impl.1} parent=11 // pred_check_branch
        %442 = sbr.rel (%p440) target = $region20
      $region19: #{_forward_impl.1} parent=11 // pred_region
        _
      $region20: #{_forward_impl.1} parent=11 // pred_fallthru
        _
      // Predicated region
      $region21: #{_forward_impl.1} parent=11 // pred_check
        %p443 = pneg %p113
      $region22: #{_forward_impl.1} parent=11 // pred_check_branch
        %445 = sbr.rel (%p443) target = $region24
      $region23: #{_forward_impl.1} parent=11 // pred_region
        _
      $region24: #{_forward_impl.1} parent=11 // pred_fallthru
        _
      // Predicated region
      $region25: #{_forward_impl.1} parent=11 // pred_check
        %p446 = pneg %p134
      $region26: #{_forward_impl.1} parent=11 // pred_check_branch
        %448 = sbr.rel (%p446) target = $region28
      $region27: #{_forward_impl.1} parent=11 // pred_region
        _
      $region28: #{_forward_impl.1} parent=11 // pred_fallthru
        _
      // Predicated region
      $region29: #{_forward_impl.1} parent=11 // pred_check
        %p449 = pneg %p155
      $region30: #{_forward_impl.1} parent=11 // pred_check_branch
        %451 = sbr.rel (%p449) target = $region32
      $region31: #{_forward_impl.1} parent=11 // pred_region
        _
      $region32: #{_forward_impl.1} parent=11 // pred_fallthru
        _
      // Predicated region
      $region33: #{_forward_impl.1} parent=11 // pred_check
        %p452 = pneg %p176
      $region34: #{_forward_impl.1} parent=11 // pred_check_branch
        %454 = sbr.rel (%p452) target = $region36
      $region35: #{_forward_impl.1} parent=11 // pred_region
        _
      $region36: #{_forward_impl.1} parent=11 // pred_fallthru
        _
      // Predicated region
      $region37: #{_forward_impl.1} parent=11 // pred_check
        %p455 = pneg %p197
      $region38: #{_forward_impl.1} parent=11 // pred_check_branch
        %457 = sbr.rel (%p455) target = $region40
      $region39: #{_forward_impl.1} parent=11 // pred_region
        _
      $region40: #{_forward_impl.1} parent=11 // pred_fallthru
        _
      // Predicated region
      $region41: #{_forward_impl.1} parent=11 // pred_check
        %p458 = pneg %p218
      $region42: #{_forward_impl.1} parent=11 // pred_check_branch
        %460 = sbr.rel (%p458) target = $region44
      $region43: #{_forward_impl.1} parent=11 // pred_region
        _
      $region44: #{_forward_impl.1} parent=11 // pred_fallthru
        _
      // Predicated region
      $region45: #{_forward_impl.1} parent=11 // pred_check
        %p461 = pneg %p239
      $region46: #{_forward_impl.1} parent=11 // pred_check_branch
        %463 = sbr.rel (%p461) target = $region48
      $region47: #{_forward_impl.1} parent=11 // pred_region
        _
      $region48: #{_forward_impl.1} parent=11 // pred_fallthru
        _
      // Predicated region
      $region49: #{_forward_impl.1} parent=11 // pred_check
        %p464 = pneg %p260
      $region50: #{_forward_impl.1} parent=11 // pred_check_branch
        %466 = sbr.rel (%p464) target = $region52
      $region51: #{_forward_impl.1} parent=11 // pred_region
        _
      $region52: #{_forward_impl.1} parent=11 // pred_fallthru
        _
      // Predicated region
      $region53: #{_forward_impl.1} parent=11 // pred_check
        %p467 = pneg %p281
      $region54: #{_forward_impl.1} parent=11 // pred_check_branch
        %469 = sbr.rel (%p467) target = $region56
      $region55: #{_forward_impl.1} parent=11 // pred_region
        _
      $region56: #{_forward_impl.1} parent=11 // pred_fallthru
        _
      // Predicated region
      $region57: #{_forward_impl.1} parent=11 // pred_check
        %p470 = pneg %p302
      $region58: #{_forward_impl.1} parent=11 // pred_check_branch
        %472 = sbr.rel (%p470) target = $region60
      $region59: #{_forward_impl.1} parent=11 // pred_region
        _
      $region60: #{_forward_impl.1} parent=11 // pred_fallthru
        _
      // Predicated region
      $region61: #{_forward_impl.1} parent=11 // pred_check
        %p473 = pneg %p323
      $region62: #{_forward_impl.1} parent=11 // pred_check_branch
        %475 = sbr.rel (%p473) target = $region64
      $region63: #{_forward_impl.1} parent=11 // pred_region
        _
      $region64: #{_forward_impl.1} parent=11 // pred_fallthru
        _
      // Predicated region
      $region65: #{_forward_impl.1} parent=11 // pred_check
        %p476 = pneg %p344
      $region66: #{_forward_impl.1} parent=11 // pred_check_branch
        %478 = sbr.rel (%p476) target = $region68
      $region67: #{_forward_impl.1} parent=11 // pred_region
        _
      $region68: #{_forward_impl.1} parent=11 // pred_fallthru
        _
    $region12: #{_forward_impl.1} parent=5 // pred_fallthru
      _
    %p479 = scmp.lt.s32.totalorder %s24, 2
    // Predicated region
    $region69: #{_forward_impl.1} parent=5 // pred_check
      %p480 = pneg %p479
    $region70: #{_forward_impl.1} parent=5 // pred_check_branch
      %482 = sbr.rel (%p480) target = $region72
    $region71: #{_forward_impl.1} parent=5 // pred_region
      // Predicated region
      $region73: #{_forward_impl.1} parent=71 // pred_check
        %p483 = pneg %p44
      $region74: #{_forward_impl.1} parent=71 // pred_check_branch
        %485 = sbr.rel (%p483) target = $region76
      $region75: #{_forward_impl.1} parent=71 // pred_region
        %s486 = smul.u32 28, %s24
        %p487 = scmp.lt.s32.totalorder %s486, 55
        %s488 = scalar_select %p487, %s486, 55
        %s489 = smul.addr %s488, 4
        %s490 = smul.addr %s489, 4
        %s491 = scalar_lea.vmem %s0, %s490
        %s492 = smul.u32 28, %s24
      $region76: #{_forward_impl.1} parent=71 // pred_fallthru
        _
    $region72: #{_forward_impl.1} parent=5 // pred_fallthru
      _
    %p493 = scmp.le.s32.totalorder 1, %s24
    %p494 = scmp.lt.s32.totalorder %s24, 3
    %p495 = pnand %p493, %p494
    %p496 = pneg %p495
    // Predicated region
    $region77: #{_forward_impl.1} parent=5 // pred_check
      _
    $region78: #{_forward_impl.1} parent=5 // pred_check_branch
      %498 = sbr.rel (%p495) target = $region80
    $region79: #{_forward_impl.1} parent=5 // pred_region
      %s499 = ssub.s32 %s24, 1
      %s500 = smul.u32 28, %s29
      %p501 = scmp.lt.s32.totalorder %s500, 55
      %s502 = scalar_select %p501, %s500, 55
      %s503 = smul.addr %s502, 4
      %s504 = smul.addr %s503, 4
      %s505 = scalar_lea.vmem %s0, %s504
      %p506 = pneg %p50
      %p507 = pneg %p47
      %p508 = pneg %p71
      %p509 = pneg %p68
      %p510 = pneg %p92
      %p511 = pneg %p89
      %p512 = pneg %p113
      %p513 = pneg %p110
      %p514 = pneg %p134
      %p515 = pneg %p131
      %p516 = pneg %p155
      %p517 = pneg %p152
      %p518 = pneg %p176
      %p519 = pneg %p173
      %p520 = pneg %p197
      %p521 = pneg %p194
      %p522 = pneg %p218
      %p523 = pneg %p215
      %p524 = pneg %p239
      %p525 = pneg %p236
      %p526 = pneg %p260
      %p527 = pneg %p257
      %p528 = pneg %p281
      %p529 = pneg %p278
      %p530 = pneg %p302
      %p531 = pneg %p299
      %p532 = pneg %p323
      %p533 = pneg %p320
      %p534 = pneg %p344
      %p535 = pneg %p341
      %p536 = pneg %p370
      %p537 = pneg %p367
      %p538 = scmp.lt.s32.totalorder %s29, 1
      %s539 = scalar_select %p538, %s29, 1
      %s540 = smul.addr %s539, 4
      %s541 = smul.addr %s540, 8
      %s542 = scalar_lea.vmem %s15, %s541
      %p543 = pneg %p396
      %p544 = pneg %p393
      %p545 = scmp.lt.s32.totalorder %s29, 1
      %s546 = scalar_select %p545, %s29, 1
      %s547 = smul.addr %s546, 4
      %s548 = smul.addr %s547, 8
      %s549 = scalar_lea.vmem %s16, %s548
      %p550 = pneg %p422
      %p551 = pneg %p419
      %p552 = scmp.lt.s32.totalorder %s29, 1
      %s553 = scalar_select %p552, %s29, 1
      %s554 = smul.addr %s553, 8
      %s555 = scalar_lea.vmem %s17, %s554
      %s556 = smul.u32 28, %s29
      %p557 = scmp.lt.s32.totalorder %s556, 55
      %s558 = scalar_select %p557, %s556, 55
      %s559 = smul.addr %s558, 4
      %s560 = smul.addr %s559, 4
      %s561 = scalar_lea.vmem %s0, %s560
      %s562 = smul.u32 28, %s29
      %p563 = scmp.lt.s32.totalorder %s29, 1
      %s564 = scalar_select %p563, %s29, 1
      %s565 = smul.addr %s564, 4
      %s566 = smul.addr %s565, 8
      %s567 = scalar_lea.vmem %s15, %s566
      %p568 = scmp.lt.s32.totalorder %s29, 1
      %s569 = scalar_select %p568, %s29, 1
      %s570 = smul.addr %s569, 4
      %s571 = smul.addr %s570, 8
      %s572 = scalar_lea.vmem %s16, %s571
      %p573 = scmp.lt.s32.totalorder %s29, 1
      %s574 = scalar_select %p573, %s29, 1
      %s575 = smul.addr %s574, 8
      %s576 = scalar_lea.vmem %s17, %s575
      %v578 = vld [vmem:[%s561] sm:$0xff]
      %v579 = vld [vmem:[%s561 + $0x8] sm:$0xff]
      %v580 = vld [vmem:[%s561 + $0x10] sm:$0xff]
      %v581 = vld [vmem:[%s561 + $0x18] sm:$0xff]
      %v582 = vld [vmem:[%s561 + $0x20] sm:$0xff]
      %v583 = vld [vmem:[%s561 + $0x28] sm:$0xff]
      %v584 = vld [vmem:[%s561 + $0x30] sm:$0xff]
      %v585 = vld [vmem:[%s561 + $0x38] sm:$0xff]
      %v586 = vld [vmem:[%s561 + $0x40] sm:$0xff]
      %v587 = vld [vmem:[%s561 + $0x48] sm:$0xff]
      %v588 = vld [vmem:[%s561 + $0x50] sm:$0xff]
      %v589 = vld [vmem:[%s561 + $0x58] sm:$0xff]
      %v590 = vld [vmem:[%s561 + $0x60] sm:$0xff]
      %v591 = vld [vmem:[%s561 + $0x68] sm:$0xff]
      %v592 = vld [vmem:[%s561 + $0x70] sm:$0xff]
      %v593 = vld [vmem:[%s561 + $0x78] sm:$0xff]
      %v594 = vld [vmem:[%s561 + $0x80] sm:$0xff]
      %v595 = vld [vmem:[%s561 + $0x88] sm:$0xff]
      %v596 = vld [vmem:[%s561 + $0x90] sm:$0xff]
      %v597 = vld [vmem:[%s561 + $0x98] sm:$0xff]
      %v598 = vld [vmem:[%s561 + $0xa0] sm:$0xff]
      %v599 = vld [vmem:[%s561 + $0xa8] sm:$0xff]
      %v600 = vld [vmem:[%s561 + $0xb0] sm:$0xff]
      %v601 = vld [vmem:[%s561 + $0xb8] sm:$0xff]
      %v602 = vld [vmem:[%s561 + $0xc0] sm:$0xff]
      %v603 = vld [vmem:[%s561 + $0xc8] sm:$0xff]
      %v604 = vld [vmem:[%s561 + $0xd0] sm:$0xff]
      %v605 = vld [vmem:[%s561 + $0xd8] sm:$0xff]
      %v606 = vld [vmem:[%s561 + $0xe0] sm:$0xff]
      %v607 = vld [vmem:[%s561 + $0xe8] sm:$0xff]
      %v608 = vld [vmem:[%s561 + $0xf0] sm:$0xff]
      %v609 = vld [vmem:[%s561 + $0xf8] sm:$0xff]
      %v610 = vld [vmem:[%s561 + $0x100] sm:$0xff]
      %v611 = vld [vmem:[%s561 + $0x108] sm:$0xff]
      %v612 = vld [vmem:[%s561 + $0x110] sm:$0xff]
      %v613 = vld [vmem:[%s561 + $0x118] sm:$0xff]
      %v614 = vld [vmem:[%s561 + $0x120] sm:$0xff]
      %v615 = vld [vmem:[%s561 + $0x128] sm:$0xff]
      %v616 = vld [vmem:[%s561 + $0x130] sm:$0xff]
      %v617 = vld [vmem:[%s561 + $0x138] sm:$0xff]
      %v618 = vld [vmem:[%s561 + $0x140] sm:$0xff]
      %v619 = vld [vmem:[%s561 + $0x148] sm:$0xff]
      %v620 = vld [vmem:[%s561 + $0x150] sm:$0xff]
      %v621 = vld [vmem:[%s561 + $0x158] sm:$0xff]
      %v622 = vld [vmem:[%s561 + $0x160] sm:$0xff]
      %v623 = vld [vmem:[%s561 + $0x168] sm:$0xff]
      %v624 = vld [vmem:[%s561 + $0x170] sm:$0xff]
      %v625 = vld [vmem:[%s561 + $0x178] sm:$0xff]
      %v626 = vld [vmem:[%s561 + $0x180] sm:$0xff]
      %v627 = vld [vmem:[%s561 + $0x188] sm:$0xff]
      %v628 = vld [vmem:[%s561 + $0x190] sm:$0xff]
      %v629 = vld [vmem:[%s561 + $0x198] sm:$0xff]
      %v630 = vld [vmem:[%s561 + $0x1a0] sm:$0xff]
      %v631 = vld [vmem:[%s561 + $0x1a8] sm:$0xff]
      %v632 = vld [vmem:[%s561 + $0x1b0] sm:$0xff]
      %v633 = vld [vmem:[%s561 + $0x1b8] sm:$0xff]
      %v634 = vld [vmem:[%s1] sm:$0xff]
      %v635 = vld [vmem:[%s1 + $0x8] sm:$0xff]
      %v636 = vld [vmem:[%s1 + $0x10] sm:$0xff]
      %v637 = vld [vmem:[%s1 + $0x18] sm:$0xff]
      %v638 = vld [vmem:[%s1 + $0x20] sm:$0xff]
      %v639 = vld [vmem:[%s1 + $0x28] sm:$0xff]
      %v640 = vld [vmem:[%s1 + $0x30] sm:$0xff]
      %v641 = vld [vmem:[%s1 + $0x38] sm:$0xff]
      %v642 = vld [vmem:[%s1 + $0x40] sm:$0xff]
      %v643 = vld [vmem:[%s1 + $0x48] sm:$0xff]
      %v644 = vld [vmem:[%s1 + $0x50] sm:$0xff]
      %v645 = vld [vmem:[%s1 + $0x58] sm:$0xff]
      %v646 = vld [vmem:[%s1 + $0x60] sm:$0xff]
      %v647 = vld [vmem:[%s1 + $0x68] sm:$0xff]
      %v648 = vld [vmem:[%s1 + $0x70] sm:$0xff]
      %v649 = vld [vmem:[%s1 + $0x78] sm:$0xff]
      %v650 = vld [vmem:[%s1 + $0x80] sm:$0xff]
      %v651 = vld [vmem:[%s1 + $0x88] sm:$0xff]
      %v652 = vld [vmem:[%s1 + $0x90] sm:$0xff]
      %v653 = vld [vmem:[%s1 + $0x98] sm:$0xff]
      %v654 = vld [vmem:[%s1 + $0xa0] sm:$0xff]
      %v655 = vld [vmem:[%s1 + $0xa8] sm:$0xff]
      %v656 = vld [vmem:[%s1 + $0xb0] sm:$0xff]
      %v657 = vld [vmem:[%s1 + $0xb8] sm:$0xff]
      %v658 = vld [vmem:[%s1 + $0xc0] sm:$0xff]
      %v659 = vld [vmem:[%s1 + $0xc8] sm:$0xff]
      %v660 = vld [vmem:[%s1 + $0xd0] sm:$0xff]
      %v661 = vld [vmem:[%s1 + $0xd8] sm:$0xff]
      %v662 = vld [vmem:[%s1 + $0xe0] sm:$0xff]
      %v663 = vld [vmem:[%s1 + $0xe8] sm:$0xff]
      %v664 = vld [vmem:[%s1 + $0xf0] sm:$0xff]
      %v665 = vld [vmem:[%s1 + $0xf8] sm:$0xff]
      %v666 = vld [vmem:[%s1 + $0x100] sm:$0xff]
      %v667 = vld [vmem:[%s1 + $0x108] sm:$0xff]
      %v668 = vld [vmem:[%s1 + $0x110] sm:$0xff]
      %v669 = vld [vmem:[%s1 + $0x118] sm:$0xff]
      %v670 = vld [vmem:[%s1 + $0x120] sm:$0xff]
      %v671 = vld [vmem:[%s1 + $0x128] sm:$0xff]
      %v672 = vld [vmem:[%s1 + $0x130] sm:$0xff]
      %v673 = vld [vmem:[%s1 + $0x138] sm:$0xff]
      %v674 = vld [vmem:[%s1 + $0x140] sm:$0xff]
      %v675 = vld [vmem:[%s1 + $0x148] sm:$0xff]
      %v676 = vld [vmem:[%s1 + $0x150] sm:$0xff]
      %v677 = vld [vmem:[%s1 + $0x158] sm:$0xff]
      %v678 = vld [vmem:[%s1 + $0x160] sm:$0xff]
      %v679 = vld [vmem:[%s1 + $0x168] sm:$0xff]
      %v680 = vld [vmem:[%s1 + $0x170] sm:$0xff]
      %v681 = vld [vmem:[%s1 + $0x178] sm:$0xff]
      %v682 = vld [vmem:[%s1 + $0x180] sm:$0xff]
      %v683 = vld [vmem:[%s1 + $0x188] sm:$0xff]
      %v684 = vld [vmem:[%s1 + $0x190] sm:$0xff]
      %v685 = vld [vmem:[%s1 + $0x198] sm:$0xff]
      %v686 = vld [vmem:[%s1 + $0x1a0] sm:$0xff]
      %v687 = vld [vmem:[%s1 + $0x1a8] sm:$0xff]
      %v688 = vld [vmem:[%s1 + $0x1b0] sm:$0xff]
      %v689 = vld [vmem:[%s1 + $0x1b8] sm:$0xff]
      %v690 = vld [vmem:[%s1 + $0x1c0] sm:$0xff]
      %v691 = vld [vmem:[%s1 + $0x1c8] sm:$0xff]
      %v692 = vld [vmem:[%s1 + $0x1d0] sm:$0xff]
      %v693 = vld [vmem:[%s1 + $0x1d8] sm:$0xff]
      %v694 = vld [vmem:[%s2] sm:$0x3]
      %v696 = vperm.slane %v694, 0
      %v697 = vperm.slane %v694, 1
      %v756 = vunpack.c.l.b16 %v578
      %v757 = vunpack.c.h.b16 %v578
      %v758 = vunpack.c.l.b16 %v579
      %v759 = vunpack.c.h.b16 %v579
      %v760 = vunpack.c.l.b16 %v580
      %v761 = vunpack.c.h.b16 %v580
      %v762 = vunpack.c.l.b16 %v581
      %v763 = vunpack.c.h.b16 %v581
      %v764 = vunpack.c.l.b16 %v582
      %v765 = vunpack.c.h.b16 %v582
      %v766 = vunpack.c.l.b16 %v583
      %v767 = vunpack.c.h.b16 %v583
      %v768 = vunpack.c.l.b16 %v584
      %v769 = vunpack.c.h.b16 %v584
      %v770 = vunpack.c.l.b16 %v585
      %v771 = vunpack.c.h.b16 %v585
      %v772 = vunpack.c.l.b16 %v586
      %v773 = vunpack.c.h.b16 %v586
      %v774 = vunpack.c.l.b16 %v587
      %v775 = vunpack.c.h.b16 %v587
      %v776 = vunpack.c.l.b16 %v588
      %v777 = vunpack.c.h.b16 %v588
      %v778 = vunpack.c.l.b16 %v589
      %v779 = vunpack.c.h.b16 %v589
      %v780 = vunpack.c.l.b16 %v590
      %v781 = vunpack.c.h.b16 %v590
      %v782 = vunpack.c.l.b16 %v591
      %v783 = vunpack.c.h.b16 %v591
      %v784 = vunpack.c.l.b16 %v592
      %v785 = vunpack.c.h.b16 %v592
      %v786 = vunpack.c.l.b16 %v593
      %v787 = vunpack.c.h.b16 %v593
      %v788 = vunpack.c.l.b16 %v594
      %v789 = vunpack.c.h.b16 %v594
      %v790 = vunpack.c.l.b16 %v595
      %v791 = vunpack.c.h.b16 %v595
      %v792 = vunpack.c.l.b16 %v596
      %v793 = vunpack.c.h.b16 %v596
      %v794 = vunpack.c.l.b16 %v597
      %v795 = vunpack.c.h.b16 %v597
      %v796 = vunpack.c.l.b16 %v598
      %v797 = vunpack.c.h.b16 %v598
      %v798 = vunpack.c.l.b16 %v599
      %v799 = vunpack.c.h.b16 %v599
      %v800 = vunpack.c.l.b16 %v600
      %v801 = vunpack.c.h.b16 %v600
      %v802 = vunpack.c.l.b16 %v601
      %v803 = vunpack.c.h.b16 %v601
      %v804 = vunpack.c.l.b16 %v602
      %v805 = vunpack.c.h.b16 %v602
      %v806 = vunpack.c.l.b16 %v603
      %v807 = vunpack.c.h.b16 %v603
      %v808 = vunpack.c.l.b16 %v604
      %v809 = vunpack.c.h.b16 %v604
      %v810 = vunpack.c.l.b16 %v605
      %v811 = vunpack.c.h.b16 %v605
      %v812 = vunpack.c.l.b16 %v606
      %v813 = vunpack.c.h.b16 %v606
      %v814 = vunpack.c.l.b16 %v607
      %v815 = vunpack.c.h.b16 %v607
      %v816 = vunpack.c.l.b16 %v608
      %v817 = vunpack.c.h.b16 %v608
      %v818 = vunpack.c.l.b16 %v609
      %v819 = vunpack.c.h.b16 %v609
      %v820 = vunpack.c.l.b16 %v610
      %v821 = vunpack.c.h.b16 %v610
      %v822 = vunpack.c.l.b16 %v611
      %v823 = vunpack.c.h.b16 %v611
      %v824 = vunpack.c.l.b16 %v612
      %v825 = vunpack.c.h.b16 %v612
      %v826 = vunpack.c.l.b16 %v613
      %v827 = vunpack.c.h.b16 %v613
      %v828 = vunpack.c.l.b16 %v614
      %v829 = vunpack.c.h.b16 %v614
      %v830 = vunpack.c.l.b16 %v615
      %v831 = vunpack.c.h.b16 %v615
      %v832 = vunpack.c.l.b16 %v616
      %v833 = vunpack.c.h.b16 %v616
      %v834 = vunpack.c.l.b16 %v617
      %v835 = vunpack.c.h.b16 %v617
      %v836 = vunpack.c.l.b16 %v618
      %v837 = vunpack.c.h.b16 %v618
      %v838 = vunpack.c.l.b16 %v619
      %v839 = vunpack.c.h.b16 %v619
      %v840 = vunpack.c.l.b16 %v620
      %v841 = vunpack.c.h.b16 %v620
      %v842 = vunpack.c.l.b16 %v621
      %v843 = vunpack.c.h.b16 %v621
      %v844 = vunpack.c.l.b16 %v622
      %v845 = vunpack.c.h.b16 %v622
      %v846 = vunpack.c.l.b16 %v623
      %v847 = vunpack.c.h.b16 %v623
      %v848 = vunpack.c.l.b16 %v624
      %v849 = vunpack.c.h.b16 %v624
      %v850 = vunpack.c.l.b16 %v625
      %v851 = vunpack.c.h.b16 %v625
      %v852 = vunpack.c.l.b16 %v626
      %v853 = vunpack.c.h.b16 %v626
      %v854 = vunpack.c.l.b16 %v627
      %v855 = vunpack.c.h.b16 %v627
      %v856 = vunpack.c.l.b16 %v628
      %v857 = vunpack.c.h.b16 %v628
      %v858 = vunpack.c.l.b16 %v629
      %v859 = vunpack.c.h.b16 %v629
      %v860 = vunpack.c.l.b16 %v630
      %v861 = vunpack.c.h.b16 %v630
      %v862 = vunpack.c.l.b16 %v631
      %v863 = vunpack.c.h.b16 %v631
      %v864 = vunpack.c.l.b16 %v632
      %v865 = vunpack.c.h.b16 %v632
      %v866 = vunpack.c.l.b16 %v633
      %v867 = vunpack.c.h.b16 %v633
      %v868 = vpack.c.b16 %v760, %v756
      %v869 = vpack.c.b16 %v761, %v757
      %v870 = vpack.c.b16 %v762, %v758
      %v871 = vpack.c.b16 %v763, %v759
      %v872 = vpack.c.b16 %v768, %v764
      %v873 = vpack.c.b16 %v769, %v765
      %v874 = vpack.c.b16 %v770, %v766
      %v875 = vpack.c.b16 %v771, %v767
      %v876 = vpack.c.b16 %v776, %v772
      %v877 = vpack.c.b16 %v777, %v773
      %v878 = vpack.c.b16 %v778, %v774
      %v879 = vpack.c.b16 %v779, %v775
      %v880 = vpack.c.b16 %v784, %v780
      %v881 = vpack.c.b16 %v785, %v781
      %v882 = vpack.c.b16 %v786, %v782
      %v883 = vpack.c.b16 %v787, %v783
      %v884 = vpack.c.b16 %v792, %v788
      %v885 = vpack.c.b16 %v793, %v789
      %v886 = vpack.c.b16 %v794, %v790
      %v887 = vpack.c.b16 %v795, %v791
      %v888 = vpack.c.b16 %v800, %v796
      %v889 = vpack.c.b16 %v801, %v797
      %v890 = vpack.c.b16 %v802, %v798
      %v891 = vpack.c.b16 %v803, %v799
      %v892 = vpack.c.b16 %v808, %v804
      %v893 = vpack.c.b16 %v809, %v805
      %v894 = vpack.c.b16 %v810, %v806
      %v895 = vpack.c.b16 %v811, %v807
      %v896 = vpack.c.b16 %v816, %v812
      %v897 = vpack.c.b16 %v817, %v813
      %v898 = vpack.c.b16 %v818, %v814
      %v899 = vpack.c.b16 %v819, %v815
      %v900 = vpack.c.b16 %v824, %v820
      %v901 = vpack.c.b16 %v825, %v821
      %v902 = vpack.c.b16 %v826, %v822
      %v903 = vpack.c.b16 %v827, %v823
      %v904 = vpack.c.b16 %v832, %v828
      %v905 = vpack.c.b16 %v833, %v829
      %v906 = vpack.c.b16 %v834, %v830
      %v907 = vpack.c.b16 %v835, %v831
      %v908 = vpack.c.b16 %v840, %v836
      %v909 = vpack.c.b16 %v841, %v837
      %v910 = vpack.c.b16 %v842, %v838
      %v911 = vpack.c.b16 %v843, %v839
      %v912 = vpack.c.b16 %v848, %v844
      %v913 = vpack.c.b16 %v849, %v845
      %v914 = vpack.c.b16 %v850, %v846
      %v915 = vpack.c.b16 %v851, %v847
      %v916 = vpack.c.b16 %v856, %v852
      %v917 = vpack.c.b16 %v857, %v853
      %v918 = vpack.c.b16 %v858, %v854
      %v919 = vpack.c.b16 %v859, %v855
      %v920 = vpack.c.b16 %v864, %v860
      %v921 = vpack.c.b16 %v865, %v861
      %v922 = vpack.c.b16 %v866, %v862
      %v923 = vpack.c.b16 %v867, %v863
      %v1026 = vunpack.c.l.b16 %v634
      %v1027 = vunpack.c.h.b16 %v634
      %v1028 = vunpack.c.l.b16 %v635
      %v1029 = vunpack.c.h.b16 %v635
      %v1030 = vunpack.c.l.b16 %v636
      %v1031 = vunpack.c.h.b16 %v636
      %v1032 = vunpack.c.l.b16 %v637
      %v1033 = vunpack.c.h.b16 %v637
      %v1034 = vunpack.c.l.b16 %v638
      %v1035 = vunpack.c.h.b16 %v638
      %v1036 = vunpack.c.l.b16 %v639
      %v1037 = vunpack.c.h.b16 %v639
      %v1038 = vunpack.c.l.b16 %v640
      %v1039 = vunpack.c.h.b16 %v640
      %v1040 = vunpack.c.l.b16 %v641
      %v1041 = vunpack.c.h.b16 %v641
      %v1042 = vunpack.c.l.b16 %v642
      %v1043 = vunpack.c.h.b16 %v642
      %v1044 = vunpack.c.l.b16 %v643
      %v1045 = vunpack.c.h.b16 %v643
      %v1046 = vunpack.c.l.b16 %v644
      %v1047 = vunpack.c.h.b16 %v644
      %v1048 = vunpack.c.l.b16 %v645
      %v1049 = vunpack.c.h.b16 %v645
      %v1050 = vunpack.c.l.b16 %v646
      %v1051 = vunpack.c.h.b16 %v646
      %v1052 = vunpack.c.l.b16 %v647
      %v1053 = vunpack.c.h.b16 %v647
      %v1054 = vunpack.c.l.b16 %v648
      %v1055 = vunpack.c.h.b16 %v648
      %v1056 = vunpack.c.l.b16 %v649
      %v1057 = vunpack.c.h.b16 %v649
      %v1058 = vunpack.c.l.b16 %v650
      %v1059 = vunpack.c.h.b16 %v650
      %v1060 = vunpack.c.l.b16 %v651
      %v1061 = vunpack.c.h.b16 %v651
      %v1062 = vunpack.c.l.b16 %v652
      %v1063 = vunpack.c.h.b16 %v652
      %v1064 = vunpack.c.l.b16 %v653
      %v1065 = vunpack.c.h.b16 %v653
      %v1066 = vunpack.c.l.b16 %v654
      %v1067 = vunpack.c.h.b16 %v654
      %v1068 = vunpack.c.l.b16 %v655
      %v1069 = vunpack.c.h.b16 %v655
      %v1070 = vunpack.c.l.b16 %v656
      %v1071 = vunpack.c.h.b16 %v656
      %v1072 = vunpack.c.l.b16 %v657
      %v1073 = vunpack.c.h.b16 %v657
      %v1074 = vunpack.c.l.b16 %v658
      %v1075 = vunpack.c.h.b16 %v658
      %v1076 = vunpack.c.l.b16 %v659
      %v1077 = vunpack.c.h.b16 %v659
      %v1078 = vunpack.c.l.b16 %v660
      %v1079 = vunpack.c.h.b16 %v660
      %v1080 = vunpack.c.l.b16 %v661
      %v1081 = vunpack.c.h.b16 %v661
      %v1082 = vunpack.c.l.b16 %v662
      %v1083 = vunpack.c.h.b16 %v662
      %v1084 = vunpack.c.l.b16 %v663
      %v1085 = vunpack.c.h.b16 %v663
      %v1086 = vunpack.c.l.b16 %v664
      %v1087 = vunpack.c.h.b16 %v664
      %v1088 = vunpack.c.l.b16 %v665
      %v1089 = vunpack.c.h.b16 %v665
      %v1090 = vunpack.c.l.b16 %v666
      %v1091 = vunpack.c.h.b16 %v666
      %v1092 = vunpack.c.l.b16 %v667
      %v1093 = vunpack.c.h.b16 %v667
      %v1094 = vunpack.c.l.b16 %v668
      %v1095 = vunpack.c.h.b16 %v668
      %v1096 = vunpack.c.l.b16 %v669
      %v1097 = vunpack.c.h.b16 %v669
      %v1098 = vunpack.c.l.b16 %v670
      %v1099 = vunpack.c.h.b16 %v670
      %v1100 = vunpack.c.l.b16 %v671
      %v1101 = vunpack.c.h.b16 %v671
      %v1102 = vunpack.c.l.b16 %v672
      %v1103 = vunpack.c.h.b16 %v672
      %v1104 = vunpack.c.l.b16 %v673
      %v1105 = vunpack.c.h.b16 %v673
      %v1106 = vunpack.c.l.b16 %v674
      %v1107 = vunpack.c.h.b16 %v674
      %v1108 = vunpack.c.l.b16 %v675
      %v1109 = vunpack.c.h.b16 %v675
      %v1110 = vunpack.c.l.b16 %v676
      %v1111 = vunpack.c.h.b16 %v676
      %v1112 = vunpack.c.l.b16 %v677
      %v1113 = vunpack.c.h.b16 %v677
      %v1114 = vunpack.c.l.b16 %v678
      %v1115 = vunpack.c.h.b16 %v678
      %v1116 = vunpack.c.l.b16 %v679
      %v1117 = vunpack.c.h.b16 %v679
      %v1118 = vunpack.c.l.b16 %v680
      %v1119 = vunpack.c.h.b16 %v680
      %v1120 = vunpack.c.l.b16 %v681
      %v1121 = vunpack.c.h.b16 %v681
      %v1122 = vunpack.c.l.b16 %v682
      %v1123 = vunpack.c.h.b16 %v682
      %v1124 = vunpack.c.l.b16 %v683
      %v1125 = vunpack.c.h.b16 %v683
      %v1126 = vunpack.c.l.b16 %v684
      %v1127 = vunpack.c.h.b16 %v684
      %v1128 = vunpack.c.l.b16 %v685
      %v1129 = vunpack.c.h.b16 %v685
      %v1130 = vunpack.c.l.b16 %v686
      %v1131 = vunpack.c.h.b16 %v686
      %v1132 = vunpack.c.l.b16 %v687
      %v1133 = vunpack.c.h.b16 %v687
      %v1134 = vunpack.c.l.b16 %v688
      %v1135 = vunpack.c.h.b16 %v688
      %v1136 = vunpack.c.l.b16 %v689
      %v1137 = vunpack.c.h.b16 %v689
      %v1138 = vunpack.c.l.b16 %v690
      %v1139 = vunpack.c.h.b16 %v690
      %v1140 = vunpack.c.l.b16 %v691
      %v1141 = vunpack.c.h.b16 %v691
      %v1142 = vunpack.c.l.b16 %v692
      %v1143 = vunpack.c.h.b16 %v692
      %v1144 = vunpack.c.l.b16 %v693
      %v1145 = vunpack.c.h.b16 %v693
      %v1146 = vpack.c.b16 %v1028, %v1026
      %v1147 = vpack.c.b16 %v1029, %v1027
      %v1148 = vpack.c.b16 %v1032, %v1030
      %v1149 = vpack.c.b16 %v1033, %v1031
      %v1150 = vpack.c.b16 %v1036, %v1034
      %v1151 = vpack.c.b16 %v1037, %v1035
      %v1152 = vpack.c.b16 %v1040, %v1038
      %v1153 = vpack.c.b16 %v1041, %v1039
      %v1154 = vpack.c.b16 %v1044, %v1042
      %v1155 = vpack.c.b16 %v1045, %v1043
      %v1156 = vpack.c.b16 %v1048, %v1046
      %v1157 = vpack.c.b16 %v1049, %v1047
      %v1158 = vpack.c.b16 %v1052, %v1050
      %v1159 = vpack.c.b16 %v1053, %v1051
      %v1160 = vpack.c.b16 %v1056, %v1054
      %v1161 = vpack.c.b16 %v1057, %v1055
      %v1162 = vpack.c.b16 %v1060, %v1058
      %v1163 = vpack.c.b16 %v1061, %v1059
      %v1164 = vpack.c.b16 %v1064, %v1062
      %v1165 = vpack.c.b16 %v1065, %v1063
      %v1166 = vpack.c.b16 %v1068, %v1066
      %v1167 = vpack.c.b16 %v1069, %v1067
      %v1168 = vpack.c.b16 %v1072, %v1070
      %v1169 = vpack.c.b16 %v1073, %v1071
      %v1170 = vpack.c.b16 %v1076, %v1074
      %v1171 = vpack.c.b16 %v1077, %v1075
      %v1172 = vpack.c.b16 %v1080, %v1078
      %v1173 = vpack.c.b16 %v1081, %v1079
      %v1174 = vpack.c.b16 %v1084, %v1082
      %v1175 = vpack.c.b16 %v1085, %v1083
      %v1176 = vpack.c.b16 %v1088, %v1086
      %v1177 = vpack.c.b16 %v1089, %v1087
      %v1178 = vpack.c.b16 %v1092, %v1090
      %v1179 = vpack.c.b16 %v1093, %v1091
      %v1180 = vpack.c.b16 %v1096, %v1094
      %v1181 = vpack.c.b16 %v1097, %v1095
      %v1182 = vpack.c.b16 %v1100, %v1098
      %v1183 = vpack.c.b16 %v1101, %v1099
      %v1184 = vpack.c.b16 %v1104, %v1102
      %v1185 = vpack.c.b16 %v1105, %v1103
      %v1186 = vpack.c.b16 %v1108, %v1106
      %v1187 = vpack.c.b16 %v1109, %v1107
      %v1188 = vpack.c.b16 %v1112, %v1110
      %v1189 = vpack.c.b16 %v1113, %v1111
      %v1190 = vpack.c.b16 %v1116, %v1114
      %v1191 = vpack.c.b16 %v1117, %v1115
      %v1192 = vpack.c.b16 %v1120, %v1118
      %v1193 = vpack.c.b16 %v1121, %v1119
      %v1194 = vpack.c.b16 %v1124, %v1122
      %v1195 = vpack.c.b16 %v1125, %v1123
      %v1196 = vpack.c.b16 %v1128, %v1126
      %v1197 = vpack.c.b16 %v1129, %v1127
      %v1198 = vpack.c.b16 %v1132, %v1130
      %v1199 = vpack.c.b16 %v1133, %v1131
      %v1200 = vpack.c.b16 %v1136, %v1134
      %v1201 = vpack.c.b16 %v1137, %v1135
      %v1202 = vpack.c.b16 %v1140, %v1138
      %v1203 = vpack.c.b16 %v1141, %v1139
      %v1204 = vpack.c.b16 %v1144, %v1142
      %v1205 = vpack.c.b16 %v1145, %v1143
      %vm1266 = vcmask 785408
      %v1268 = vsel %vm1266, %v871, 0
      %v1271 = vsel %vm1266, %v875, 0
      %v1274 = vsel %vm1266, %v879, 0
      %v1277 = vsel %vm1266, %v883, 0
      %v1280 = vsel %vm1266, %v887, 0
      %v1283 = vsel %vm1266, %v891, 0
      %v1286 = vsel %vm1266, %v895, 0
      %v1289 = vsel %vm1266, %v899, 0
      %v1292 = vsel %vm1266, %v903, 0
      %v1295 = vsel %vm1266, %v907, 0
      %v1298 = vsel %vm1266, %v911, 0
      %v1301 = vsel %vm1266, %v915, 0
      %v1304 = vsel %vm1266, %v919, 0
      %v1307 = vsel %vm1266, %v923, 0
      %1309 = vmatpush.bf16.msra.mxu0 %v1160
      %1310 = vmatpush.bf16.msra.mxu0 %v1158
      %1311 = vmatpush.bf16.msra.mxu0 %v1156
      %1312 = vmatpush.bf16.msra.mxu0 %v1154
      %1313 = vmatpush.bf16.msra.mxu0 %v1152
      %1314 = vmatpush.bf16.msra.mxu0 %v1150
      %1315 = vmatpush.bf16.msra.mxu0 %v1148
      %1316 = vmatpush.bf16.msra.mxu0 %v1146
      %1317 = vmatmul.bf16.gmra.mxu0 %v868
      %v1318 = vpop.f32.mrf.mxu0
      %v1319 = vadd.f32 %v696, %v1318
      %v1320 = vpop.f32.mrf.mxu0
      %v1321 = vadd.f32 %v696, %v1320
      %1322 = vmatmul.bf16.gmra.mxu0 %v872
      %v1323 = vpop.f32.mrf.mxu0
      %v1324 = vadd.f32 %v696, %v1323
      %v1325 = vpop.f32.mrf.mxu0
      %v1326 = vadd.f32 %v696, %v1325
      %1327 = vmatmul.bf16.gmra.mxu0 %v876
      %v1328 = vpop.f32.mrf.mxu0
      %v1329 = vadd.f32 %v696, %v1328
      %v1330 = vpop.f32.mrf.mxu0
      %v1331 = vadd.f32 %v696, %v1330
      %1332 = vmatmul.bf16.gmra.mxu0 %v880
      %v1333 = vpop.f32.mrf.mxu0
      %v1334 = vadd.f32 %v696, %v1333
      %v1335 = vpop.f32.mrf.mxu0
      %v1336 = vadd.f32 %v696, %v1335
      %1337 = vmatmul.bf16.gmra.mxu0 %v884
      %v1338 = vpop.f32.mrf.mxu0
      %v1339 = vadd.f32 %v696, %v1338
      %v1340 = vpop.f32.mrf.mxu0
      %v1341 = vadd.f32 %v696, %v1340
      %1342 = vmatmul.bf16.gmra.mxu0 %v888
      %v1343 = vpop.f32.mrf.mxu0
      %v1344 = vadd.f32 %v696, %v1343
      %v1345 = vpop.f32.mrf.mxu0
      %v1346 = vadd.f32 %v696, %v1345
      %1347 = vmatmul.bf16.gmra.mxu0 %v892
      %v1348 = vpop.f32.mrf.mxu0
      %v1349 = vadd.f32 %v696, %v1348
      %v1350 = vpop.f32.mrf.mxu0
      %v1351 = vadd.f32 %v696, %v1350
      %1352 = vmatmul.bf16.gmra.mxu0 %v896
      %v1353 = vpop.f32.mrf.mxu0
      %v1354 = vadd.f32 %v696, %v1353
      %v1355 = vpop.f32.mrf.mxu0
      %v1356 = vadd.f32 %v696, %v1355
      %1357 = vmatmul.bf16.gmra.mxu0 %v900
      %v1358 = vpop.f32.mrf.mxu0
      %v1359 = vadd.f32 %v696, %v1358
      %v1360 = vpop.f32.mrf.mxu0
      %v1361 = vadd.f32 %v696, %v1360
      %1362 = vmatmul.bf16.gmra.mxu0 %v904
      %v1363 = vpop.f32.mrf.mxu0
      %v1364 = vadd.f32 %v696, %v1363
      %v1365 = vpop.f32.mrf.mxu0
      %v1366 = vadd.f32 %v696, %v1365
      %1367 = vmatmul.bf16.gmra.mxu0 %v908
      %v1368 = vpop.f32.mrf.mxu0
      %v1369 = vadd.f32 %v696, %v1368
      %v1370 = vpop.f32.mrf.mxu0
      %v1371 = vadd.f32 %v696, %v1370
      %1372 = vmatmul.bf16.gmra.mxu0 %v912
      %v1373 = vpop.f32.mrf.mxu0
      %v1374 = vadd.f32 %v696, %v1373
      %v1375 = vpop.f32.mrf.mxu0
      %v1376 = vadd.f32 %v696, %v1375
      %1377 = vmatmul.bf16.gmra.mxu0 %v916
      %v1378 = vpop.f32.mrf.mxu0
      %v1379 = vadd.f32 %v696, %v1378
      %v1380 = vpop.f32.mrf.mxu0
      %v1381 = vadd.f32 %v696, %v1380
      %1382 = vmatmul.bf16.gmra.mxu0 %v920
      %v1383 = vpop.f32.mrf.mxu0
      %v1384 = vadd.f32 %v696, %v1383
      %v1385 = vpop.f32.mrf.mxu0
      %v1386 = vadd.f32 %v696, %v1385
      %1387 = vdwg.mxu0
      %1388 = vmatpush.bf16.msra.mxu0 %v1176
      %1389 = vmatpush.bf16.msra.mxu0 %v1174
      %1390 = vmatpush.bf16.msra.mxu0 %v1172
      %1391 = vmatpush.bf16.msra.mxu0 %v1170
      %1392 = vmatpush.bf16.msra.mxu0 %v1168
      %1393 = vmatpush.bf16.msra.mxu0 %v1166
      %1394 = vmatpush.bf16.msra.mxu0 %v1164
      %1395 = vmatpush.bf16.msra.mxu0 %v1162
      %1396 = vmatmul.bf16.gmra.mxu0 %v869
      %v1397 = vpop.f32.mrf.mxu0
      %v1398 = vadd.f32 %v1319, %v1397
      %v1399 = vpop.f32.mrf.mxu0
      %v1400 = vadd.f32 %v1321, %v1399
      %1401 = vmatmul.bf16.gmra.mxu0 %v873
      %v1402 = vpop.f32.mrf.mxu0
      %v1403 = vadd.f32 %v1324, %v1402
      %v1404 = vpop.f32.mrf.mxu0
      %v1405 = vadd.f32 %v1326, %v1404
      %1406 = vmatmul.bf16.gmra.mxu0 %v877
      %v1407 = vpop.f32.mrf.mxu0
      %v1408 = vadd.f32 %v1329, %v1407
      %v1409 = vpop.f32.mrf.mxu0
      %v1410 = vadd.f32 %v1331, %v1409
      %1411 = vmatmul.bf16.gmra.mxu0 %v881
      %v1412 = vpop.f32.mrf.mxu0
      %v1413 = vadd.f32 %v1334, %v1412
      %v1414 = vpop.f32.mrf.mxu0
      %v1415 = vadd.f32 %v1336, %v1414
      %1416 = vmatmul.bf16.gmra.mxu0 %v885
      %v1417 = vpop.f32.mrf.mxu0
      %v1418 = vadd.f32 %v1339, %v1417
      %v1419 = vpop.f32.mrf.mxu0
      %v1420 = vadd.f32 %v1341, %v1419
      %1421 = vmatmul.bf16.gmra.mxu0 %v889
      %v1422 = vpop.f32.mrf.mxu0
      %v1423 = vadd.f32 %v1344, %v1422
      %v1424 = vpop.f32.mrf.mxu0
      %v1425 = vadd.f32 %v1346, %v1424
      %1426 = vmatmul.bf16.gmra.mxu0 %v893
      %v1427 = vpop.f32.mrf.mxu0
      %v1428 = vadd.f32 %v1349, %v1427
      %v1429 = vpop.f32.mrf.mxu0
      %v1430 = vadd.f32 %v1351, %v1429
      %1431 = vmatmul.bf16.gmra.mxu0 %v897
      %v1432 = vpop.f32.mrf.mxu0
      %v1433 = vadd.f32 %v1354, %v1432
      %v1434 = vpop.f32.mrf.mxu0
      %v1435 = vadd.f32 %v1356, %v1434
      %1436 = vmatmul.bf16.gmra.mxu0 %v901
      %v1437 = vpop.f32.mrf.mxu0
      %v1438 = vadd.f32 %v1359, %v1437
      %v1439 = vpop.f32.mrf.mxu0
      %v1440 = vadd.f32 %v1361, %v1439
      %1441 = vmatmul.bf16.gmra.mxu0 %v905
      %v1442 = vpop.f32.mrf.mxu0
      %v1443 = vadd.f32 %v1364, %v1442
      %v1444 = vpop.f32.mrf.mxu0
      %v1445 = vadd.f32 %v1366, %v1444
      %1446 = vmatmul.bf16.gmra.mxu0 %v909
      %v1447 = vpop.f32.mrf.mxu0
      %v1448 = vadd.f32 %v1369, %v1447
      %v1449 = vpop.f32.mrf.mxu0
      %v1450 = vadd.f32 %v1371, %v1449
      %1451 = vmatmul.bf16.gmra.mxu0 %v913
      %v1452 = vpop.f32.mrf.mxu0
      %v1453 = vadd.f32 %v1374, %v1452
      %v1454 = vpop.f32.mrf.mxu0
      %v1455 = vadd.f32 %v1376, %v1454
      %1456 = vmatmul.bf16.gmra.mxu0 %v917
      %v1457 = vpop.f32.mrf.mxu0
      %v1458 = vadd.f32 %v1379, %v1457
      %v1459 = vpop.f32.mrf.mxu0
      %v1460 = vadd.f32 %v1381, %v1459
      %1461 = vmatmul.bf16.gmra.mxu0 %v921
      %v1462 = vpop.f32.mrf.mxu0
      %v1463 = vadd.f32 %v1384, %v1462
      %v1464 = vpop.f32.mrf.mxu0
      %v1465 = vadd.f32 %v1386, %v1464
      %1466 = vdwg.mxu0
      %1467 = vmatpush.bf16.msra.mxu0 %v1192
      %1468 = vmatpush.bf16.msra.mxu0 %v1190
      %1469 = vmatpush.bf16.msra.mxu0 %v1188
      %1470 = vmatpush.bf16.msra.mxu0 %v1186
      %1471 = vmatpush.bf16.msra.mxu0 %v1184
      %1472 = vmatpush.bf16.msra.mxu0 %v1182
      %1473 = vmatpush.bf16.msra.mxu0 %v1180
      %1474 = vmatpush.bf16.msra.mxu0 %v1178
      %1475 = vmatmul.bf16.gmra.mxu0 %v870
      %v1476 = vpop.f32.mrf.mxu0
      %v1477 = vadd.f32 %v1398, %v1476
      %v1478 = vpop.f32.mrf.mxu0
      %v1479 = vadd.f32 %v1400, %v1478
      %1480 = vmatmul.bf16.gmra.mxu0 %v874
      %v1481 = vpop.f32.mrf.mxu0
      %v1482 = vadd.f32 %v1403, %v1481
      %v1483 = vpop.f32.mrf.mxu0
      %v1484 = vadd.f32 %v1405, %v1483
      %1485 = vmatmul.bf16.gmra.mxu0 %v878
      %v1486 = vpop.f32.mrf.mxu0
      %v1487 = vadd.f32 %v1408, %v1486
      %v1488 = vpop.f32.mrf.mxu0
      %v1489 = vadd.f32 %v1410, %v1488
      %1490 = vmatmul.bf16.gmra.mxu0 %v882
      %v1491 = vpop.f32.mrf.mxu0
      %v1492 = vadd.f32 %v1413, %v1491
      %v1493 = vpop.f32.mrf.mxu0
      %v1494 = vadd.f32 %v1415, %v1493
      %1495 = vmatmul.bf16.gmra.mxu0 %v886
      %v1496 = vpop.f32.mrf.mxu0
      %v1497 = vadd.f32 %v1418, %v1496
      %v1498 = vpop.f32.mrf.mxu0
      %v1499 = vadd.f32 %v1420, %v1498
      %1500 = vmatmul.bf16.gmra.mxu0 %v890
      %v1501 = vpop.f32.mrf.mxu0
      %v1502 = vadd.f32 %v1423, %v1501
      %v1503 = vpop.f32.mrf.mxu0
      %v1504 = vadd.f32 %v1425, %v1503
      %1505 = vmatmul.bf16.gmra.mxu0 %v894
      %v1506 = vpop.f32.mrf.mxu0
      %v1507 = vadd.f32 %v1428, %v1506
      %v1508 = vpop.f32.mrf.mxu0
      %v1509 = vadd.f32 %v1430, %v1508
      %1510 = vmatmul.bf16.gmra.mxu0 %v898
      %v1511 = vpop.f32.mrf.mxu0
      %v1512 = vadd.f32 %v1433, %v1511
      %v1513 = vpop.f32.mrf.mxu0
      %v1514 = vadd.f32 %v1435, %v1513
      %1515 = vmatmul.bf16.gmra.mxu0 %v902
      %v1516 = vpop.f32.mrf.mxu0
      %v1517 = vadd.f32 %v1438, %v1516
      %v1518 = vpop.f32.mrf.mxu0
      %v1519 = vadd.f32 %v1440, %v1518
      %1520 = vmatmul.bf16.gmra.mxu0 %v906
      %v1521 = vpop.f32.mrf.mxu0
      %v1522 = vadd.f32 %v1443, %v1521
      %v1523 = vpop.f32.mrf.mxu0
      %v1524 = vadd.f32 %v1445, %v1523
      %1525 = vmatmul.bf16.gmra.mxu0 %v910
      %v1526 = vpop.f32.mrf.mxu0
      %v1527 = vadd.f32 %v1448, %v1526
      %v1528 = vpop.f32.mrf.mxu0
      %v1529 = vadd.f32 %v1450, %v1528
      %1530 = vmatmul.bf16.gmra.mxu0 %v914
      %v1531 = vpop.f32.mrf.mxu0
      %v1532 = vadd.f32 %v1453, %v1531
      %v1533 = vpop.f32.mrf.mxu0
      %v1534 = vadd.f32 %v1455, %v1533
      %1535 = vmatmul.bf16.gmra.mxu0 %v918
      %v1536 = vpop.f32.mrf.mxu0
      %v1537 = vadd.f32 %v1458, %v1536
      %v1538 = vpop.f32.mrf.mxu0
      %v1539 = vadd.f32 %v1460, %v1538
      %1540 = vmatmul.bf16.gmra.mxu0 %v922
      %v1541 = vpop.f32.mrf.mxu0
      %v1542 = vadd.f32 %v1463, %v1541
      %v1543 = vpop.f32.mrf.mxu0
      %v1544 = vadd.f32 %v1465, %v1543
      %1545 = vdwg.mxu0
      %1546 = vmatpush.bf16.msra.mxu0 0
      %1547 = vmatpush.bf16.msra.mxu0 0
      %1548 = vmatpush.bf16.msra.mxu0 %v1204
      %1549 = vmatpush.bf16.msra.mxu0 %v1202
      %1550 = vmatpush.bf16.msra.mxu0 %v1200
      %1551 = vmatpush.bf16.msra.mxu0 %v1198
      %1552 = vmatpush.bf16.msra.mxu0 %v1196
      %1553 = vmatpush.bf16.msra.mxu0 %v1194
      %1554 = vmatmul.bf16.gmra.mxu0 %v1268
      %v1555 = vpop.f32.mrf.mxu0
      %v1556 = vadd.f32 %v1477, %v1555
      %v1557 = vpop.f32.mrf.mxu0
      %v1558 = vadd.f32 %v1479, %v1557
      %1559 = vmatmul.bf16.gmra.mxu0 %v1271
      %v1560 = vpop.f32.mrf.mxu0
      %v1561 = vadd.f32 %v1482, %v1560
      %v1562 = vpop.f32.mrf.mxu0
      %v1563 = vadd.f32 %v1484, %v1562
      %1564 = vmatmul.bf16.gmra.mxu0 %v1274
      %v1565 = vpop.f32.mrf.mxu0
      %v1566 = vadd.f32 %v1487, %v1565
      %v1567 = vpop.f32.mrf.mxu0
      %v1568 = vadd.f32 %v1489, %v1567
      %1569 = vmatmul.bf16.gmra.mxu0 %v1277
      %v1570 = vpop.f32.mrf.mxu0
      %v1571 = vadd.f32 %v1492, %v1570
      %v1572 = vpop.f32.mrf.mxu0
      %v1573 = vadd.f32 %v1494, %v1572
      %1574 = vmatmul.bf16.gmra.mxu0 %v1280
      %v1575 = vpop.f32.mrf.mxu0
      %v1576 = vadd.f32 %v1497, %v1575
      %v1577 = vpop.f32.mrf.mxu0
      %v1578 = vadd.f32 %v1499, %v1577
      %1579 = vmatmul.bf16.gmra.mxu0 %v1283
      %v1580 = vpop.f32.mrf.mxu0
      %v1581 = vadd.f32 %v1502, %v1580
      %v1582 = vpop.f32.mrf.mxu0
      %v1583 = vadd.f32 %v1504, %v1582
      %1584 = vmatmul.bf16.gmra.mxu0 %v1286
      %v1585 = vpop.f32.mrf.mxu0
      %v1586 = vadd.f32 %v1507, %v1585
      %v1587 = vpop.f32.mrf.mxu0
      %v1588 = vadd.f32 %v1509, %v1587
      %1589 = vmatmul.bf16.gmra.mxu0 %v1289
      %v1590 = vpop.f32.mrf.mxu0
      %v1591 = vadd.f32 %v1512, %v1590
      %v1592 = vpop.f32.mrf.mxu0
      %v1593 = vadd.f32 %v1514, %v1592
      %1594 = vmatmul.bf16.gmra.mxu0 %v1292
      %v1595 = vpop.f32.mrf.mxu0
      %v1596 = vadd.f32 %v1517, %v1595
      %v1597 = vpop.f32.mrf.mxu0
      %v1598 = vadd.f32 %v1519, %v1597
      %1599 = vmatmul.bf16.gmra.mxu0 %v1295
      %v1600 = vpop.f32.mrf.mxu0
      %v1601 = vadd.f32 %v1522, %v1600
      %v1602 = vpop.f32.mrf.mxu0
      %v1603 = vadd.f32 %v1524, %v1602
      %1604 = vmatmul.bf16.gmra.mxu0 %v1298
      %v1605 = vpop.f32.mrf.mxu0
      %v1606 = vadd.f32 %v1527, %v1605
      %v1607 = vpop.f32.mrf.mxu0
      %v1608 = vadd.f32 %v1529, %v1607
      %1609 = vmatmul.bf16.gmra.mxu0 %v1301
      %v1610 = vpop.f32.mrf.mxu0
      %v1611 = vadd.f32 %v1532, %v1610
      %v1612 = vpop.f32.mrf.mxu0
      %v1613 = vadd.f32 %v1534, %v1612
      %1614 = vmatmul.bf16.gmra.mxu0 %v1304
      %v1615 = vpop.f32.mrf.mxu0
      %v1616 = vadd.f32 %v1537, %v1615
      %v1617 = vpop.f32.mrf.mxu0
      %v1618 = vadd.f32 %v1539, %v1617
      %1619 = vmatmul.bf16.gmra.mxu0 %v1307
      %v1620 = vpop.f32.mrf.mxu0
      %v1621 = vadd.f32 %v1542, %v1620
      %v1622 = vpop.f32.mrf.mxu0
      %v1623 = vadd.f32 %v1544, %v1622
      %1624 = vdwg.mxu0
      %1625 = vmatpush.bf16.msra.mxu0 %v1161
      %1626 = vmatpush.bf16.msra.mxu0 %v1159
      %1627 = vmatpush.bf16.msra.mxu0 %v1157
      %1628 = vmatpush.bf16.msra.mxu0 %v1155
      %1629 = vmatpush.bf16.msra.mxu0 %v1153
      %1630 = vmatpush.bf16.msra.mxu0 %v1151
      %1631 = vmatpush.bf16.msra.mxu0 %v1149
      %1632 = vmatpush.bf16.msra.mxu0 %v1147
      %1633 = vmatmul.bf16.gmra.mxu0 %v868
      %v1634 = vpop.f32.mrf.mxu0
      %v1635 = vadd.f32 %v697, %v1634
      %v1636 = vpop.f32.mrf.mxu0
      %v1637 = vadd.f32 %v697, %v1636
      %1638 = vmatmul.bf16.gmra.mxu0 %v872
      %v1639 = vpop.f32.mrf.mxu0
      %v1640 = vadd.f32 %v697, %v1639
      %v1641 = vpop.f32.mrf.mxu0
      %v1642 = vadd.f32 %v697, %v1641
      %1643 = vmatmul.bf16.gmra.mxu0 %v876
      %v1644 = vpop.f32.mrf.mxu0
      %v1645 = vadd.f32 %v697, %v1644
      %v1646 = vpop.f32.mrf.mxu0
      %v1647 = vadd.f32 %v697, %v1646
      %1648 = vmatmul.bf16.gmra.mxu0 %v880
      %v1649 = vpop.f32.mrf.mxu0
      %v1650 = vadd.f32 %v697, %v1649
      %v1651 = vpop.f32.mrf.mxu0
      %v1652 = vadd.f32 %v697, %v1651
      %1653 = vmatmul.bf16.gmra.mxu0 %v884
      %v1654 = vpop.f32.mrf.mxu0
      %v1655 = vadd.f32 %v697, %v1654
      %v1656 = vpop.f32.mrf.mxu0
      %v1657 = vadd.f32 %v697, %v1656
      %1658 = vmatmul.bf16.gmra.mxu0 %v888
      %v1659 = vpop.f32.mrf.mxu0
      %v1660 = vadd.f32 %v697, %v1659
      %v1661 = vpop.f32.mrf.mxu0
      %v1662 = vadd.f32 %v697, %v1661
      %1663 = vmatmul.bf16.gmra.mxu0 %v892
      %v1664 = vpop.f32.mrf.mxu0
      %v1665 = vadd.f32 %v697, %v1664
      %v1666 = vpop.f32.mrf.mxu0
      %v1667 = vadd.f32 %v697, %v1666
      %1668 = vmatmul.bf16.gmra.mxu0 %v896
      %v1669 = vpop.f32.mrf.mxu0
      %v1670 = vadd.f32 %v697, %v1669
      %v1671 = vpop.f32.mrf.mxu0
      %v1672 = vadd.f32 %v697, %v1671
      %1673 = vmatmul.bf16.gmra.mxu0 %v900
      %v1674 = vpop.f32.mrf.mxu0
      %v1675 = vadd.f32 %v697, %v1674
      %v1676 = vpop.f32.mrf.mxu0
      %v1677 = vadd.f32 %v697, %v1676
      %1678 = vmatmul.bf16.gmra.mxu0 %v904
      %v1679 = vpop.f32.mrf.mxu0
      %v1680 = vadd.f32 %v697, %v1679
      %v1681 = vpop.f32.mrf.mxu0
      %v1682 = vadd.f32 %v697, %v1681
      %1683 = vmatmul.bf16.gmra.mxu0 %v908
      %v1684 = vpop.f32.mrf.mxu0
      %v1685 = vadd.f32 %v697, %v1684
      %v1686 = vpop.f32.mrf.mxu0
      %v1687 = vadd.f32 %v697, %v1686
      %1688 = vmatmul.bf16.gmra.mxu0 %v912
      %v1689 = vpop.f32.mrf.mxu0
      %v1690 = vadd.f32 %v697, %v1689
      %v1691 = vpop.f32.mrf.mxu0
      %v1692 = vadd.f32 %v697, %v1691
      %1693 = vmatmul.bf16.gmra.mxu0 %v916
      %v1694 = vpop.f32.mrf.mxu0
      %v1695 = vadd.f32 %v697, %v1694
      %v1696 = vpop.f32.mrf.mxu0
      %v1697 = vadd.f32 %v697, %v1696
      %1698 = vmatmul.bf16.gmra.mxu0 %v920
      %v1699 = vpop.f32.mrf.mxu0
      %v1700 = vadd.f32 %v697, %v1699
      %v1701 = vpop.f32.mrf.mxu0
      %v1702 = vadd.f32 %v697, %v1701
      %1703 = vdwg.mxu0
      %1704 = vmatpush.bf16.msra.mxu0 %v1177
      %1705 = vmatpush.bf16.msra.mxu0 %v1175
      %1706 = vmatpush.bf16.msra.mxu0 %v1173
      %1707 = vmatpush.bf16.msra.mxu0 %v1171
      %1708 = vmatpush.bf16.msra.mxu0 %v1169
      %1709 = vmatpush.bf16.msra.mxu0 %v1167
      %1710 = vmatpush.bf16.msra.mxu0 %v1165
      %1711 = vmatpush.bf16.msra.mxu0 %v1163
      %1712 = vmatmul.bf16.gmra.mxu0 %v869
      %v1713 = vpop.f32.mrf.mxu0
      %v1714 = vadd.f32 %v1635, %v1713
      %v1715 = vpop.f32.mrf.mxu0
      %v1716 = vadd.f32 %v1637, %v1715
      %1717 = vmatmul.bf16.gmra.mxu0 %v873
      %v1718 = vpop.f32.mrf.mxu0
      %v1719 = vadd.f32 %v1640, %v1718
      %v1720 = vpop.f32.mrf.mxu0
      %v1721 = vadd.f32 %v1642, %v1720
      %1722 = vmatmul.bf16.gmra.mxu0 %v877
      %v1723 = vpop.f32.mrf.mxu0
      %v1724 = vadd.f32 %v1645, %v1723
      %v1725 = vpop.f32.mrf.mxu0
      %v1726 = vadd.f32 %v1647, %v1725
      %1727 = vmatmul.bf16.gmra.mxu0 %v881
      %v1728 = vpop.f32.mrf.mxu0
      %v1729 = vadd.f32 %v1650, %v1728
      %v1730 = vpop.f32.mrf.mxu0
      %v1731 = vadd.f32 %v1652, %v1730
      %1732 = vmatmul.bf16.gmra.mxu0 %v885
      %v1733 = vpop.f32.mrf.mxu0
      %v1734 = vadd.f32 %v1655, %v1733
      %v1735 = vpop.f32.mrf.mxu0
      %v1736 = vadd.f32 %v1657, %v1735
      %1737 = vmatmul.bf16.gmra.mxu0 %v889
      %v1738 = vpop.f32.mrf.mxu0
      %v1739 = vadd.f32 %v1660, %v1738
      %v1740 = vpop.f32.mrf.mxu0
      %v1741 = vadd.f32 %v1662, %v1740
      %1742 = vmatmul.bf16.gmra.mxu0 %v893
      %v1743 = vpop.f32.mrf.mxu0
      %v1744 = vadd.f32 %v1665, %v1743
      %v1745 = vpop.f32.mrf.mxu0
      %v1746 = vadd.f32 %v1667, %v1745
      %1747 = vmatmul.bf16.gmra.mxu0 %v897
      %v1748 = vpop.f32.mrf.mxu0
      %v1749 = vadd.f32 %v1670, %v1748
      %v1750 = vpop.f32.mrf.mxu0
      %v1751 = vadd.f32 %v1672, %v1750
      %1752 = vmatmul.bf16.gmra.mxu0 %v901
      %v1753 = vpop.f32.mrf.mxu0
      %v1754 = vadd.f32 %v1675, %v1753
      %v1755 = vpop.f32.mrf.mxu0
      %v1756 = vadd.f32 %v1677, %v1755
      %1757 = vmatmul.bf16.gmra.mxu0 %v905
      %v1758 = vpop.f32.mrf.mxu0
      %v1759 = vadd.f32 %v1680, %v1758
      %v1760 = vpop.f32.mrf.mxu0
      %v1761 = vadd.f32 %v1682, %v1760
      %1762 = vmatmul.bf16.gmra.mxu0 %v909
      %v1763 = vpop.f32.mrf.mxu0
      %v1764 = vadd.f32 %v1685, %v1763
      %v1765 = vpop.f32.mrf.mxu0
      %v1766 = vadd.f32 %v1687, %v1765
      %1767 = vmatmul.bf16.gmra.mxu0 %v913
      %v1768 = vpop.f32.mrf.mxu0
      %v1769 = vadd.f32 %v1690, %v1768
      %v1770 = vpop.f32.mrf.mxu0
      %v1771 = vadd.f32 %v1692, %v1770
      %1772 = vmatmul.bf16.gmra.mxu0 %v917
      %v1773 = vpop.f32.mrf.mxu0
      %v1774 = vadd.f32 %v1695, %v1773
      %v1775 = vpop.f32.mrf.mxu0
      %v1776 = vadd.f32 %v1697, %v1775
      %1777 = vmatmul.bf16.gmra.mxu0 %v921
      %v1778 = vpop.f32.mrf.mxu0
      %v1779 = vadd.f32 %v1700, %v1778
      %v1780 = vpop.f32.mrf.mxu0
      %v1781 = vadd.f32 %v1702, %v1780
      %1782 = vdwg.mxu0
      %1783 = vmatpush.bf16.msra.mxu0 %v1193
      %1784 = vmatpush.bf16.msra.mxu0 %v1191
      %1785 = vmatpush.bf16.msra.mxu0 %v1189
      %1786 = vmatpush.bf16.msra.mxu0 %v1187
      %1787 = vmatpush.bf16.msra.mxu0 %v1185
      %1788 = vmatpush.bf16.msra.mxu0 %v1183
      %1789 = vmatpush.bf16.msra.mxu0 %v1181
      %1790 = vmatpush.bf16.msra.mxu0 %v1179
      %1791 = vmatmul.bf16.gmra.mxu0 %v870
      %v1792 = vpop.f32.mrf.mxu0
      %v1793 = vadd.f32 %v1714, %v1792
      %v1794 = vpop.f32.mrf.mxu0
      %v1795 = vadd.f32 %v1716, %v1794
      %1796 = vmatmul.bf16.gmra.mxu0 %v874
      %v1797 = vpop.f32.mrf.mxu0
      %v1798 = vadd.f32 %v1719, %v1797
      %v1799 = vpop.f32.mrf.mxu0
      %v1800 = vadd.f32 %v1721, %v1799
      %1801 = vmatmul.bf16.gmra.mxu0 %v878
      %v1802 = vpop.f32.mrf.mxu0
      %v1803 = vadd.f32 %v1724, %v1802
      %v1804 = vpop.f32.mrf.mxu0
      %v1805 = vadd.f32 %v1726, %v1804
      %1806 = vmatmul.bf16.gmra.mxu0 %v882
      %v1807 = vpop.f32.mrf.mxu0
      %v1808 = vadd.f32 %v1729, %v1807
      %v1809 = vpop.f32.mrf.mxu0
      %v1810 = vadd.f32 %v1731, %v1809
      %1811 = vmatmul.bf16.gmra.mxu0 %v886
      %v1812 = vpop.f32.mrf.mxu0
      %v1813 = vadd.f32 %v1734, %v1812
      %v1814 = vpop.f32.mrf.mxu0
      %v1815 = vadd.f32 %v1736, %v1814
      %1816 = vmatmul.bf16.gmra.mxu0 %v890
      %v1817 = vpop.f32.mrf.mxu0
      %v1818 = vadd.f32 %v1739, %v1817
      %v1819 = vpop.f32.mrf.mxu0
      %v1820 = vadd.f32 %v1741, %v1819
      %1821 = vmatmul.bf16.gmra.mxu0 %v894
      %v1822 = vpop.f32.mrf.mxu0
      %v1823 = vadd.f32 %v1744, %v1822
      %v1824 = vpop.f32.mrf.mxu0
      %v1825 = vadd.f32 %v1746, %v1824
      %1826 = vmatmul.bf16.gmra.mxu0 %v898
      %v1827 = vpop.f32.mrf.mxu0
      %v1828 = vadd.f32 %v1749, %v1827
      %v1829 = vpop.f32.mrf.mxu0
      %v1830 = vadd.f32 %v1751, %v1829
      %1831 = vmatmul.bf16.gmra.mxu0 %v902
      %v1832 = vpop.f32.mrf.mxu0
      %v1833 = vadd.f32 %v1754, %v1832
      %v1834 = vpop.f32.mrf.mxu0
      %v1835 = vadd.f32 %v1756, %v1834
      %1836 = vmatmul.bf16.gmra.mxu0 %v906
      %v1837 = vpop.f32.mrf.mxu0
      %v1838 = vadd.f32 %v1759, %v1837
      %v1839 = vpop.f32.mrf.mxu0
      %v1840 = vadd.f32 %v1761, %v1839
      %1841 = vmatmul.bf16.gmra.mxu0 %v910
      %v1842 = vpop.f32.mrf.mxu0
      %v1843 = vadd.f32 %v1764, %v1842
      %v1844 = vpop.f32.mrf.mxu0
      %v1845 = vadd.f32 %v1766, %v1844
      %1846 = vmatmul.bf16.gmra.mxu0 %v914
      %v1847 = vpop.f32.mrf.mxu0
      %v1848 = vadd.f32 %v1769, %v1847
      %v1849 = vpop.f32.mrf.mxu0
      %v1850 = vadd.f32 %v1771, %v1849
      %1851 = vmatmul.bf16.gmra.mxu0 %v918
      %v1852 = vpop.f32.mrf.mxu0
      %v1853 = vadd.f32 %v1774, %v1852
      %v1854 = vpop.f32.mrf.mxu0
      %v1855 = vadd.f32 %v1776, %v1854
      %1856 = vmatmul.bf16.gmra.mxu0 %v922
      %v1857 = vpop.f32.mrf.mxu0
      %v1858 = vadd.f32 %v1779, %v1857
      %v1859 = vpop.f32.mrf.mxu0
      %v1860 = vadd.f32 %v1781, %v1859
      %1861 = vdwg.mxu0
      %1862 = vmatpush.bf16.msra.mxu0 0
      %1863 = vmatpush.bf16.msra.mxu0 0
      %1864 = vmatpush.bf16.msra.mxu0 %v1205
      %1865 = vmatpush.bf16.msra.mxu0 %v1203
      %1866 = vmatpush.bf16.msra.mxu0 %v1201
      %1867 = vmatpush.bf16.msra.mxu0 %v1199
      %1868 = vmatpush.bf16.msra.mxu0 %v1197
      %1869 = vmatpush.bf16.msra.mxu0 %v1195
      %1870 = vmatmul.bf16.gmra.mxu0 %v1268
      %v1871 = vpop.f32.mrf.mxu0
      %v1872 = vadd.f32 %v1793, %v1871
      %v1873 = vpop.f32.mrf.mxu0
      %v1874 = vadd.f32 %v1795, %v1873
      %1875 = vmatmul.bf16.gmra.mxu0 %v1271
      %v1876 = vpop.f32.mrf.mxu0
      %v1877 = vadd.f32 %v1798, %v1876
      %v1878 = vpop.f32.mrf.mxu0
      %v1879 = vadd.f32 %v1800, %v1878
      %1880 = vmatmul.bf16.gmra.mxu0 %v1274
      %v1881 = vpop.f32.mrf.mxu0
      %v1882 = vadd.f32 %v1803, %v1881
      %v1883 = vpop.f32.mrf.mxu0
      %v1884 = vadd.f32 %v1805, %v1883
      %1885 = vmatmul.bf16.gmra.mxu0 %v1277
      %v1886 = vpop.f32.mrf.mxu0
      %v1887 = vadd.f32 %v1808, %v1886
      %v1888 = vpop.f32.mrf.mxu0
      %v1889 = vadd.f32 %v1810, %v1888
      %1890 = vmatmul.bf16.gmra.mxu0 %v1280
      %v1891 = vpop.f32.mrf.mxu0
      %v1892 = vadd.f32 %v1813, %v1891
      %v1893 = vpop.f32.mrf.mxu0
      %v1894 = vadd.f32 %v1815, %v1893
      %1895 = vmatmul.bf16.gmra.mxu0 %v1283
      %v1896 = vpop.f32.mrf.mxu0
      %v1897 = vadd.f32 %v1818, %v1896
      %v1898 = vpop.f32.mrf.mxu0
      %v1899 = vadd.f32 %v1820, %v1898
      %1900 = vmatmul.bf16.gmra.mxu0 %v1286
      %v1901 = vpop.f32.mrf.mxu0
      %v1902 = vadd.f32 %v1823, %v1901
      %v1903 = vpop.f32.mrf.mxu0
      %v1904 = vadd.f32 %v1825, %v1903
      %1905 = vmatmul.bf16.gmra.mxu0 %v1289
      %v1906 = vpop.f32.mrf.mxu0
      %v1907 = vadd.f32 %v1828, %v1906
      %v1908 = vpop.f32.mrf.mxu0
      %v1909 = vadd.f32 %v1830, %v1908
      %1910 = vmatmul.bf16.gmra.mxu0 %v1292
      %v1911 = vpop.f32.mrf.mxu0
      %v1912 = vadd.f32 %v1833, %v1911
      %v1913 = vpop.f32.mrf.mxu0
      %v1914 = vadd.f32 %v1835, %v1913
      %1915 = vmatmul.bf16.gmra.mxu0 %v1295
      %v1916 = vpop.f32.mrf.mxu0
      %v1917 = vadd.f32 %v1838, %v1916
      %v1918 = vpop.f32.mrf.mxu0
      %v1919 = vadd.f32 %v1840, %v1918
      %1920 = vmatmul.bf16.gmra.mxu0 %v1298
      %v1921 = vpop.f32.mrf.mxu0
      %v1922 = vadd.f32 %v1843, %v1921
      %v1923 = vpop.f32.mrf.mxu0
      %v1924 = vadd.f32 %v1845, %v1923
      %1925 = vmatmul.bf16.gmra.mxu0 %v1301
      %v1926 = vpop.f32.mrf.mxu0
      %v1927 = vadd.f32 %v1848, %v1926
      %v1928 = vpop.f32.mrf.mxu0
      %v1929 = vadd.f32 %v1850, %v1928
      %1930 = vmatmul.bf16.gmra.mxu0 %v1304
      %v1931 = vpop.f32.mrf.mxu0
      %v1932 = vadd.f32 %v1853, %v1931
      %v1933 = vpop.f32.mrf.mxu0
      %v1934 = vadd.f32 %v1855, %v1933
      %1935 = vmatmul.bf16.gmra.mxu0 %v1307
      %v1936 = vpop.f32.mrf.mxu0
      %v1937 = vadd.f32 %v1858, %v1936
      %v1938 = vpop.f32.mrf.mxu0
      %v1939 = vadd.f32 %v1860, %v1938
      %1940 = vdwg.mxu0
      %v1941 = vmax.f32 %v1556, 0.0
      %v1942 = vmax.f32 %v1872, 0.0
      %v1943 = vmax.f32 %v1558, 0.0
      %v1944 = vmax.f32 %v1874, 0.0
      %v1945 = vmax.f32 %v1561, 0.0
      %v1946 = vmax.f32 %v1877, 0.0
      %v1947 = vmax.f32 %v1563, 0.0
      %v1948 = vmax.f32 %v1879, 0.0
      %v1949 = vmax.f32 %v1566, 0.0
      %v1950 = vmax.f32 %v1882, 0.0
      %v1951 = vmax.f32 %v1568, 0.0
      %v1952 = vmax.f32 %v1884, 0.0
      %v1953 = vmax.f32 %v1571, 0.0
      %v1954 = vmax.f32 %v1887, 0.0
      %v1955 = vmax.f32 %v1573, 0.0
      %v1956 = vmax.f32 %v1889, 0.0
      %v1957 = vmax.f32 %v1576, 0.0
      %v1958 = vmax.f32 %v1892, 0.0
      %v1959 = vmax.f32 %v1578, 0.0
      %v1960 = vmax.f32 %v1894, 0.0
      %v1961 = vmax.f32 %v1581, 0.0
      %v1962 = vmax.f32 %v1897, 0.0
      %v1963 = vmax.f32 %v1583, 0.0
      %v1964 = vmax.f32 %v1899, 0.0
      %v1965 = vmax.f32 %v1586, 0.0
      %v1966 = vmax.f32 %v1902, 0.0
      %v1967 = vmax.f32 %v1588, 0.0
      %v1968 = vmax.f32 %v1904, 0.0
      %v1969 = vmax.f32 %v1591, 0.0
      %v1970 = vmax.f32 %v1907, 0.0
      %v1971 = vmax.f32 %v1593, 0.0
      %v1972 = vmax.f32 %v1909, 0.0
      %v1973 = vmax.f32 %v1596, 0.0
      %v1974 = vmax.f32 %v1912, 0.0
      %v1975 = vmax.f32 %v1598, 0.0
      %v1976 = vmax.f32 %v1914, 0.0
      %v1977 = vmax.f32 %v1601, 0.0
      %v1978 = vmax.f32 %v1917, 0.0
      %v1979 = vmax.f32 %v1603, 0.0
      %v1980 = vmax.f32 %v1919, 0.0
      %v1981 = vmax.f32 %v1606, 0.0
      %v1982 = vmax.f32 %v1922, 0.0
      %v1983 = vmax.f32 %v1608, 0.0
      %v1984 = vmax.f32 %v1924, 0.0
      %v1985 = vmax.f32 %v1611, 0.0
      %v1986 = vmax.f32 %v1927, 0.0
      %v1987 = vmax.f32 %v1613, 0.0
      %v1988 = vmax.f32 %v1929, 0.0
      %v1989 = vmax.f32 %v1616, 0.0
      %v1990 = vmax.f32 %v1932, 0.0
      %v1991 = vmax.f32 %v1618, 0.0
      %v1992 = vmax.f32 %v1934, 0.0
      %v1993 = vmax.f32 %v1621, 0.0
      %v1994 = vmax.f32 %v1937, 0.0
      %v1995 = vmax.f32 %v1623, 0.0
      %v1996 = vmax.f32 %v1939, 0.0
      %v1997 = vmax.f32 %v1941, %v1942
      %v1998 = vmax.f32 %v1943, %v1944
      %v1999 = vmax.f32 %v1945, %v1946
      %v2000 = vmax.f32 %v1947, %v1948
      %v2001 = vmax.f32 %v1949, %v1950
      %v2002 = vmax.f32 %v1951, %v1952
      %v2003 = vmax.f32 %v1953, %v1954
      %v2004 = vmax.f32 %v1955, %v1956
      %v2005 = vmax.f32 %v1957, %v1958
      %v2006 = vmax.f32 %v1959, %v1960
      %v2007 = vmax.f32 %v1961, %v1962
      %v2008 = vmax.f32 %v1963, %v1964
      %v2009 = vmax.f32 %v1965, %v1966
      %v2010 = vmax.f32 %v1967, %v1968
      %v2011 = vmax.f32 %v1969, %v1970
      %v2012 = vmax.f32 %v1971, %v1972
      %v2013 = vmax.f32 %v1973, %v1974
      %v2014 = vmax.f32 %v1975, %v1976
      %v2015 = vmax.f32 %v1977, %v1978
      %v2016 = vmax.f32 %v1979, %v1980
      %v2017 = vmax.f32 %v1981, %v1982
      %v2018 = vmax.f32 %v1983, %v1984
      %v2019 = vmax.f32 %v1985, %v1986
      %v2020 = vmax.f32 %v1987, %v1988
      %v2021 = vmax.f32 %v1989, %v1990
      %v2022 = vmax.f32 %v1991, %v1992
      %v2023 = vmax.f32 %v1993, %v1994
      %v2024 = vmax.f32 %v1995, %v1996
      %v2025 = vmax.f32 %v1997, %v1998
      %v2026 = vmax.f32 %v1999, %v2000
      %v2027 = vmax.f32 %v2001, %v2002
      %v2028 = vmax.f32 %v2003, %v2004
      %v2029 = vmax.f32 %v2005, %v2006
      %v2030 = vmax.f32 %v2007, %v2008
      %v2031 = vmax.f32 %v2009, %v2010
      %v2032 = vmax.f32 %v2011, %v2012
      %v2033 = vmax.f32 %v2013, %v2014
      %v2034 = vmax.f32 %v2015, %v2016
      %v2035 = vmax.f32 %v2017, %v2018
      %v2036 = vmax.f32 %v2019, %v2020
      %v2037 = vmax.f32 %v2021, %v2022
      %v2038 = vmax.f32 %v2023, %v2024
      %v2039 = vpack.c.bf16 %v2026, %v2025
      %v2040 = vpack.c.bf16 %v2028, %v2027
      %v2041 = vpack.c.bf16 %v2030, %v2029
      %v2042 = vpack.c.bf16 %v2032, %v2031
      %v2043 = vpack.c.bf16 %v2034, %v2033
      %v2044 = vld [vmem:[%s3] sm:$0xff]
      %v2045 = vld [vmem:[%s3 + $0x8] sm:$0xff]
      %v2046 = vld [vmem:[%s3 + $0x10] sm:$0xff]
      %v2047 = vld [vmem:[%s3 + $0x18] sm:$0xff]
      %v2048 = vld [vmem:[%s3 + $0x20] sm:$0xff]
      %v2049 = vld [vmem:[%s3 + $0x28] sm:$0xff]
      %v2050 = vld [vmem:[%s3 + $0x30] sm:$0xff]
      %v2051 = vld [vmem:[%s3 + $0x38] sm:$0xff]
      %v2052 = vld [vmem:[%s3 + $0x40] sm:$0xff]
      %v2053 = vld [vmem:[%s3 + $0x48] sm:$0xff]
      %v2054 = vld [vmem:[%s3 + $0x50] sm:$0xff]
      %v2055 = vld [vmem:[%s3 + $0x58] sm:$0xff]
      %v2056 = vld [vmem:[%s3 + $0x60] sm:$0xff]
      %v2057 = vld [vmem:[%s3 + $0x68] sm:$0xff]
      %v2058 = vld [vmem:[%s3 + $0x70] sm:$0xff]
      %v2059 = vld [vmem:[%s3 + $0x78] sm:$0xff]
      %v2060 = vpack.c.bf16 %v2027, %v2026
      %v2061 = vpack.c.bf16 %v2029, %v2028
      %v2062 = vpack.c.bf16 %v2031, %v2030
      %v2063 = vpack.c.bf16 %v2033, %v2032
      %v2064 = vpack.c.bf16 %v2035, %v2034
      %s2065 = scalar_lea.vmem %s3, 128
      %v2066 = vld [vmem:[%s2065] sm:$0xff]
      %v2067 = vld [vmem:[%s2065 + $0x8] sm:$0xff]
      %v2068 = vld [vmem:[%s2065 + $0x10] sm:$0xff]
      %v2069 = vld [vmem:[%s2065 + $0x18] sm:$0xff]
      %v2070 = vld [vmem:[%s2065 + $0x20] sm:$0xff]
      %v2071 = vld [vmem:[%s2065 + $0x28] sm:$0xff]
      %v2072 = vld [vmem:[%s2065 + $0x30] sm:$0xff]
      %v2073 = vld [vmem:[%s2065 + $0x38] sm:$0xff]
      %v2074 = vld [vmem:[%s2065 + $0x40] sm:$0xff]
      %v2075 = vld [vmem:[%s2065 + $0x48] sm:$0xff]
      %v2076 = vld [vmem:[%s2065 + $0x50] sm:$0xff]
      %v2077 = vld [vmem:[%s2065 + $0x58] sm:$0xff]
      %v2078 = vld [vmem:[%s2065 + $0x60] sm:$0xff]
      %v2079 = vld [vmem:[%s2065 + $0x68] sm:$0xff]
      %v2080 = vld [vmem:[%s2065 + $0x70] sm:$0xff]
      %v2081 = vld [vmem:[%s2065 + $0x78] sm:$0xff]
      %v2098 = vunpack.c.l.b16 %v2066
      %v2099 = vunpack.c.h.b16 %v2066
      %v2100 = vunpack.c.l.b16 %v2067
      %v2101 = vunpack.c.h.b16 %v2067
      %v2102 = vunpack.c.l.b16 %v2068
      %v2103 = vunpack.c.h.b16 %v2068
      %v2104 = vunpack.c.l.b16 %v2069
      %v2105 = vunpack.c.h.b16 %v2069
      %v2106 = vunpack.c.l.b16 %v2070
      %v2107 = vunpack.c.h.b16 %v2070
      %v2108 = vunpack.c.l.b16 %v2071
      %v2109 = vunpack.c.h.b16 %v2071
      %v2110 = vunpack.c.l.b16 %v2072
      %v2111 = vunpack.c.h.b16 %v2072
      %v2112 = vunpack.c.l.b16 %v2073
      %v2113 = vunpack.c.h.b16 %v2073
      %v2114 = vunpack.c.l.b16 %v2074
      %v2115 = vunpack.c.h.b16 %v2074
      %v2116 = vunpack.c.l.b16 %v2075
      %v2117 = vunpack.c.h.b16 %v2075
      %v2118 = vunpack.c.l.b16 %v2076
      %v2119 = vunpack.c.h.b16 %v2076
      %v2120 = vunpack.c.l.b16 %v2077
      %v2121 = vunpack.c.h.b16 %v2077
      %v2122 = vunpack.c.l.b16 %v2078
      %v2123 = vunpack.c.h.b16 %v2078
      %v2124 = vunpack.c.l.b16 %v2079
      %v2125 = vunpack.c.h.b16 %v2079
      %v2126 = vunpack.c.l.b16 %v2080
      %v2127 = vunpack.c.h.b16 %v2080
      %v2128 = vunpack.c.l.b16 %v2081
      %v2129 = vunpack.c.h.b16 %v2081
      %v2130 = vpack.c.b16 %v2100, %v2098
      %v2131 = vpack.c.b16 %v2101, %v2099
      %v2132 = vpack.c.b16 %v2104, %v2102
      %v2133 = vpack.c.b16 %v2105, %v2103
      %v2134 = vpack.c.b16 %v2108, %v2106
      %v2135 = vpack.c.b16 %v2109, %v2107
      %v2136 = vpack.c.b16 %v2112, %v2110
      %v2137 = vpack.c.b16 %v2113, %v2111
      %v2138 = vpack.c.b16 %v2116, %v2114
      %v2139 = vpack.c.b16 %v2117, %v2115
      %v2140 = vpack.c.b16 %v2120, %v2118
      %v2141 = vpack.c.b16 %v2121, %v2119
      %v2142 = vpack.c.b16 %v2124, %v2122
      %v2143 = vpack.c.b16 %v2125, %v2123
      %v2144 = vpack.c.b16 %v2128, %v2126
      %v2145 = vpack.c.b16 %v2129, %v2127
      %2162 = vmatpush.bf16.msra.mxu0 %v2144
      %2163 = vmatpush.bf16.msra.mxu0 %v2142
      %2164 = vmatpush.bf16.msra.mxu0 %v2140
      %2165 = vmatpush.bf16.msra.mxu0 %v2138
      %2166 = vmatpush.bf16.msra.mxu0 %v2136
      %2167 = vmatpush.bf16.msra.mxu0 %v2134
      %2168 = vmatpush.bf16.msra.mxu0 %v2132
      %2169 = vmatpush.bf16.msra.mxu0 %v2130
      %2170 = vmatmul.bf16.gmra.mxu0 %v2060
      %v2171 = vpop.f32.mrf.mxu0
      %v2172 = vadd.f32 0.0, %v2171
      %v2173 = vpop.f32.mrf.mxu0
      %v2174 = vadd.f32 0.0, %v2173
      %2175 = vmatmul.bf16.gmra.mxu0 %v2061
      %v2176 = vpop.f32.mrf.mxu0
      %v2177 = vadd.f32 0.0, %v2176
      %v2178 = vpop.f32.mrf.mxu0
      %v2179 = vadd.f32 0.0, %v2178
      %2180 = vmatmul.bf16.gmra.mxu0 %v2062
      %v2181 = vpop.f32.mrf.mxu0
      %v2182 = vadd.f32 0.0, %v2181
      %v2183 = vpop.f32.mrf.mxu0
      %v2184 = vadd.f32 0.0, %v2183
      %2185 = vmatmul.bf16.gmra.mxu0 %v2063
      %v2186 = vpop.f32.mrf.mxu0
      %v2187 = vadd.f32 0.0, %v2186
      %v2188 = vpop.f32.mrf.mxu0
      %v2189 = vadd.f32 0.0, %v2188
      %2190 = vmatmul.bf16.gmra.mxu0 %v2064
      %v2191 = vpop.f32.mrf.mxu0
      %v2192 = vadd.f32 0.0, %v2191
      %v2193 = vpop.f32.mrf.mxu0
      %v2194 = vadd.f32 0.0, %v2193
      %2195 = vdwg.mxu0
      %2196 = vmatpush.bf16.msra.mxu0 %v2145
      %2197 = vmatpush.bf16.msra.mxu0 %v2143
      %2198 = vmatpush.bf16.msra.mxu0 %v2141
      %2199 = vmatpush.bf16.msra.mxu0 %v2139
      %2200 = vmatpush.bf16.msra.mxu0 %v2137
      %2201 = vmatpush.bf16.msra.mxu0 %v2135
      %2202 = vmatpush.bf16.msra.mxu0 %v2133
      %2203 = vmatpush.bf16.msra.mxu0 %v2131
      %2204 = vmatmul.bf16.gmra.mxu0 %v2060
      %v2205 = vpop.f32.mrf.mxu0
      %v2206 = vadd.f32 0.0, %v2205
      %v2207 = vpop.f32.mrf.mxu0
      %v2208 = vadd.f32 0.0, %v2207
      %2209 = vmatmul.bf16.gmra.mxu0 %v2061
      %v2210 = vpop.f32.mrf.mxu0
      %v2211 = vadd.f32 0.0, %v2210
      %v2212 = vpop.f32.mrf.mxu0
      %v2213 = vadd.f32 0.0, %v2212
      %2214 = vmatmul.bf16.gmra.mxu0 %v2062
      %v2215 = vpop.f32.mrf.mxu0
      %v2216 = vadd.f32 0.0, %v2215
      %v2217 = vpop.f32.mrf.mxu0
      %v2218 = vadd.f32 0.0, %v2217
      %2219 = vmatmul.bf16.gmra.mxu0 %v2063
      %v2220 = vpop.f32.mrf.mxu0
      %v2221 = vadd.f32 0.0, %v2220
      %v2222 = vpop.f32.mrf.mxu0
      %v2223 = vadd.f32 0.0, %v2222
      %2224 = vmatmul.bf16.gmra.mxu0 %v2064
      %v2225 = vpop.f32.mrf.mxu0
      %v2226 = vadd.f32 0.0, %v2225
      %v2227 = vpop.f32.mrf.mxu0
      %v2228 = vadd.f32 0.0, %v2227
      %2229 = vdwg.mxu0
      %v2246 = vunpack.c.l.b16 %v2044
      %v2247 = vunpack.c.h.b16 %v2044
      %v2248 = vunpack.c.l.b16 %v2045
      %v2249 = vunpack.c.h.b16 %v2045
      %v2250 = vunpack.c.l.b16 %v2046
      %v2251 = vunpack.c.h.b16 %v2046
      %v2252 = vunpack.c.l.b16 %v2047
      %v2253 = vunpack.c.h.b16 %v2047
      %v2254 = vunpack.c.l.b16 %v2048
      %v2255 = vunpack.c.h.b16 %v2048
      %v2256 = vunpack.c.l.b16 %v2049
      %v2257 = vunpack.c.h.b16 %v2049
      %v2258 = vunpack.c.l.b16 %v2050
      %v2259 = vunpack.c.h.b16 %v2050
      %v2260 = vunpack.c.l.b16 %v2051
      %v2261 = vunpack.c.h.b16 %v2051
      %v2262 = vunpack.c.l.b16 %v2052
      %v2263 = vunpack.c.h.b16 %v2052
      %v2264 = vunpack.c.l.b16 %v2053
      %v2265 = vunpack.c.h.b16 %v2053
      %v2266 = vunpack.c.l.b16 %v2054
      %v2267 = vunpack.c.h.b16 %v2054
      %v2268 = vunpack.c.l.b16 %v2055
      %v2269 = vunpack.c.h.b16 %v2055
      %v2270 = vunpack.c.l.b16 %v2056
      %v2271 = vunpack.c.h.b16 %v2056
      %v2272 = vunpack.c.l.b16 %v2057
      %v2273 = vunpack.c.h.b16 %v2057
      %v2274 = vunpack.c.l.b16 %v2058
      %v2275 = vunpack.c.h.b16 %v2058
      %v2276 = vunpack.c.l.b16 %v2059
      %v2277 = vunpack.c.h.b16 %v2059
      %v2278 = vpack.c.b16 %v2248, %v2246
      %v2279 = vpack.c.b16 %v2249, %v2247
      %v2280 = vpack.c.b16 %v2252, %v2250
      %v2281 = vpack.c.b16 %v2253, %v2251
      %v2282 = vpack.c.b16 %v2256, %v2254
      %v2283 = vpack.c.b16 %v2257, %v2255
      %v2284 = vpack.c.b16 %v2260, %v2258
      %v2285 = vpack.c.b16 %v2261, %v2259
      %v2286 = vpack.c.b16 %v2264, %v2262
      %v2287 = vpack.c.b16 %v2265, %v2263
      %v2288 = vpack.c.b16 %v2268, %v2266
      %v2289 = vpack.c.b16 %v2269, %v2267
      %v2290 = vpack.c.b16 %v2272, %v2270
      %v2291 = vpack.c.b16 %v2273, %v2271
      %v2292 = vpack.c.b16 %v2276, %v2274
      %v2293 = vpack.c.b16 %v2277, %v2275
      %2310 = vmatpush.bf16.msra.mxu0 %v2292
      %2311 = vmatpush.bf16.msra.mxu0 %v2290
      %2312 = vmatpush.bf16.msra.mxu0 %v2288
      %2313 = vmatpush.bf16.msra.mxu0 %v2286
      %2314 = vmatpush.bf16.msra.mxu0 %v2284
      %2315 = vmatpush.bf16.msra.mxu0 %v2282
      %2316 = vmatpush.bf16.msra.mxu0 %v2280
      %2317 = vmatpush.bf16.msra.mxu0 %v2278
      %2318 = vmatmul.bf16.gmra.mxu0 %v2039
      %v2319 = vpop.f32.mrf.mxu0
      %v2320 = vadd.f32 %v2172, %v2319
      %v2321 = vpop.f32.mrf.mxu0
      %v2322 = vadd.f32 %v2174, %v2321
      %2323 = vmatmul.bf16.gmra.mxu0 %v2040
      %v2324 = vpop.f32.mrf.mxu0
      %v2325 = vadd.f32 %v2177, %v2324
      %v2326 = vpop.f32.mrf.mxu0
      %v2327 = vadd.f32 %v2179, %v2326
      %2328 = vmatmul.bf16.gmra.mxu0 %v2041
      %v2329 = vpop.f32.mrf.mxu0
      %v2330 = vadd.f32 %v2182, %v2329
      %v2331 = vpop.f32.mrf.mxu0
      %v2332 = vadd.f32 %v2184, %v2331
      %2333 = vmatmul.bf16.gmra.mxu0 %v2042
      %v2334 = vpop.f32.mrf.mxu0
      %v2335 = vadd.f32 %v2187, %v2334
      %v2336 = vpop.f32.mrf.mxu0
      %v2337 = vadd.f32 %v2189, %v2336
      %2338 = vmatmul.bf16.gmra.mxu0 %v2043
      %v2339 = vpop.f32.mrf.mxu0
      %v2340 = vadd.f32 %v2192, %v2339
      %v2341 = vpop.f32.mrf.mxu0
      %v2342 = vadd.f32 %v2194, %v2341
      %2343 = vdwg.mxu0
      %2344 = vmatpush.bf16.msra.mxu0 %v2293
      %2345 = vmatpush.bf16.msra.mxu0 %v2291
      %2346 = vmatpush.bf16.msra.mxu0 %v2289
      %2347 = vmatpush.bf16.msra.mxu0 %v2287
      %2348 = vmatpush.bf16.msra.mxu0 %v2285
      %2349 = vmatpush.bf16.msra.mxu0 %v2283
      %2350 = vmatpush.bf16.msra.mxu0 %v2281
      %2351 = vmatpush.bf16.msra.mxu0 %v2279
      %2352 = vmatmul.bf16.gmra.mxu0 %v2039
      %v2353 = vpop.f32.mrf.mxu0
      %v2354 = vadd.f32 %v2206, %v2353
      %v2355 = vpop.f32.mrf.mxu0
      %v2356 = vadd.f32 %v2208, %v2355
      %2357 = vmatmul.bf16.gmra.mxu0 %v2040
      %v2358 = vpop.f32.mrf.mxu0
      %v2359 = vadd.f32 %v2211, %v2358
      %v2360 = vpop.f32.mrf.mxu0
      %v2361 = vadd.f32 %v2213, %v2360
      %2362 = vmatmul.bf16.gmra.mxu0 %v2041
      %v2363 = vpop.f32.mrf.mxu0
      %v2364 = vadd.f32 %v2216, %v2363
      %v2365 = vpop.f32.mrf.mxu0
      %v2366 = vadd.f32 %v2218, %v2365
      %2367 = vmatmul.bf16.gmra.mxu0 %v2042
      %v2368 = vpop.f32.mrf.mxu0
      %v2369 = vadd.f32 %v2221, %v2368
      %v2370 = vpop.f32.mrf.mxu0
      %v2371 = vadd.f32 %v2223, %v2370
      %2372 = vmatmul.bf16.gmra.mxu0 %v2043
      %v2373 = vpop.f32.mrf.mxu0
      %v2374 = vadd.f32 %v2226, %v2373
      %v2375 = vpop.f32.mrf.mxu0
      %v2376 = vadd.f32 %v2228, %v2375
      %2377 = vdwg.mxu0
      %v2378 = vpack.c.bf16 %v2036, %v2035
      %s2379 = scalar_lea.vmem %s3, 256
      %v2380 = vld [vmem:[%s2379] sm:$0xff]
      %v2381 = vld [vmem:[%s2379 + $0x8] sm:$0xff]
      %v2382 = vld [vmem:[%s2379 + $0x10] sm:$0xff]
      %v2383 = vld [vmem:[%s2379 + $0x18] sm:$0xff]
      %v2384 = vld [vmem:[%s2379 + $0x20] sm:$0xff]
      %v2385 = vld [vmem:[%s2379 + $0x28] sm:$0xff]
      %v2386 = vld [vmem:[%s2379 + $0x30] sm:$0xff]
      %v2387 = vld [vmem:[%s2379 + $0x38] sm:$0xff]
      %v2388 = vld [vmem:[%s2379 + $0x40] sm:$0xff]
      %v2389 = vld [vmem:[%s2379 + $0x48] sm:$0xff]
      %v2390 = vld [vmem:[%s2379 + $0x50] sm:$0xff]
      %v2391 = vld [vmem:[%s2379 + $0x58] sm:$0xff]
      %v2392 = vld [vmem:[%s2379 + $0x60] sm:$0xff]
      %v2393 = vld [vmem:[%s2379 + $0x68] sm:$0xff]
      %v2394 = vld [vmem:[%s2379 + $0x70] sm:$0xff]
      %v2395 = vld [vmem:[%s2379 + $0x78] sm:$0xff]
      %v2412 = vunpack.c.l.b16 %v2380
      %v2413 = vunpack.c.h.b16 %v2380
      %v2414 = vunpack.c.l.b16 %v2381
      %v2415 = vunpack.c.h.b16 %v2381
      %v2416 = vunpack.c.l.b16 %v2382
      %v2417 = vunpack.c.h.b16 %v2382
      %v2418 = vunpack.c.l.b16 %v2383
      %v2419 = vunpack.c.h.b16 %v2383
      %v2420 = vunpack.c.l.b16 %v2384
      %v2421 = vunpack.c.h.b16 %v2384
      %v2422 = vunpack.c.l.b16 %v2385
      %v2423 = vunpack.c.h.b16 %v2385
      %v2424 = vunpack.c.l.b16 %v2386
      %v2425 = vunpack.c.h.b16 %v2386
      %v2426 = vunpack.c.l.b16 %v2387
      %v2427 = vunpack.c.h.b16 %v2387
      %v2428 = vunpack.c.l.b16 %v2388
      %v2429 = vunpack.c.h.b16 %v2388
      %v2430 = vunpack.c.l.b16 %v2389
      %v2431 = vunpack.c.h.b16 %v2389
      %v2432 = vunpack.c.l.b16 %v2390
      %v2433 = vunpack.c.h.b16 %v2390
      %v2434 = vunpack.c.l.b16 %v2391
      %v2435 = vunpack.c.h.b16 %v2391
      %v2436 = vunpack.c.l.b16 %v2392
      %v2437 = vunpack.c.h.b16 %v2392
      %v2438 = vunpack.c.l.b16 %v2393
      %v2439 = vunpack.c.h.b16 %v2393
      %v2440 = vunpack.c.l.b16 %v2394
      %v2441 = vunpack.c.h.b16 %v2394
      %v2442 = vunpack.c.l.b16 %v2395
      %v2443 = vunpack.c.h.b16 %v2395
      %v2444 = vpack.c.b16 %v2414, %v2412
      %v2445 = vpack.c.b16 %v2415, %v2413
      %v2446 = vpack.c.b16 %v2418, %v2416
      %v2447 = vpack.c.b16 %v2419, %v2417
      %v2448 = vpack.c.b16 %v2422, %v2420
      %v2449 = vpack.c.b16 %v2423, %v2421
      %v2450 = vpack.c.b16 %v2426, %v2424
      %v2451 = vpack.c.b16 %v2427, %v2425
      %v2452 = vpack.c.b16 %v2430, %v2428
      %v2453 = vpack.c.b16 %v2431, %v2429
      %v2454 = vpack.c.b16 %v2434, %v2432
      %v2455 = vpack.c.b16 %v2435, %v2433
      %v2456 = vpack.c.b16 %v2438, %v2436
      %v2457 = vpack.c.b16 %v2439, %v2437
      %v2458 = vpack.c.b16 %v2442, %v2440
      %v2459 = vpack.c.b16 %v2443, %v2441
      %2476 = vmatpush.bf16.msra.mxu0 %v2458
      %2477 = vmatpush.bf16.msra.mxu0 %v2456
      %2478 = vmatpush.bf16.msra.mxu0 %v2454
      %2479 = vmatpush.bf16.msra.mxu0 %v2452
      %2480 = vmatpush.bf16.msra.mxu0 %v2450
      %2481 = vmatpush.bf16.msra.mxu0 %v2448
      %2482 = vmatpush.bf16.msra.mxu0 %v2446
      %2483 = vmatpush.bf16.msra.mxu0 %v2444
      %2484 = vmatmul.bf16.gmra.mxu0 %v2040
      %v2485 = vpop.f32.mrf.mxu0
      %v2486 = vadd.f32 0.0, %v2485
      %v2487 = vpop.f32.mrf.mxu0
      %v2488 = vadd.f32 0.0, %v2487
      %2489 = vmatmul.bf16.gmra.mxu0 %v2041
      %v2490 = vpop.f32.mrf.mxu0
      %v2491 = vadd.f32 0.0, %v2490
      %v2492 = vpop.f32.mrf.mxu0
      %v2493 = vadd.f32 0.0, %v2492
      %2494 = vmatmul.bf16.gmra.mxu0 %v2042
      %v2495 = vpop.f32.mrf.mxu0
      %v2496 = vadd.f32 0.0, %v2495
      %v2497 = vpop.f32.mrf.mxu0
      %v2498 = vadd.f32 0.0, %v2497
      %2499 = vmatmul.bf16.gmra.mxu0 %v2043
      %v2500 = vpop.f32.mrf.mxu0
      %v2501 = vadd.f32 0.0, %v2500
      %v2502 = vpop.f32.mrf.mxu0
      %v2503 = vadd.f32 0.0, %v2502
      %2504 = vmatmul.bf16.gmra.mxu0 %v2378
      %v2505 = vpop.f32.mrf.mxu0
      %v2506 = vadd.f32 0.0, %v2505
      %v2507 = vpop.f32.mrf.mxu0
      %v2508 = vadd.f32 0.0, %v2507
      %2509 = vdwg.mxu0
      %2510 = vmatpush.bf16.msra.mxu0 %v2459
      %2511 = vmatpush.bf16.msra.mxu0 %v2457
      %2512 = vmatpush.bf16.msra.mxu0 %v2455
      %2513 = vmatpush.bf16.msra.mxu0 %v2453
      %2514 = vmatpush.bf16.msra.mxu0 %v2451
      %2515 = vmatpush.bf16.msra.mxu0 %v2449
      %2516 = vmatpush.bf16.msra.mxu0 %v2447
      %2517 = vmatpush.bf16.msra.mxu0 %v2445
      %2518 = vmatmul.bf16.gmra.mxu0 %v2040
      %v2519 = vpop.f32.mrf.mxu0
      %v2520 = vadd.f32 0.0, %v2519
      %v2521 = vpop.f32.mrf.mxu0
      %v2522 = vadd.f32 0.0, %v2521
      %2523 = vmatmul.bf16.gmra.mxu0 %v2041
      %v2524 = vpop.f32.mrf.mxu0
      %v2525 = vadd.f32 0.0, %v2524
      %v2526 = vpop.f32.mrf.mxu0
      %v2527 = vadd.f32 0.0, %v2526
      %2528 = vmatmul.bf16.gmra.mxu0 %v2042
      %v2529 = vpop.f32.mrf.mxu0
      %v2530 = vadd.f32 0.0, %v2529
      %v2531 = vpop.f32.mrf.mxu0
      %v2532 = vadd.f32 0.0, %v2531
      %2533 = vmatmul.bf16.gmra.mxu0 %v2043
      %v2534 = vpop.f32.mrf.mxu0
      %v2535 = vadd.f32 0.0, %v2534
      %v2536 = vpop.f32.mrf.mxu0
      %v2537 = vadd.f32 0.0, %v2536
      %2538 = vmatmul.bf16.gmra.mxu0 %v2378
      %v2539 = vpop.f32.mrf.mxu0
      %v2540 = vadd.f32 0.0, %v2539
      %v2541 = vpop.f32.mrf.mxu0
      %v2542 = vadd.f32 0.0, %v2541
      %2543 = vdwg.mxu0
      %v2544 = vadd.f32 %v2320, %v2486
      %v2545 = vadd.f32 %v2354, %v2520
      %v2546 = vadd.f32 %v2322, %v2488
      %v2547 = vadd.f32 %v2356, %v2522
      %v2548 = vadd.f32 %v2325, %v2491
      %v2549 = vadd.f32 %v2359, %v2525
      %v2550 = vadd.f32 %v2327, %v2493
      %v2551 = vadd.f32 %v2361, %v2527
      %v2552 = vadd.f32 %v2330, %v2496
      %v2553 = vadd.f32 %v2364, %v2530
      %v2554 = vadd.f32 %v2332, %v2498
      %v2555 = vadd.f32 %v2366, %v2532
      %v2556 = vadd.f32 %v2335, %v2501
      %v2557 = vadd.f32 %v2369, %v2535
      %v2558 = vadd.f32 %v2337, %v2503
      %v2559 = vadd.f32 %v2371, %v2537
      %v2560 = vadd.f32 %v2340, %v2506
      %v2561 = vadd.f32 %v2374, %v2540
      %v2562 = vadd.f32 %v2342, %v2508
      %v2563 = vadd.f32 %v2376, %v2542
      %v2564 = vpack.c.bf16 %v2037, %v2036
      %s2565 = scalar_lea.vmem %s3, 384
      %v2566 = vld [vmem:[%s2565] sm:$0xff]
      %v2567 = vld [vmem:[%s2565 + $0x8] sm:$0xff]
      %v2568 = vld [vmem:[%s2565 + $0x10] sm:$0xff]
      %v2569 = vld [vmem:[%s2565 + $0x18] sm:$0xff]
      %v2570 = vld [vmem:[%s2565 + $0x20] sm:$0xff]
      %v2571 = vld [vmem:[%s2565 + $0x28] sm:$0xff]
      %v2572 = vld [vmem:[%s2565 + $0x30] sm:$0xff]
      %v2573 = vld [vmem:[%s2565 + $0x38] sm:$0xff]
      %v2574 = vld [vmem:[%s2565 + $0x40] sm:$0xff]
      %v2575 = vld [vmem:[%s2565 + $0x48] sm:$0xff]
      %v2576 = vld [vmem:[%s2565 + $0x50] sm:$0xff]
      %v2577 = vld [vmem:[%s2565 + $0x58] sm:$0xff]
      %v2578 = vld [vmem:[%s2565 + $0x60] sm:$0xff]
      %v2579 = vld [vmem:[%s2565 + $0x68] sm:$0xff]
      %v2580 = vld [vmem:[%s2565 + $0x70] sm:$0xff]
      %v2581 = vld [vmem:[%s2565 + $0x78] sm:$0xff]
      %v2598 = vunpack.c.l.b16 %v2566
      %v2599 = vunpack.c.h.b16 %v2566
      %v2600 = vunpack.c.l.b16 %v2567
      %v2601 = vunpack.c.h.b16 %v2567
      %v2602 = vunpack.c.l.b16 %v2568
      %v2603 = vunpack.c.h.b16 %v2568
      %v2604 = vunpack.c.l.b16 %v2569
      %v2605 = vunpack.c.h.b16 %v2569
      %v2606 = vunpack.c.l.b16 %v2570
      %v2607 = vunpack.c.h.b16 %v2570
      %v2608 = vunpack.c.l.b16 %v2571
      %v2609 = vunpack.c.h.b16 %v2571
      %v2610 = vunpack.c.l.b16 %v2572
      %v2611 = vunpack.c.h.b16 %v2572
      %v2612 = vunpack.c.l.b16 %v2573
      %v2613 = vunpack.c.h.b16 %v2573
      %v2614 = vunpack.c.l.b16 %v2574
      %v2615 = vunpack.c.h.b16 %v2574
      %v2616 = vunpack.c.l.b16 %v2575
      %v2617 = vunpack.c.h.b16 %v2575
      %v2618 = vunpack.c.l.b16 %v2576
      %v2619 = vunpack.c.h.b16 %v2576
      %v2620 = vunpack.c.l.b16 %v2577
      %v2621 = vunpack.c.h.b16 %v2577
      %v2622 = vunpack.c.l.b16 %v2578
      %v2623 = vunpack.c.h.b16 %v2578
      %v2624 = vunpack.c.l.b16 %v2579
      %v2625 = vunpack.c.h.b16 %v2579
      %v2626 = vunpack.c.l.b16 %v2580
      %v2627 = vunpack.c.h.b16 %v2580
      %v2628 = vunpack.c.l.b16 %v2581
      %v2629 = vunpack.c.h.b16 %v2581
      %v2630 = vpack.c.b16 %v2600, %v2598
      %v2631 = vpack.c.b16 %v2601, %v2599
      %v2632 = vpack.c.b16 %v2604, %v2602
      %v2633 = vpack.c.b16 %v2605, %v2603
      %v2634 = vpack.c.b16 %v2608, %v2606
      %v2635 = vpack.c.b16 %v2609, %v2607
      %v2636 = vpack.c.b16 %v2612, %v2610
      %v2637 = vpack.c.b16 %v2613, %v2611
      %v2638 = vpack.c.b16 %v2616, %v2614
      %v2639 = vpack.c.b16 %v2617, %v2615
      %v2640 = vpack.c.b16 %v2620, %v2618
      %v2641 = vpack.c.b16 %v2621, %v2619
      %v2642 = vpack.c.b16 %v2624, %v2622
      %v2643 = vpack.c.b16 %v2625, %v2623
      %v2644 = vpack.c.b16 %v2628, %v2626
      %v2645 = vpack.c.b16 %v2629, %v2627
      %2662 = vmatpush.bf16.msra.mxu0 %v2644
      %2663 = vmatpush.bf16.msra.mxu0 %v2642
      %2664 = vmatpush.bf16.msra.mxu0 %v2640
      %2665 = vmatpush.bf16.msra.mxu0 %v2638
      %2666 = vmatpush.bf16.msra.mxu0 %v2636
      %2667 = vmatpush.bf16.msra.mxu0 %v2634
      %2668 = vmatpush.bf16.msra.mxu0 %v2632
      %2669 = vmatpush.bf16.msra.mxu0 %v2630
      %2670 = vmatmul.bf16.gmra.mxu0 %v2061
      %v2671 = vpop.f32.mrf.mxu0
      %v2672 = vadd.f32 0.0, %v2671
      %v2673 = vpop.f32.mrf.mxu0
      %v2674 = vadd.f32 0.0, %v2673
      %2675 = vmatmul.bf16.gmra.mxu0 %v2062
      %v2676 = vpop.f32.mrf.mxu0
      %v2677 = vadd.f32 0.0, %v2676
      %v2678 = vpop.f32.mrf.mxu0
      %v2679 = vadd.f32 0.0, %v2678
      %2680 = vmatmul.bf16.gmra.mxu0 %v2063
      %v2681 = vpop.f32.mrf.mxu0
      %v2682 = vadd.f32 0.0, %v2681
      %v2683 = vpop.f32.mrf.mxu0
      %v2684 = vadd.f32 0.0, %v2683
      %2685 = vmatmul.bf16.gmra.mxu0 %v2064
      %v2686 = vpop.f32.mrf.mxu0
      %v2687 = vadd.f32 0.0, %v2686
      %v2688 = vpop.f32.mrf.mxu0
      %v2689 = vadd.f32 0.0, %v2688
      %2690 = vmatmul.bf16.gmra.mxu0 %v2564
      %v2691 = vpop.f32.mrf.mxu0
      %v2692 = vadd.f32 0.0, %v2691
      %v2693 = vpop.f32.mrf.mxu0
      %v2694 = vadd.f32 0.0, %v2693
      %2695 = vdwg.mxu0
      %2696 = vmatpush.bf16.msra.mxu0 %v2645
      %2697 = vmatpush.bf16.msra.mxu0 %v2643
      %2698 = vmatpush.bf16.msra.mxu0 %v2641
      %2699 = vmatpush.bf16.msra.mxu0 %v2639
      %2700 = vmatpush.bf16.msra.mxu0 %v2637
      %2701 = vmatpush.bf16.msra.mxu0 %v2635
      %2702 = vmatpush.bf16.msra.mxu0 %v2633
      %2703 = vmatpush.bf16.msra.mxu0 %v2631
      %2704 = vmatmul.bf16.gmra.mxu0 %v2061
      %v2705 = vpop.f32.mrf.mxu0
      %v2706 = vadd.f32 0.0, %v2705
      %v2707 = vpop.f32.mrf.mxu0
      %v2708 = vadd.f32 0.0, %v2707
      %2709 = vmatmul.bf16.gmra.mxu0 %v2062
      %v2710 = vpop.f32.mrf.mxu0
      %v2711 = vadd.f32 0.0, %v2710
      %v2712 = vpop.f32.mrf.mxu0
      %v2713 = vadd.f32 0.0, %v2712
      %2714 = vmatmul.bf16.gmra.mxu0 %v2063
      %v2715 = vpop.f32.mrf.mxu0
      %v2716 = vadd.f32 0.0, %v2715
      %v2717 = vpop.f32.mrf.mxu0
      %v2718 = vadd.f32 0.0, %v2717
      %2719 = vmatmul.bf16.gmra.mxu0 %v2064
      %v2720 = vpop.f32.mrf.mxu0
      %v2721 = vadd.f32 0.0, %v2720
      %v2722 = vpop.f32.mrf.mxu0
      %v2723 = vadd.f32 0.0, %v2722
      %2724 = vmatmul.bf16.gmra.mxu0 %v2564
      %v2725 = vpop.f32.mrf.mxu0
      %v2726 = vadd.f32 0.0, %v2725
      %v2727 = vpop.f32.mrf.mxu0
      %v2728 = vadd.f32 0.0, %v2727
      %2729 = vdwg.mxu0
      %v2730 = vadd.f32 %v2544, %v2672
      %v2731 = vadd.f32 %v2545, %v2706
      %v2732 = vadd.f32 %v2546, %v2674
      %v2733 = vadd.f32 %v2547, %v2708
      %v2734 = vadd.f32 %v2548, %v2677
      %v2735 = vadd.f32 %v2549, %v2711
      %v2736 = vadd.f32 %v2550, %v2679
      %v2737 = vadd.f32 %v2551, %v2713
      %v2738 = vadd.f32 %v2552, %v2682
      %v2739 = vadd.f32 %v2553, %v2716
      %v2740 = vadd.f32 %v2554, %v2684
      %v2741 = vadd.f32 %v2555, %v2718
      %v2742 = vadd.f32 %v2556, %v2687
      %v2743 = vadd.f32 %v2557, %v2721
      %v2744 = vadd.f32 %v2558, %v2689
      %v2745 = vadd.f32 %v2559, %v2723
      %v2746 = vadd.f32 %v2560, %v2692
      %v2747 = vadd.f32 %v2561, %v2726
      %v2748 = vadd.f32 %v2562, %v2694
      %v2749 = vadd.f32 %v2563, %v2728
      %v2750 = vpack.c.bf16 %v2038, %v2037
      %s2751 = scalar_lea.vmem %s3, 512
      %v2752 = vld [vmem:[%s2751] sm:$0xff]
      %v2753 = vld [vmem:[%s2751 + $0x8] sm:$0xff]
      %v2754 = vld [vmem:[%s2751 + $0x10] sm:$0xff]
      %v2755 = vld [vmem:[%s2751 + $0x18] sm:$0xff]
      %v2756 = vld [vmem:[%s2751 + $0x20] sm:$0xff]
      %v2757 = vld [vmem:[%s2751 + $0x28] sm:$0xff]
      %v2758 = vld [vmem:[%s2751 + $0x30] sm:$0xff]
      %v2759 = vld [vmem:[%s2751 + $0x38] sm:$0xff]
      %v2760 = vld [vmem:[%s2751 + $0x40] sm:$0xff]
      %v2761 = vld [vmem:[%s2751 + $0x48] sm:$0xff]
      %v2762 = vld [vmem:[%s2751 + $0x50] sm:$0xff]
      %v2763 = vld [vmem:[%s2751 + $0x58] sm:$0xff]
      %v2764 = vld [vmem:[%s2751 + $0x60] sm:$0xff]
      %v2765 = vld [vmem:[%s2751 + $0x68] sm:$0xff]
      %v2766 = vld [vmem:[%s2751 + $0x70] sm:$0xff]
      %v2767 = vld [vmem:[%s2751 + $0x78] sm:$0xff]
      %v2784 = vunpack.c.l.b16 %v2752
      %v2785 = vunpack.c.h.b16 %v2752
      %v2786 = vunpack.c.l.b16 %v2753
      %v2787 = vunpack.c.h.b16 %v2753
      %v2788 = vunpack.c.l.b16 %v2754
      %v2789 = vunpack.c.h.b16 %v2754
      %v2790 = vunpack.c.l.b16 %v2755
      %v2791 = vunpack.c.h.b16 %v2755
      %v2792 = vunpack.c.l.b16 %v2756
      %v2793 = vunpack.c.h.b16 %v2756
      %v2794 = vunpack.c.l.b16 %v2757
      %v2795 = vunpack.c.h.b16 %v2757
      %v2796 = vunpack.c.l.b16 %v2758
      %v2797 = vunpack.c.h.b16 %v2758
      %v2798 = vunpack.c.l.b16 %v2759
      %v2799 = vunpack.c.h.b16 %v2759
      %v2800 = vunpack.c.l.b16 %v2760
      %v2801 = vunpack.c.h.b16 %v2760
      %v2802 = vunpack.c.l.b16 %v2761
      %v2803 = vunpack.c.h.b16 %v2761
      %v2804 = vunpack.c.l.b16 %v2762
      %v2805 = vunpack.c.h.b16 %v2762
      %v2806 = vunpack.c.l.b16 %v2763
      %v2807 = vunpack.c.h.b16 %v2763
      %v2808 = vunpack.c.l.b16 %v2764
      %v2809 = vunpack.c.h.b16 %v2764
      %v2810 = vunpack.c.l.b16 %v2765
      %v2811 = vunpack.c.h.b16 %v2765
      %v2812 = vunpack.c.l.b16 %v2766
      %v2813 = vunpack.c.h.b16 %v2766
      %v2814 = vunpack.c.l.b16 %v2767
      %v2815 = vunpack.c.h.b16 %v2767
      %v2816 = vpack.c.b16 %v2786, %v2784
      %v2817 = vpack.c.b16 %v2787, %v2785
      %v2818 = vpack.c.b16 %v2790, %v2788
      %v2819 = vpack.c.b16 %v2791, %v2789
      %v2820 = vpack.c.b16 %v2794, %v2792
      %v2821 = vpack.c.b16 %v2795, %v2793
      %v2822 = vpack.c.b16 %v2798, %v2796
      %v2823 = vpack.c.b16 %v2799, %v2797
      %v2824 = vpack.c.b16 %v2802, %v2800
      %v2825 = vpack.c.b16 %v2803, %v2801
      %v2826 = vpack.c.b16 %v2806, %v2804
      %v2827 = vpack.c.b16 %v2807, %v2805
      %v2828 = vpack.c.b16 %v2810, %v2808
      %v2829 = vpack.c.b16 %v2811, %v2809
      %v2830 = vpack.c.b16 %v2814, %v2812
      %v2831 = vpack.c.b16 %v2815, %v2813
      %2848 = vmatpush.bf16.msra.mxu0 %v2830
      %2849 = vmatpush.bf16.msra.mxu0 %v2828
      %2850 = vmatpush.bf16.msra.mxu0 %v2826
      %2851 = vmatpush.bf16.msra.mxu0 %v2824
      %2852 = vmatpush.bf16.msra.mxu0 %v2822
      %2853 = vmatpush.bf16.msra.mxu0 %v2820
      %2854 = vmatpush.bf16.msra.mxu0 %v2818
      %2855 = vmatpush.bf16.msra.mxu0 %v2816
      %2856 = vmatmul.bf16.gmra.mxu0 %v2041
      %v2857 = vpop.f32.mrf.mxu0
      %v2858 = vadd.f32 0.0, %v2857
      %v2859 = vpop.f32.mrf.mxu0
      %v2860 = vadd.f32 0.0, %v2859
      %2861 = vmatmul.bf16.gmra.mxu0 %v2042
      %v2862 = vpop.f32.mrf.mxu0
      %v2863 = vadd.f32 0.0, %v2862
      %v2864 = vpop.f32.mrf.mxu0
      %v2865 = vadd.f32 0.0, %v2864
      %2866 = vmatmul.bf16.gmra.mxu0 %v2043
      %v2867 = vpop.f32.mrf.mxu0
      %v2868 = vadd.f32 0.0, %v2867
      %v2869 = vpop.f32.mrf.mxu0
      %v2870 = vadd.f32 0.0, %v2869
      %2871 = vmatmul.bf16.gmra.mxu0 %v2378
      %v2872 = vpop.f32.mrf.mxu0
      %v2873 = vadd.f32 0.0, %v2872
      %v2874 = vpop.f32.mrf.mxu0
      %v2875 = vadd.f32 0.0, %v2874
      %2876 = vmatmul.bf16.gmra.mxu0 %v2750
      %v2877 = vpop.f32.mrf.mxu0
      %v2878 = vadd.f32 0.0, %v2877
      %v2879 = vpop.f32.mrf.mxu0
      %v2880 = vadd.f32 0.0, %v2879
      %2881 = vdwg.mxu0
      %2882 = vmatpush.bf16.msra.mxu0 %v2831
      %2883 = vmatpush.bf16.msra.mxu0 %v2829
      %2884 = vmatpush.bf16.msra.mxu0 %v2827
      %2885 = vmatpush.bf16.msra.mxu0 %v2825
      %2886 = vmatpush.bf16.msra.mxu0 %v2823
      %2887 = vmatpush.bf16.msra.mxu0 %v2821
      %2888 = vmatpush.bf16.msra.mxu0 %v2819
      %2889 = vmatpush.bf16.msra.mxu0 %v2817
      %2890 = vmatmul.bf16.gmra.mxu0 %v2041
      %v2891 = vpop.f32.mrf.mxu0
      %v2892 = vadd.f32 0.0, %v2891
      %v2893 = vpop.f32.mrf.mxu0
      %v2894 = vadd.f32 0.0, %v2893
      %2895 = vmatmul.bf16.gmra.mxu0 %v2042
      %v2896 = vpop.f32.mrf.mxu0
      %v2897 = vadd.f32 0.0, %v2896
      %v2898 = vpop.f32.mrf.mxu0
      %v2899 = vadd.f32 0.0, %v2898
      %2900 = vmatmul.bf16.gmra.mxu0 %v2043
      %v2901 = vpop.f32.mrf.mxu0
      %v2902 = vadd.f32 0.0, %v2901
      %v2903 = vpop.f32.mrf.mxu0
      %v2904 = vadd.f32 0.0, %v2903
      %2905 = vmatmul.bf16.gmra.mxu0 %v2378
      %v2906 = vpop.f32.mrf.mxu0
      %v2907 = vadd.f32 0.0, %v2906
      %v2908 = vpop.f32.mrf.mxu0
      %v2909 = vadd.f32 0.0, %v2908
      %2910 = vmatmul.bf16.gmra.mxu0 %v2750
      %v2911 = vpop.f32.mrf.mxu0
      %v2912 = vadd.f32 0.0, %v2911
      %v2913 = vpop.f32.mrf.mxu0
      %v2914 = vadd.f32 0.0, %v2913
      %2915 = vdwg.mxu0
      %v2916 = vadd.f32 %v2730, %v2858
      %v2917 = vadd.f32 %v2731, %v2892
      %v2918 = vadd.f32 %v2732, %v2860
      %v2919 = vadd.f32 %v2733, %v2894
      %v2920 = vadd.f32 %v2734, %v2863
      %v2921 = vadd.f32 %v2735, %v2897
      %v2922 = vadd.f32 %v2736, %v2865
      %v2923 = vadd.f32 %v2737, %v2899
      %v2924 = vadd.f32 %v2738, %v2868
      %v2925 = vadd.f32 %v2739, %v2902
      %v2926 = vadd.f32 %v2740, %v2870
      %v2927 = vadd.f32 %v2741, %v2904
      %v2928 = vadd.f32 %v2742, %v2873
      %v2929 = vadd.f32 %v2743, %v2907
      %v2930 = vadd.f32 %v2744, %v2875
      %v2931 = vadd.f32 %v2745, %v2909
      %v2932 = vadd.f32 %v2746, %v2878
      %v2933 = vadd.f32 %v2747, %v2912
      %v2934 = vadd.f32 %v2748, %v2880
      %v2935 = vadd.f32 %v2749, %v2914
      %v2936 = vld [vmem:[%s4] sm:$0x3]
      %v2938 = vperm.slane %v2936, 0
      %v2939 = vperm.slane %v2936, 1
      %v2942 = vadd.f32 %v2916, %v2938
      %v2943 = vadd.f32 %v2917, %v2939
      %v2944 = vadd.f32 %v2918, %v2938
      %v2945 = vadd.f32 %v2919, %v2939
      %v2946 = vadd.f32 %v2920, %v2938
      %v2947 = vadd.f32 %v2921, %v2939
      %v2948 = vadd.f32 %v2922, %v2938
      %v2949 = vadd.f32 %v2923, %v2939
      %v2950 = vadd.f32 %v2924, %v2938
      %v2951 = vadd.f32 %v2925, %v2939
      %v2952 = vadd.f32 %v2926, %v2938
      %v2953 = vadd.f32 %v2927, %v2939
      %v2954 = vadd.f32 %v2928, %v2938
      %v2955 = vadd.f32 %v2929, %v2939
      %v2956 = vadd.f32 %v2930, %v2938
      %v2957 = vadd.f32 %v2931, %v2939
      %v2958 = vadd.f32 %v2932, %v2938
      %v2959 = vadd.f32 %v2933, %v2939
      %v2960 = vadd.f32 %v2934, %v2938
      %v2961 = vadd.f32 %v2935, %v2939
      %v2962 = vmax.f32 %v2942, 0.0
      %v2963 = vmax.f32 %v2943, 0.0
      %v2964 = vmax.f32 %v2944, 0.0
      %v2965 = vmax.f32 %v2945, 0.0
      %v2966 = vmax.f32 %v2946, 0.0
      %v2967 = vmax.f32 %v2947, 0.0
      %v2968 = vmax.f32 %v2948, 0.0
      %v2969 = vmax.f32 %v2949, 0.0
      %v2970 = vmax.f32 %v2950, 0.0
      %v2971 = vmax.f32 %v2951, 0.0
      %v2972 = vmax.f32 %v2952, 0.0
      %v2973 = vmax.f32 %v2953, 0.0
      %v2974 = vmax.f32 %v2954, 0.0
      %v2975 = vmax.f32 %v2955, 0.0
      %v2976 = vmax.f32 %v2956, 0.0
      %v2977 = vmax.f32 %v2957, 0.0
      %v2978 = vmax.f32 %v2958, 0.0
      %v2979 = vmax.f32 %v2959, 0.0
      %v2980 = vmax.f32 %v2960, 0.0
      %v2981 = vmax.f32 %v2961, 0.0
      %v2982 = vmax.f32 %v2962, %v2963
      %v2983 = vmax.f32 %v2964, %v2965
      %v2984 = vmax.f32 %v2966, %v2967
      %v2985 = vmax.f32 %v2968, %v2969
      %v2986 = vmax.f32 %v2970, %v2971
      %v2987 = vmax.f32 %v2972, %v2973
      %v2988 = vmax.f32 %v2974, %v2975
      %v2989 = vmax.f32 %v2976, %v2977
      %v2990 = vmax.f32 %v2978, %v2979
      %v2991 = vmax.f32 %v2980, %v2981
      %v2992 = vmax.f32 %v2982, %v2983
      %v2993 = vmax.f32 %v2984, %v2985
      %v2994 = vmax.f32 %v2986, %v2987
      %v2995 = vmax.f32 %v2988, %v2989
      %v2996 = vmax.f32 %v2990, %v2991
      %v2997 = vpack.c.bf16 %v2992, %v2992
      %v2998 = vld [vmem:[%s5] sm:$0xf]
      %v2999 = vld [vmem:[%s5 + $0x4] sm:$0xf]
      %v3000 = vld [vmem:[%s5 + $0x8] sm:$0xf]
      %v3001 = vld [vmem:[%s5 + $0xc] sm:$0xf]
      %v3002 = vld [vmem:[%s5 + $0x10] sm:$0xf]
      %v3003 = vld [vmem:[%s5 + $0x14] sm:$0xf]
      %v3004 = vld [vmem:[%s5 + $0x18] sm:$0xf]
      %v3005 = vld [vmem:[%s5 + $0x1c] sm:$0xf]
      %v3006 = vld [vmem:[%s5 + $0x20] sm:$0xf]
      %v3007 = vld [vmem:[%s5 + $0x24] sm:$0xf]
      %v3008 = vld [vmem:[%s5 + $0x28] sm:$0xf]
      %v3009 = vld [vmem:[%s5 + $0x2c] sm:$0xf]
      %v3010 = vld [vmem:[%s5 + $0x30] sm:$0xf]
      %v3011 = vld [vmem:[%s5 + $0x34] sm:$0xf]
      %v3012 = vld [vmem:[%s5 + $0x38] sm:$0xf]
      %v3013 = vld [vmem:[%s5 + $0x3c] sm:$0xf]
      %v3014 = vpack.c.bf16 %v2993, %v2993
      %s3015 = scalar_lea.vmem %s5, 64
      %v3016 = vld [vmem:[%s3015] sm:$0xf]
      %v3017 = vld [vmem:[%s3015 + $0x4] sm:$0xf]
      %v3018 = vld [vmem:[%s3015 + $0x8] sm:$0xf]
      %v3019 = vld [vmem:[%s3015 + $0xc] sm:$0xf]
      %v3020 = vld [vmem:[%s3015 + $0x10] sm:$0xf]
      %v3021 = vld [vmem:[%s3015 + $0x14] sm:$0xf]
      %v3022 = vld [vmem:[%s3015 + $0x18] sm:$0xf]
      %v3023 = vld [vmem:[%s3015 + $0x1c] sm:$0xf]
      %v3024 = vld [vmem:[%s3015 + $0x20] sm:$0xf]
      %v3025 = vld [vmem:[%s3015 + $0x24] sm:$0xf]
      %v3026 = vld [vmem:[%s3015 + $0x28] sm:$0xf]
      %v3027 = vld [vmem:[%s3015 + $0x2c] sm:$0xf]
      %v3028 = vld [vmem:[%s3015 + $0x30] sm:$0xf]
      %v3029 = vld [vmem:[%s3015 + $0x34] sm:$0xf]
      %v3030 = vld [vmem:[%s3015 + $0x38] sm:$0xf]
      %v3031 = vld [vmem:[%s3015 + $0x3c] sm:$0xf]
      %v3048 = vunpack.c.l.b16 %v3016
      %v3049 = vunpack.c.l.b16 %v3017
      %v3050 = vunpack.c.l.b16 %v3018
      %v3051 = vunpack.c.l.b16 %v3019
      %v3052 = vunpack.c.l.b16 %v3020
      %v3053 = vunpack.c.l.b16 %v3021
      %v3054 = vunpack.c.l.b16 %v3022
      %v3055 = vunpack.c.l.b16 %v3023
      %v3056 = vunpack.c.l.b16 %v3024
      %v3057 = vunpack.c.l.b16 %v3025
      %v3058 = vunpack.c.l.b16 %v3026
      %v3059 = vunpack.c.l.b16 %v3027
      %v3060 = vunpack.c.l.b16 %v3028
      %v3061 = vunpack.c.l.b16 %v3029
      %v3062 = vunpack.c.l.b16 %v3030
      %v3063 = vunpack.c.l.b16 %v3031
      %v3064 = vpack.c.b16 %v3049, %v3048
      %v3065 = vpack.c.b16 %v3051, %v3050
      %v3066 = vpack.c.b16 %v3053, %v3052
      %v3067 = vpack.c.b16 %v3055, %v3054
      %v3068 = vpack.c.b16 %v3057, %v3056
      %v3069 = vpack.c.b16 %v3059, %v3058
      %v3070 = vpack.c.b16 %v3061, %v3060
      %v3071 = vpack.c.b16 %v3063, %v3062
      %3080 = vmatpush.bf16.msra.mxu0 %v3071
      %3081 = vmatpush.bf16.msra.mxu0 %v3070
      %3082 = vmatpush.bf16.msra.mxu0 %v3069
      %3083 = vmatpush.bf16.msra.mxu0 %v3068
      %3084 = vmatpush.bf16.msra.mxu0 %v3067
      %3085 = vmatpush.bf16.msra.mxu0 %v3066
      %3086 = vmatpush.bf16.msra.mxu0 %v3065
      %3087 = vmatpush.bf16.msra.mxu0 %v3064
      %3088 = vmatmul.bf16.gmra.mxu0 %v3014
      %v3089 = vpop.f32.mrf.mxu0
      %v3090 = vadd.f32 0.0, %v3089
      %v3091 = vpop.f32.mrf.mxu0
      %3092 = vdwg.mxu0
      %v3109 = vunpack.c.l.b16 %v2998
      %v3110 = vunpack.c.l.b16 %v2999
      %v3111 = vunpack.c.l.b16 %v3000
      %v3112 = vunpack.c.l.b16 %v3001
      %v3113 = vunpack.c.l.b16 %v3002
      %v3114 = vunpack.c.l.b16 %v3003
      %v3115 = vunpack.c.l.b16 %v3004
      %v3116 = vunpack.c.l.b16 %v3005
      %v3117 = vunpack.c.l.b16 %v3006
      %v3118 = vunpack.c.l.b16 %v3007
      %v3119 = vunpack.c.l.b16 %v3008
      %v3120 = vunpack.c.l.b16 %v3009
      %v3121 = vunpack.c.l.b16 %v3010
      %v3122 = vunpack.c.l.b16 %v3011
      %v3123 = vunpack.c.l.b16 %v3012
      %v3124 = vunpack.c.l.b16 %v3013
      %v3125 = vpack.c.b16 %v3110, %v3109
      %v3126 = vpack.c.b16 %v3112, %v3111
      %v3127 = vpack.c.b16 %v3114, %v3113
      %v3128 = vpack.c.b16 %v3116, %v3115
      %v3129 = vpack.c.b16 %v3118, %v3117
      %v3130 = vpack.c.b16 %v3120, %v3119
      %v3131 = vpack.c.b16 %v3122, %v3121
      %v3132 = vpack.c.b16 %v3124, %v3123
      %3141 = vmatpush.bf16.msra.mxu0 %v3132
      %3142 = vmatpush.bf16.msra.mxu0 %v3131
      %3143 = vmatpush.bf16.msra.mxu0 %v3130
      %3144 = vmatpush.bf16.msra.mxu0 %v3129
      %3145 = vmatpush.bf16.msra.mxu0 %v3128
      %3146 = vmatpush.bf16.msra.mxu0 %v3127
      %3147 = vmatpush.bf16.msra.mxu0 %v3126
      %3148 = vmatpush.bf16.msra.mxu0 %v3125
      %3149 = vmatmul.bf16.gmra.mxu0 %v2997
      %v3150 = vpop.f32.mrf.mxu0
      %v3151 = vadd.f32 %v3090, %v3150
      %v3152 = vpop.f32.mrf.mxu0
      %3153 = vdwg.mxu0
      %v3154 = vpack.c.bf16 %v2994, %v2994
      %s3155 = scalar_lea.vmem %s5, 128
      %v3156 = vld [vmem:[%s3155] sm:$0xf]
      %v3157 = vld [vmem:[%s3155 + $0x4] sm:$0xf]
      %v3158 = vld [vmem:[%s3155 + $0x8] sm:$0xf]
      %v3159 = vld [vmem:[%s3155 + $0xc] sm:$0xf]
      %v3160 = vld [vmem:[%s3155 + $0x10] sm:$0xf]
      %v3161 = vld [vmem:[%s3155 + $0x14] sm:$0xf]
      %v3162 = vld [vmem:[%s3155 + $0x18] sm:$0xf]
      %v3163 = vld [vmem:[%s3155 + $0x1c] sm:$0xf]
      %v3164 = vld [vmem:[%s3155 + $0x20] sm:$0xf]
      %v3165 = vld [vmem:[%s3155 + $0x24] sm:$0xf]
      %v3166 = vld [vmem:[%s3155 + $0x28] sm:$0xf]
      %v3167 = vld [vmem:[%s3155 + $0x2c] sm:$0xf]
      %v3168 = vld [vmem:[%s3155 + $0x30] sm:$0xf]
      %v3169 = vld [vmem:[%s3155 + $0x34] sm:$0xf]
      %v3170 = vld [vmem:[%s3155 + $0x38] sm:$0xf]
      %v3171 = vld [vmem:[%s3155 + $0x3c] sm:$0xf]
      %v3188 = vunpack.c.l.b16 %v3156
      %v3189 = vunpack.c.l.b16 %v3157
      %v3190 = vunpack.c.l.b16 %v3158
      %v3191 = vunpack.c.l.b16 %v3159
      %v3192 = vunpack.c.l.b16 %v3160
      %v3193 = vunpack.c.l.b16 %v3161
      %v3194 = vunpack.c.l.b16 %v3162
      %v3195 = vunpack.c.l.b16 %v3163
      %v3196 = vunpack.c.l.b16 %v3164
      %v3197 = vunpack.c.l.b16 %v3165
      %v3198 = vunpack.c.l.b16 %v3166
      %v3199 = vunpack.c.l.b16 %v3167
      %v3200 = vunpack.c.l.b16 %v3168
      %v3201 = vunpack.c.l.b16 %v3169
      %v3202 = vunpack.c.l.b16 %v3170
      %v3203 = vunpack.c.l.b16 %v3171
      %v3204 = vpack.c.b16 %v3189, %v3188
      %v3205 = vpack.c.b16 %v3191, %v3190
      %v3206 = vpack.c.b16 %v3193, %v3192
      %v3207 = vpack.c.b16 %v3195, %v3194
      %v3208 = vpack.c.b16 %v3197, %v3196
      %v3209 = vpack.c.b16 %v3199, %v3198
      %v3210 = vpack.c.b16 %v3201, %v3200
      %v3211 = vpack.c.b16 %v3203, %v3202
      %3220 = vmatpush.bf16.msra.mxu0 %v3211
      %3221 = vmatpush.bf16.msra.mxu0 %v3210
      %3222 = vmatpush.bf16.msra.mxu0 %v3209
      %3223 = vmatpush.bf16.msra.mxu0 %v3208
      %3224 = vmatpush.bf16.msra.mxu0 %v3207
      %3225 = vmatpush.bf16.msra.mxu0 %v3206
      %3226 = vmatpush.bf16.msra.mxu0 %v3205
      %3227 = vmatpush.bf16.msra.mxu0 %v3204
      %3228 = vmatmul.bf16.gmra.mxu0 %v3154
      %v3229 = vpop.f32.mrf.mxu0
      %v3230 = vadd.f32 0.0, %v3229
      %v3231 = vpop.f32.mrf.mxu0
      %3232 = vdwg.mxu0
      %v3233 = vadd.f32 %v3151, %v3230
      %v3234 = vpack.c.bf16 %v2995, %v2995
      %s3235 = scalar_lea.vmem %s5, 192
      %v3236 = vld [vmem:[%s3235] sm:$0xf]
      %v3237 = vld [vmem:[%s3235 + $0x4] sm:$0xf]
      %v3238 = vld [vmem:[%s3235 + $0x8] sm:$0xf]
      %v3239 = vld [vmem:[%s3235 + $0xc] sm:$0xf]
      %v3240 = vld [vmem:[%s3235 + $0x10] sm:$0xf]
      %v3241 = vld [vmem:[%s3235 + $0x14] sm:$0xf]
      %v3242 = vld [vmem:[%s3235 + $0x18] sm:$0xf]
      %v3243 = vld [vmem:[%s3235 + $0x1c] sm:$0xf]
      %v3244 = vld [vmem:[%s3235 + $0x20] sm:$0xf]
      %v3245 = vld [vmem:[%s3235 + $0x24] sm:$0xf]
      %v3246 = vld [vmem:[%s3235 + $0x28] sm:$0xf]
      %v3247 = vld [vmem:[%s3235 + $0x2c] sm:$0xf]
      %v3248 = vld [vmem:[%s3235 + $0x30] sm:$0xf]
      %v3249 = vld [vmem:[%s3235 + $0x34] sm:$0xf]
      %v3250 = vld [vmem:[%s3235 + $0x38] sm:$0xf]
      %v3251 = vld [vmem:[%s3235 + $0x3c] sm:$0xf]
      %v3268 = vunpack.c.l.b16 %v3236
      %v3269 = vunpack.c.l.b16 %v3237
      %v3270 = vunpack.c.l.b16 %v3238
      %v3271 = vunpack.c.l.b16 %v3239
      %v3272 = vunpack.c.l.b16 %v3240
      %v3273 = vunpack.c.l.b16 %v3241
      %v3274 = vunpack.c.l.b16 %v3242
      %v3275 = vunpack.c.l.b16 %v3243
      %v3276 = vunpack.c.l.b16 %v3244
      %v3277 = vunpack.c.l.b16 %v3245
      %v3278 = vunpack.c.l.b16 %v3246
      %v3279 = vunpack.c.l.b16 %v3247
      %v3280 = vunpack.c.l.b16 %v3248
      %v3281 = vunpack.c.l.b16 %v3249
      %v3282 = vunpack.c.l.b16 %v3250
      %v3283 = vunpack.c.l.b16 %v3251
      %v3284 = vpack.c.b16 %v3269, %v3268
      %v3285 = vpack.c.b16 %v3271, %v3270
      %v3286 = vpack.c.b16 %v3273, %v3272
      %v3287 = vpack.c.b16 %v3275, %v3274
      %v3288 = vpack.c.b16 %v3277, %v3276
      %v3289 = vpack.c.b16 %v3279, %v3278
      %v3290 = vpack.c.b16 %v3281, %v3280
      %v3291 = vpack.c.b16 %v3283, %v3282
      %3300 = vmatpush.bf16.msra.mxu0 %v3291
      %3301 = vmatpush.bf16.msra.mxu0 %v3290
      %3302 = vmatpush.bf16.msra.mxu0 %v3289
      %3303 = vmatpush.bf16.msra.mxu0 %v3288
      %3304 = vmatpush.bf16.msra.mxu0 %v3287
      %3305 = vmatpush.bf16.msra.mxu0 %v3286
      %3306 = vmatpush.bf16.msra.mxu0 %v3285
      %3307 = vmatpush.bf16.msra.mxu0 %v3284
      %3308 = vmatmul.bf16.gmra.mxu0 %v3234
      %v3309 = vpop.f32.mrf.mxu0
      %v3310 = vadd.f32 0.0, %v3309
      %v3311 = vpop.f32.mrf.mxu0
      %3312 = vdwg.mxu0
      %v3313 = vadd.f32 %v3233, %v3310
      %v3314 = vpack.c.bf16 %v2996, %v2996
      %s3315 = scalar_lea.vmem %s5, 256
      %v3316 = vld [vmem:[%s3315] sm:$0xf]
      %v3317 = vld [vmem:[%s3315 + $0x4] sm:$0xf]
      %v3318 = vld [vmem:[%s3315 + $0x8] sm:$0xf]
      %v3319 = vld [vmem:[%s3315 + $0xc] sm:$0xf]
      %v3320 = vld [vmem:[%s3315 + $0x10] sm:$0xf]
      %v3321 = vld [vmem:[%s3315 + $0x14] sm:$0xf]
      %v3322 = vld [vmem:[%s3315 + $0x18] sm:$0xf]
      %v3323 = vld [vmem:[%s3315 + $0x1c] sm:$0xf]
      %v3324 = vld [vmem:[%s3315 + $0x20] sm:$0xf]
      %v3325 = vld [vmem:[%s3315 + $0x24] sm:$0xf]
      %v3326 = vld [vmem:[%s3315 + $0x28] sm:$0xf]
      %v3327 = vld [vmem:[%s3315 + $0x2c] sm:$0xf]
      %v3328 = vld [vmem:[%s3315 + $0x30] sm:$0xf]
      %v3329 = vld [vmem:[%s3315 + $0x34] sm:$0xf]
      %v3330 = vld [vmem:[%s3315 + $0x38] sm:$0xf]
      %v3331 = vld [vmem:[%s3315 + $0x3c] sm:$0xf]
      %v3348 = vunpack.c.l.b16 %v3316
      %v3349 = vunpack.c.l.b16 %v3317
      %v3350 = vunpack.c.l.b16 %v3318
      %v3351 = vunpack.c.l.b16 %v3319
      %v3352 = vunpack.c.l.b16 %v3320
      %v3353 = vunpack.c.l.b16 %v3321
      %v3354 = vunpack.c.l.b16 %v3322
      %v3355 = vunpack.c.l.b16 %v3323
      %v3356 = vunpack.c.l.b16 %v3324
      %v3357 = vunpack.c.l.b16 %v3325
      %v3358 = vunpack.c.l.b16 %v3326
      %v3359 = vunpack.c.l.b16 %v3327
      %v3360 = vunpack.c.l.b16 %v3328
      %v3361 = vunpack.c.l.b16 %v3329
      %v3362 = vunpack.c.l.b16 %v3330
      %v3363 = vunpack.c.l.b16 %v3331
      %v3364 = vpack.c.b16 %v3349, %v3348
      %v3365 = vpack.c.b16 %v3351, %v3350
      %v3366 = vpack.c.b16 %v3353, %v3352
      %v3367 = vpack.c.b16 %v3355, %v3354
      %v3368 = vpack.c.b16 %v3357, %v3356
      %v3369 = vpack.c.b16 %v3359, %v3358
      %v3370 = vpack.c.b16 %v3361, %v3360
      %v3371 = vpack.c.b16 %v3363, %v3362
      %3380 = vmatpush.bf16.msra.mxu0 %v3371
      %3381 = vmatpush.bf16.msra.mxu0 %v3370
      %3382 = vmatpush.bf16.msra.mxu0 %v3369
      %3383 = vmatpush.bf16.msra.mxu0 %v3368
      %3384 = vmatpush.bf16.msra.mxu0 %v3367
      %3385 = vmatpush.bf16.msra.mxu0 %v3366
      %3386 = vmatpush.bf16.msra.mxu0 %v3365
      %3387 = vmatpush.bf16.msra.mxu0 %v3364
      %3388 = vmatmul.bf16.gmra.mxu0 %v3314
      %v3389 = vpop.f32.mrf.mxu0
      %v3390 = vadd.f32 0.0, %v3389
      %v3391 = vpop.f32.mrf.mxu0
      %3392 = vdwg.mxu0
      %v3393 = vadd.f32 %v3313, %v3390
      %v3394 = vld [vmem:[%s6] sm:$0x1]
      %v3396 = vperm.slane %v3394, 0
      %v3398 = vadd.f32 %v3393, %v3396
      %v3399 = vmax.f32 %v3398, 0.0
      %v3400 = vpack.c.bf16 %v3399, %v3399
      %v3401 = vld [vmem:[%s7] sm:$0xff]
      %v3402 = vld [vmem:[%s7 + $0x8] sm:$0xff]
      %v3403 = vld [vmem:[%s7 + $0x10] sm:$0xff]
      %v3404 = vld [vmem:[%s7 + $0x18] sm:$0xff]
      %v3405 = vld [vmem:[%s7 + $0x20] sm:$0xff]
      %v3406 = vld [vmem:[%s7 + $0x28] sm:$0xff]
      %v3407 = vld [vmem:[%s7 + $0x30] sm:$0xff]
      %v3408 = vld [vmem:[%s7 + $0x38] sm:$0xff]
      %v3409 = vld [vmem:[%s7 + $0x40] sm:$0xff]
      %v3410 = vld [vmem:[%s7 + $0x48] sm:$0xff]
      %v3411 = vld [vmem:[%s7 + $0x50] sm:$0xff]
      %v3412 = vld [vmem:[%s7 + $0x58] sm:$0xff]
      %v3413 = vld [vmem:[%s7 + $0x60] sm:$0xff]
      %v3414 = vld [vmem:[%s7 + $0x68] sm:$0xff]
      %v3415 = vld [vmem:[%s7 + $0x70] sm:$0xff]
      %v3416 = vld [vmem:[%s7 + $0x78] sm:$0xff]
      %v3417 = vld [vmem:[%s7 + $0x80] sm:$0xff]
      %v3418 = vld [vmem:[%s7 + $0x88] sm:$0xff]
      %v3419 = vld [vmem:[%s7 + $0x90] sm:$0xff]
      %v3420 = vld [vmem:[%s7 + $0x98] sm:$0xff]
      %v3421 = vld [vmem:[%s7 + $0xa0] sm:$0xff]
      %v3422 = vld [vmem:[%s7 + $0xa8] sm:$0xff]
      %v3423 = vld [vmem:[%s7 + $0xb0] sm:$0xff]
      %v3424 = vld [vmem:[%s7 + $0xb8] sm:$0xff]
      %v3425 = vld [vmem:[%s7 + $0xc0] sm:$0xff]
      %v3426 = vld [vmem:[%s7 + $0xc8] sm:$0xff]
      %v3427 = vld [vmem:[%s7 + $0xd0] sm:$0xff]
      %v3428 = vld [vmem:[%s7 + $0xd8] sm:$0xff]
      %v3429 = vld [vmem:[%s7 + $0xe0] sm:$0xff]
      %v3430 = vld [vmem:[%s7 + $0xe8] sm:$0xff]
      %v3431 = vld [vmem:[%s7 + $0xf0] sm:$0xff]
      %v3432 = vld [vmem:[%s7 + $0xf8] sm:$0xff]
      %v3433 = vld [vmem:[%s8] sm:$0xf]
      %v3435 = vperm.slane %v3433, 0
      %v3436 = vperm.slane %v3433, 1
      %v3437 = vperm.slane %v3433, 2
      %v3438 = vperm.slane %v3433, 3
      %v3475 = vunpack.c.l.b16 %v3401
      %v3476 = vunpack.c.h.b16 %v3401
      %v3477 = vunpack.c.l.b16 %v3402
      %v3478 = vunpack.c.h.b16 %v3402
      %v3479 = vunpack.c.l.b16 %v3403
      %v3480 = vunpack.c.h.b16 %v3403
      %v3481 = vunpack.c.l.b16 %v3404
      %v3482 = vunpack.c.h.b16 %v3404
      %v3483 = vunpack.c.l.b16 %v3405
      %v3484 = vunpack.c.h.b16 %v3405
      %v3485 = vunpack.c.l.b16 %v3406
      %v3486 = vunpack.c.h.b16 %v3406
      %v3487 = vunpack.c.l.b16 %v3407
      %v3488 = vunpack.c.h.b16 %v3407
      %v3489 = vunpack.c.l.b16 %v3408
      %v3490 = vunpack.c.h.b16 %v3408
      %v3491 = vunpack.c.l.b16 %v3409
      %v3492 = vunpack.c.h.b16 %v3409
      %v3493 = vunpack.c.l.b16 %v3410
      %v3494 = vunpack.c.h.b16 %v3410
      %v3495 = vunpack.c.l.b16 %v3411
      %v3496 = vunpack.c.h.b16 %v3411
      %v3497 = vunpack.c.l.b16 %v3412
      %v3498 = vunpack.c.h.b16 %v3412
      %v3499 = vunpack.c.l.b16 %v3413
      %v3500 = vunpack.c.h.b16 %v3413
      %v3501 = vunpack.c.l.b16 %v3414
      %v3502 = vunpack.c.h.b16 %v3414
      %v3503 = vunpack.c.l.b16 %v3415
      %v3504 = vunpack.c.h.b16 %v3415
      %v3505 = vunpack.c.l.b16 %v3416
      %v3506 = vunpack.c.h.b16 %v3416
      %v3507 = vunpack.c.l.b16 %v3417
      %v3508 = vunpack.c.h.b16 %v3417
      %v3509 = vunpack.c.l.b16 %v3418
      %v3510 = vunpack.c.h.b16 %v3418
      %v3511 = vunpack.c.l.b16 %v3419
      %v3512 = vunpack.c.h.b16 %v3419
      %v3513 = vunpack.c.l.b16 %v3420
      %v3514 = vunpack.c.h.b16 %v3420
      %v3515 = vunpack.c.l.b16 %v3421
      %v3516 = vunpack.c.h.b16 %v3421
      %v3517 = vunpack.c.l.b16 %v3422
      %v3518 = vunpack.c.h.b16 %v3422
      %v3519 = vunpack.c.l.b16 %v3423
      %v3520 = vunpack.c.h.b16 %v3423
      %v3521 = vunpack.c.l.b16 %v3424
      %v3522 = vunpack.c.h.b16 %v3424
      %v3523 = vunpack.c.l.b16 %v3425
      %v3524 = vunpack.c.h.b16 %v3425
      %v3525 = vunpack.c.l.b16 %v3426
      %v3526 = vunpack.c.h.b16 %v3426
      %v3527 = vunpack.c.l.b16 %v3427
      %v3528 = vunpack.c.h.b16 %v3427
      %v3529 = vunpack.c.l.b16 %v3428
      %v3530 = vunpack.c.h.b16 %v3428
      %v3531 = vunpack.c.l.b16 %v3429
      %v3532 = vunpack.c.h.b16 %v3429
      %v3533 = vunpack.c.l.b16 %v3430
      %v3534 = vunpack.c.h.b16 %v3430
      %v3535 = vunpack.c.l.b16 %v3431
      %v3536 = vunpack.c.h.b16 %v3431
      %v3537 = vunpack.c.l.b16 %v3432
      %v3538 = vunpack.c.h.b16 %v3432
      %v3539 = vpack.c.b16 %v3479, %v3475
      %v3540 = vpack.c.b16 %v3480, %v3476
      %v3541 = vpack.c.b16 %v3481, %v3477
      %v3542 = vpack.c.b16 %v3482, %v3478
      %v3543 = vpack.c.b16 %v3487, %v3483
      %v3544 = vpack.c.b16 %v3488, %v3484
      %v3545 = vpack.c.b16 %v3489, %v3485
      %v3546 = vpack.c.b16 %v3490, %v3486
      %v3547 = vpack.c.b16 %v3495, %v3491
      %v3548 = vpack.c.b16 %v3496, %v3492
      %v3549 = vpack.c.b16 %v3497, %v3493
      %v3550 = vpack.c.b16 %v3498, %v3494
      %v3551 = vpack.c.b16 %v3503, %v3499
      %v3552 = vpack.c.b16 %v3504, %v3500
      %v3553 = vpack.c.b16 %v3505, %v3501
      %v3554 = vpack.c.b16 %v3506, %v3502
      %v3555 = vpack.c.b16 %v3511, %v3507
      %v3556 = vpack.c.b16 %v3512, %v3508
      %v3557 = vpack.c.b16 %v3513, %v3509
      %v3558 = vpack.c.b16 %v3514, %v3510
      %v3559 = vpack.c.b16 %v3519, %v3515
      %v3560 = vpack.c.b16 %v3520, %v3516
      %v3561 = vpack.c.b16 %v3521, %v3517
      %v3562 = vpack.c.b16 %v3522, %v3518
      %v3563 = vpack.c.b16 %v3527, %v3523
      %v3564 = vpack.c.b16 %v3528, %v3524
      %v3565 = vpack.c.b16 %v3529, %v3525
      %v3566 = vpack.c.b16 %v3530, %v3526
      %v3567 = vpack.c.b16 %v3535, %v3531
      %v3568 = vpack.c.b16 %v3536, %v3532
      %v3569 = vpack.c.b16 %v3537, %v3533
      %v3570 = vpack.c.b16 %v3538, %v3534
      %3603 = vmatpush.bf16.msra.mxu0 %v3567
      %3604 = vmatpush.bf16.msra.mxu0 %v3563
      %3605 = vmatpush.bf16.msra.mxu0 %v3559
      %3606 = vmatpush.bf16.msra.mxu0 %v3555
      %3607 = vmatpush.bf16.msra.mxu0 %v3551
      %3608 = vmatpush.bf16.msra.mxu0 %v3547
      %3609 = vmatpush.bf16.msra.mxu0 %v3543
      %3610 = vmatpush.bf16.msra.mxu0 %v3539
      %3611 = vmatmul.bf16.gmra.mxu0 %v3400
      %v3612 = vpop.f32.mrf.mxu0
      %v3613 = vadd.f32 %v3435, %v3612
      %v3614 = vpop.f32.mrf.mxu0
      %3615 = vdwg.mxu0
      %3616 = vmatpush.bf16.msra.mxu0 %v3568
      %3617 = vmatpush.bf16.msra.mxu0 %v3564
      %3618 = vmatpush.bf16.msra.mxu0 %v3560
      %3619 = vmatpush.bf16.msra.mxu0 %v3556
      %3620 = vmatpush.bf16.msra.mxu0 %v3552
      %3621 = vmatpush.bf16.msra.mxu0 %v3548
      %3622 = vmatpush.bf16.msra.mxu0 %v3544
      %3623 = vmatpush.bf16.msra.mxu0 %v3540
      %3624 = vmatmul.bf16.gmra.mxu0 %v3400
      %v3625 = vpop.f32.mrf.mxu0
      %v3626 = vadd.f32 %v3436, %v3625
      %v3627 = vpop.f32.mrf.mxu0
      %3628 = vdwg.mxu0
      %3629 = vmatpush.bf16.msra.mxu0 %v3569
      %3630 = vmatpush.bf16.msra.mxu0 %v3565
      %3631 = vmatpush.bf16.msra.mxu0 %v3561
      %3632 = vmatpush.bf16.msra.mxu0 %v3557
      %3633 = vmatpush.bf16.msra.mxu0 %v3553
      %3634 = vmatpush.bf16.msra.mxu0 %v3549
      %3635 = vmatpush.bf16.msra.mxu0 %v3545
      %3636 = vmatpush.bf16.msra.mxu0 %v3541
      %3637 = vmatmul.bf16.gmra.mxu0 %v3400
      %v3638 = vpop.f32.mrf.mxu0
      %v3639 = vadd.f32 %v3437, %v3638
      %v3640 = vpop.f32.mrf.mxu0
      %3641 = vdwg.mxu0
      %3642 = vmatpush.bf16.msra.mxu0 %v3570
      %3643 = vmatpush.bf16.msra.mxu0 %v3566
      %3644 = vmatpush.bf16.msra.mxu0 %v3562
      %3645 = vmatpush.bf16.msra.mxu0 %v3558
      %3646 = vmatpush.bf16.msra.mxu0 %v3554
      %3647 = vmatpush.bf16.msra.mxu0 %v3550
      %3648 = vmatpush.bf16.msra.mxu0 %v3546
      %3649 = vmatpush.bf16.msra.mxu0 %v3542
      %3650 = vmatmul.bf16.gmra.mxu0 %v3400
      %v3651 = vpop.f32.mrf.mxu0
      %v3652 = vadd.f32 %v3438, %v3651
      %v3653 = vpop.f32.mrf.mxu0
      %3654 = vdwg.mxu0
      %v3655 = vmax.f32 %v3613, 0.0
      %v3656 = vmax.f32 %v3626, 0.0
      %v3657 = vmax.f32 %v3639, 0.0
      %v3658 = vmax.f32 %v3652, 0.0
      %3659 = vst [vmem:[%s567] sm:$0xff] %v3655
      %3660 = vst [vmem:[%s567 + $0x8] sm:$0xff] %v3656
      %3661 = vst [vmem:[%s567 + $0x10] sm:$0xff] %v3657
      %3662 = vst [vmem:[%s567 + $0x18] sm:$0xff] %v3658
      %v3663 = vpack.c.bf16 %v3655, %v3655
      %v3664 = vpack.c.bf16 %v3656, %v3656
      %v3665 = vpack.c.bf16 %v3657, %v3657
      %v3666 = vpack.c.bf16 %v3658, %v3658
      %v3667 = vld [vmem:[%s9] sm:$0xff]
      %v3668 = vld [vmem:[%s9 + $0x8] sm:$0xff]
      %v3669 = vld [vmem:[%s9 + $0x10] sm:$0xff]
      %v3670 = vld [vmem:[%s9 + $0x18] sm:$0xff]
      %v3671 = vld [vmem:[%s9 + $0x20] sm:$0xff]
      %v3672 = vld [vmem:[%s9 + $0x28] sm:$0xff]
      %v3673 = vld [vmem:[%s9 + $0x30] sm:$0xff]
      %v3674 = vld [vmem:[%s9 + $0x38] sm:$0xff]
      %v3675 = vld [vmem:[%s9 + $0x40] sm:$0xff]
      %v3676 = vld [vmem:[%s9 + $0x48] sm:$0xff]
      %v3677 = vld [vmem:[%s9 + $0x50] sm:$0xff]
      %v3678 = vld [vmem:[%s9 + $0x58] sm:$0xff]
      %v3679 = vld [vmem:[%s9 + $0x60] sm:$0xff]
      %v3680 = vld [vmem:[%s9 + $0x68] sm:$0xff]
      %v3681 = vld [vmem:[%s9 + $0x70] sm:$0xff]
      %v3682 = vld [vmem:[%s9 + $0x78] sm:$0xff]
      %v3683 = vld [vmem:[%s9 + $0x80] sm:$0xff]
      %v3684 = vld [vmem:[%s9 + $0x88] sm:$0xff]
      %v3685 = vld [vmem:[%s9 + $0x90] sm:$0xff]
      %v3686 = vld [vmem:[%s9 + $0x98] sm:$0xff]
      %v3687 = vld [vmem:[%s9 + $0xa0] sm:$0xff]
      %v3688 = vld [vmem:[%s9 + $0xa8] sm:$0xff]
      %v3689 = vld [vmem:[%s9 + $0xb0] sm:$0xff]
      %v3690 = vld [vmem:[%s9 + $0xb8] sm:$0xff]
      %v3691 = vld [vmem:[%s9 + $0xc0] sm:$0xff]
      %v3692 = vld [vmem:[%s9 + $0xc8] sm:$0xff]
      %v3693 = vld [vmem:[%s9 + $0xd0] sm:$0xff]
      %v3694 = vld [vmem:[%s9 + $0xd8] sm:$0xff]
      %v3695 = vld [vmem:[%s9 + $0xe0] sm:$0xff]
      %v3696 = vld [vmem:[%s9 + $0xe8] sm:$0xff]
      %v3697 = vld [vmem:[%s9 + $0xf0] sm:$0xff]
      %v3698 = vld [vmem:[%s9 + $0xf8] sm:$0xff]
      %v3699 = vld [vmem:[%s9 + $0x100] sm:$0xff]
      %v3700 = vld [vmem:[%s9 + $0x108] sm:$0xff]
      %v3701 = vld [vmem:[%s9 + $0x110] sm:$0xff]
      %v3702 = vld [vmem:[%s9 + $0x118] sm:$0xff]
      %v3703 = vld [vmem:[%s9 + $0x120] sm:$0xff]
      %v3704 = vld [vmem:[%s9 + $0x128] sm:$0xff]
      %v3705 = vld [vmem:[%s9 + $0x130] sm:$0xff]
      %v3706 = vld [vmem:[%s9 + $0x138] sm:$0xff]
      %v3707 = vld [vmem:[%s9 + $0x140] sm:$0xff]
      %v3708 = vld [vmem:[%s9 + $0x148] sm:$0xff]
      %v3709 = vld [vmem:[%s9 + $0x150] sm:$0xff]
      %v3710 = vld [vmem:[%s9 + $0x158] sm:$0xff]
      %v3711 = vld [vmem:[%s9 + $0x160] sm:$0xff]
      %v3712 = vld [vmem:[%s9 + $0x168] sm:$0xff]
      %v3713 = vld [vmem:[%s9 + $0x170] sm:$0xff]
      %v3714 = vld [vmem:[%s9 + $0x178] sm:$0xff]
      %v3715 = vld [vmem:[%s9 + $0x180] sm:$0xff]
      %v3716 = vld [vmem:[%s9 + $0x188] sm:$0xff]
      %v3717 = vld [vmem:[%s9 + $0x190] sm:$0xff]
      %v3718 = vld [vmem:[%s9 + $0x198] sm:$0xff]
      %v3719 = vld [vmem:[%s9 + $0x1a0] sm:$0xff]
      %v3720 = vld [vmem:[%s9 + $0x1a8] sm:$0xff]
      %v3721 = vld [vmem:[%s9 + $0x1b0] sm:$0xff]
      %v3722 = vld [vmem:[%s9 + $0x1b8] sm:$0xff]
      %v3723 = vld [vmem:[%s9 + $0x1c0] sm:$0xff]
      %v3724 = vld [vmem:[%s9 + $0x1c8] sm:$0xff]
      %v3725 = vld [vmem:[%s9 + $0x1d0] sm:$0xff]
      %v3726 = vld [vmem:[%s9 + $0x1d8] sm:$0xff]
      %v3727 = vld [vmem:[%s9 + $0x1e0] sm:$0xff]
      %v3728 = vld [vmem:[%s9 + $0x1e8] sm:$0xff]
      %v3729 = vld [vmem:[%s9 + $0x1f0] sm:$0xff]
      %v3730 = vld [vmem:[%s9 + $0x1f8] sm:$0xff]
      %v3731 = vld [vmem:[%s10] sm:$0x3]
      %v3733 = vperm.slane %v3731, 0
      %v3734 = vperm.slane %v3731, 1
      %v3801 = vunpack.c.l.b16 %v3667
      %v3802 = vunpack.c.h.b16 %v3667
      %v3803 = vunpack.c.l.b16 %v3668
      %v3804 = vunpack.c.h.b16 %v3668
      %v3805 = vunpack.c.l.b16 %v3669
      %v3806 = vunpack.c.h.b16 %v3669
      %v3807 = vunpack.c.l.b16 %v3670
      %v3808 = vunpack.c.h.b16 %v3670
      %v3809 = vunpack.c.l.b16 %v3671
      %v3810 = vunpack.c.h.b16 %v3671
      %v3811 = vunpack.c.l.b16 %v3672
      %v3812 = vunpack.c.h.b16 %v3672
      %v3813 = vunpack.c.l.b16 %v3673
      %v3814 = vunpack.c.h.b16 %v3673
      %v3815 = vunpack.c.l.b16 %v3674
      %v3816 = vunpack.c.h.b16 %v3674
      %v3817 = vunpack.c.l.b16 %v3675
      %v3818 = vunpack.c.h.b16 %v3675
      %v3819 = vunpack.c.l.b16 %v3676
      %v3820 = vunpack.c.h.b16 %v3676
      %v3821 = vunpack.c.l.b16 %v3677
      %v3822 = vunpack.c.h.b16 %v3677
      %v3823 = vunpack.c.l.b16 %v3678
      %v3824 = vunpack.c.h.b16 %v3678
      %v3825 = vunpack.c.l.b16 %v3679
      %v3826 = vunpack.c.h.b16 %v3679
      %v3827 = vunpack.c.l.b16 %v3680
      %v3828 = vunpack.c.h.b16 %v3680
      %v3829 = vunpack.c.l.b16 %v3681
      %v3830 = vunpack.c.h.b16 %v3681
      %v3831 = vunpack.c.l.b16 %v3682
      %v3832 = vunpack.c.h.b16 %v3682
      %v3833 = vunpack.c.l.b16 %v3683
      %v3834 = vunpack.c.h.b16 %v3683
      %v3835 = vunpack.c.l.b16 %v3684
      %v3836 = vunpack.c.h.b16 %v3684
      %v3837 = vunpack.c.l.b16 %v3685
      %v3838 = vunpack.c.h.b16 %v3685
      %v3839 = vunpack.c.l.b16 %v3686
      %v3840 = vunpack.c.h.b16 %v3686
      %v3841 = vunpack.c.l.b16 %v3687
      %v3842 = vunpack.c.h.b16 %v3687
      %v3843 = vunpack.c.l.b16 %v3688
      %v3844 = vunpack.c.h.b16 %v3688
      %v3845 = vunpack.c.l.b16 %v3689
      %v3846 = vunpack.c.h.b16 %v3689
      %v3847 = vunpack.c.l.b16 %v3690
      %v3848 = vunpack.c.h.b16 %v3690
      %v3849 = vunpack.c.l.b16 %v3691
      %v3850 = vunpack.c.h.b16 %v3691
      %v3851 = vunpack.c.l.b16 %v3692
      %v3852 = vunpack.c.h.b16 %v3692
      %v3853 = vunpack.c.l.b16 %v3693
      %v3854 = vunpack.c.h.b16 %v3693
      %v3855 = vunpack.c.l.b16 %v3694
      %v3856 = vunpack.c.h.b16 %v3694
      %v3857 = vunpack.c.l.b16 %v3695
      %v3858 = vunpack.c.h.b16 %v3695
      %v3859 = vunpack.c.l.b16 %v3696
      %v3860 = vunpack.c.h.b16 %v3696
      %v3861 = vunpack.c.l.b16 %v3697
      %v3862 = vunpack.c.h.b16 %v3697
      %v3863 = vunpack.c.l.b16 %v3698
      %v3864 = vunpack.c.h.b16 %v3698
      %v3865 = vunpack.c.l.b16 %v3699
      %v3866 = vunpack.c.h.b16 %v3699
      %v3867 = vunpack.c.l.b16 %v3700
      %v3868 = vunpack.c.h.b16 %v3700
      %v3869 = vunpack.c.l.b16 %v3701
      %v3870 = vunpack.c.h.b16 %v3701
      %v3871 = vunpack.c.l.b16 %v3702
      %v3872 = vunpack.c.h.b16 %v3702
      %v3873 = vunpack.c.l.b16 %v3703
      %v3874 = vunpack.c.h.b16 %v3703
      %v3875 = vunpack.c.l.b16 %v3704
      %v3876 = vunpack.c.h.b16 %v3704
      %v3877 = vunpack.c.l.b16 %v3705
      %v3878 = vunpack.c.h.b16 %v3705
      %v3879 = vunpack.c.l.b16 %v3706
      %v3880 = vunpack.c.h.b16 %v3706
      %v3881 = vunpack.c.l.b16 %v3707
      %v3882 = vunpack.c.h.b16 %v3707
      %v3883 = vunpack.c.l.b16 %v3708
      %v3884 = vunpack.c.h.b16 %v3708
      %v3885 = vunpack.c.l.b16 %v3709
      %v3886 = vunpack.c.h.b16 %v3709
      %v3887 = vunpack.c.l.b16 %v3710
      %v3888 = vunpack.c.h.b16 %v3710
      %v3889 = vunpack.c.l.b16 %v3711
      %v3890 = vunpack.c.h.b16 %v3711
      %v3891 = vunpack.c.l.b16 %v3712
      %v3892 = vunpack.c.h.b16 %v3712
      %v3893 = vunpack.c.l.b16 %v3713
      %v3894 = vunpack.c.h.b16 %v3713
      %v3895 = vunpack.c.l.b16 %v3714
      %v3896 = vunpack.c.h.b16 %v3714
      %v3897 = vunpack.c.l.b16 %v3715
      %v3898 = vunpack.c.h.b16 %v3715
      %v3899 = vunpack.c.l.b16 %v3716
      %v3900 = vunpack.c.h.b16 %v3716
      %v3901 = vunpack.c.l.b16 %v3717
      %v3902 = vunpack.c.h.b16 %v3717
      %v3903 = vunpack.c.l.b16 %v3718
      %v3904 = vunpack.c.h.b16 %v3718
      %v3905 = vunpack.c.l.b16 %v3719
      %v3906 = vunpack.c.h.b16 %v3719
      %v3907 = vunpack.c.l.b16 %v3720
      %v3908 = vunpack.c.h.b16 %v3720
      %v3909 = vunpack.c.l.b16 %v3721
      %v3910 = vunpack.c.h.b16 %v3721
      %v3911 = vunpack.c.l.b16 %v3722
      %v3912 = vunpack.c.h.b16 %v3722
      %v3913 = vunpack.c.l.b16 %v3723
      %v3914 = vunpack.c.h.b16 %v3723
      %v3915 = vunpack.c.l.b16 %v3724
      %v3916 = vunpack.c.h.b16 %v3724
      %v3917 = vunpack.c.l.b16 %v3725
      %v3918 = vunpack.c.h.b16 %v3725
      %v3919 = vunpack.c.l.b16 %v3726
      %v3920 = vunpack.c.h.b16 %v3726
      %v3921 = vunpack.c.l.b16 %v3727
      %v3922 = vunpack.c.h.b16 %v3727
      %v3923 = vunpack.c.l.b16 %v3728
      %v3924 = vunpack.c.h.b16 %v3728
      %v3925 = vunpack.c.l.b16 %v3729
      %v3926 = vunpack.c.h.b16 %v3729
      %v3927 = vunpack.c.l.b16 %v3730
      %v3928 = vunpack.c.h.b16 %v3730
      %v3929 = vpack.c.b16 %v3803, %v3801
      %v3930 = vpack.c.b16 %v3804, %v3802
      %v3931 = vpack.c.b16 %v3807, %v3805
      %v3932 = vpack.c.b16 %v3808, %v3806
      %v3933 = vpack.c.b16 %v3811, %v3809
      %v3934 = vpack.c.b16 %v3812, %v3810
      %v3935 = vpack.c.b16 %v3815, %v3813
      %v3936 = vpack.c.b16 %v3816, %v3814
      %v3937 = vpack.c.b16 %v3819, %v3817
      %v3938 = vpack.c.b16 %v3820, %v3818
      %v3939 = vpack.c.b16 %v3823, %v3821
      %v3940 = vpack.c.b16 %v3824, %v3822
      %v3941 = vpack.c.b16 %v3827, %v3825
      %v3942 = vpack.c.b16 %v3828, %v3826
      %v3943 = vpack.c.b16 %v3831, %v3829
      %v3944 = vpack.c.b16 %v3832, %v3830
      %v3945 = vpack.c.b16 %v3835, %v3833
      %v3946 = vpack.c.b16 %v3836, %v3834
      %v3947 = vpack.c.b16 %v3839, %v3837
      %v3948 = vpack.c.b16 %v3840, %v3838
      %v3949 = vpack.c.b16 %v3843, %v3841
      %v3950 = vpack.c.b16 %v3844, %v3842
      %v3951 = vpack.c.b16 %v3847, %v3845
      %v3952 = vpack.c.b16 %v3848, %v3846
      %v3953 = vpack.c.b16 %v3851, %v3849
      %v3954 = vpack.c.b16 %v3852, %v3850
      %v3955 = vpack.c.b16 %v3855, %v3853
      %v3956 = vpack.c.b16 %v3856, %v3854
      %v3957 = vpack.c.b16 %v3859, %v3857
      %v3958 = vpack.c.b16 %v3860, %v3858
      %v3959 = vpack.c.b16 %v3863, %v3861
      %v3960 = vpack.c.b16 %v3864, %v3862
      %v3961 = vpack.c.b16 %v3867, %v3865
      %v3962 = vpack.c.b16 %v3868, %v3866
      %v3963 = vpack.c.b16 %v3871, %v3869
      %v3964 = vpack.c.b16 %v3872, %v3870
      %v3965 = vpack.c.b16 %v3875, %v3873
      %v3966 = vpack.c.b16 %v3876, %v3874
      %v3967 = vpack.c.b16 %v3879, %v3877
      %v3968 = vpack.c.b16 %v3880, %v3878
      %v3969 = vpack.c.b16 %v3883, %v3881
      %v3970 = vpack.c.b16 %v3884, %v3882
      %v3971 = vpack.c.b16 %v3887, %v3885
      %v3972 = vpack.c.b16 %v3888, %v3886
      %v3973 = vpack.c.b16 %v3891, %v3889
      %v3974 = vpack.c.b16 %v3892, %v3890
      %v3975 = vpack.c.b16 %v3895, %v3893
      %v3976 = vpack.c.b16 %v3896, %v3894
      %v3977 = vpack.c.b16 %v3899, %v3897
      %v3978 = vpack.c.b16 %v3900, %v3898
      %v3979 = vpack.c.b16 %v3903, %v3901
      %v3980 = vpack.c.b16 %v3904, %v3902
      %v3981 = vpack.c.b16 %v3907, %v3905
      %v3982 = vpack.c.b16 %v3908, %v3906
      %v3983 = vpack.c.b16 %v3911, %v3909
      %v3984 = vpack.c.b16 %v3912, %v3910
      %v3985 = vpack.c.b16 %v3915, %v3913
      %v3986 = vpack.c.b16 %v3916, %v3914
      %v3987 = vpack.c.b16 %v3919, %v3917
      %v3988 = vpack.c.b16 %v3920, %v3918
      %v3989 = vpack.c.b16 %v3923, %v3921
      %v3990 = vpack.c.b16 %v3924, %v3922
      %v3991 = vpack.c.b16 %v3927, %v3925
      %v3992 = vpack.c.b16 %v3928, %v3926
      %4057 = vmatpush.bf16.msra.mxu0 %v3943
      %4058 = vmatpush.bf16.msra.mxu0 %v3941
      %4059 = vmatpush.bf16.msra.mxu0 %v3939
      %4060 = vmatpush.bf16.msra.mxu0 %v3937
      %4061 = vmatpush.bf16.msra.mxu0 %v3935
      %4062 = vmatpush.bf16.msra.mxu0 %v3933
      %4063 = vmatpush.bf16.msra.mxu0 %v3931
      %4064 = vmatpush.bf16.msra.mxu0 %v3929
      %4065 = vmatmul.bf16.gmra.mxu0 %v3663
      %v4066 = vpop.f32.mrf.mxu0
      %v4067 = vadd.f32 %v3733, %v4066
      %v4068 = vpop.f32.mrf.mxu0
      %4069 = vdwg.mxu0
      %4070 = vmatpush.bf16.msra.mxu0 %v3959
      %4071 = vmatpush.bf16.msra.mxu0 %v3957
      %4072 = vmatpush.bf16.msra.mxu0 %v3955
      %4073 = vmatpush.bf16.msra.mxu0 %v3953
      %4074 = vmatpush.bf16.msra.mxu0 %v3951
      %4075 = vmatpush.bf16.msra.mxu0 %v3949
      %4076 = vmatpush.bf16.msra.mxu0 %v3947
      %4077 = vmatpush.bf16.msra.mxu0 %v3945
      %4078 = vmatmul.bf16.gmra.mxu0 %v3664
      %v4079 = vpop.f32.mrf.mxu0
      %v4080 = vadd.f32 %v4067, %v4079
      %v4081 = vpop.f32.mrf.mxu0
      %4082 = vdwg.mxu0
      %4083 = vmatpush.bf16.msra.mxu0 %v3975
      %4084 = vmatpush.bf16.msra.mxu0 %v3973
      %4085 = vmatpush.bf16.msra.mxu0 %v3971
      %4086 = vmatpush.bf16.msra.mxu0 %v3969
      %4087 = vmatpush.bf16.msra.mxu0 %v3967
      %4088 = vmatpush.bf16.msra.mxu0 %v3965
      %4089 = vmatpush.bf16.msra.mxu0 %v3963
      %4090 = vmatpush.bf16.msra.mxu0 %v3961
      %4091 = vmatmul.bf16.gmra.mxu0 %v3665
      %v4092 = vpop.f32.mrf.mxu0
      %v4093 = vadd.f32 %v4080, %v4092
      %v4094 = vpop.f32.mrf.mxu0
      %4095 = vdwg.mxu0
      %4096 = vmatpush.bf16.msra.mxu0 %v3991
      %4097 = vmatpush.bf16.msra.mxu0 %v3989
      %4098 = vmatpush.bf16.msra.mxu0 %v3987
      %4099 = vmatpush.bf16.msra.mxu0 %v3985
      %4100 = vmatpush.bf16.msra.mxu0 %v3983
      %4101 = vmatpush.bf16.msra.mxu0 %v3981
      %4102 = vmatpush.bf16.msra.mxu0 %v3979
      %4103 = vmatpush.bf16.msra.mxu0 %v3977
      %4104 = vmatmul.bf16.gmra.mxu0 %v3666
      %v4105 = vpop.f32.mrf.mxu0
      %v4106 = vadd.f32 %v4093, %v4105
      %v4107 = vpop.f32.mrf.mxu0
      %4108 = vdwg.mxu0
      %4109 = vmatpush.bf16.msra.mxu0 %v3944
      %4110 = vmatpush.bf16.msra.mxu0 %v3942
      %4111 = vmatpush.bf16.msra.mxu0 %v3940
      %4112 = vmatpush.bf16.msra.mxu0 %v3938
      %4113 = vmatpush.bf16.msra.mxu0 %v3936
      %4114 = vmatpush.bf16.msra.mxu0 %v3934
      %4115 = vmatpush.bf16.msra.mxu0 %v3932
      %4116 = vmatpush.bf16.msra.mxu0 %v3930
      %4117 = vmatmul.bf16.gmra.mxu0 %v3663
      %v4118 = vpop.f32.mrf.mxu0
      %v4119 = vadd.f32 %v3734, %v4118
      %v4120 = vpop.f32.mrf.mxu0
      %4121 = vdwg.mxu0
      %4122 = vmatpush.bf16.msra.mxu0 %v3960
      %4123 = vmatpush.bf16.msra.mxu0 %v3958
      %4124 = vmatpush.bf16.msra.mxu0 %v3956
      %4125 = vmatpush.bf16.msra.mxu0 %v3954
      %4126 = vmatpush.bf16.msra.mxu0 %v3952
      %4127 = vmatpush.bf16.msra.mxu0 %v3950
      %4128 = vmatpush.bf16.msra.mxu0 %v3948
      %4129 = vmatpush.bf16.msra.mxu0 %v3946
      %4130 = vmatmul.bf16.gmra.mxu0 %v3664
      %v4131 = vpop.f32.mrf.mxu0
      %v4132 = vadd.f32 %v4119, %v4131
      %v4133 = vpop.f32.mrf.mxu0
      %4134 = vdwg.mxu0
      %4135 = vmatpush.bf16.msra.mxu0 %v3976
      %4136 = vmatpush.bf16.msra.mxu0 %v3974
      %4137 = vmatpush.bf16.msra.mxu0 %v3972
      %4138 = vmatpush.bf16.msra.mxu0 %v3970
      %4139 = vmatpush.bf16.msra.mxu0 %v3968
      %4140 = vmatpush.bf16.msra.mxu0 %v3966
      %4141 = vmatpush.bf16.msra.mxu0 %v3964
      %4142 = vmatpush.bf16.msra.mxu0 %v3962
      %4143 = vmatmul.bf16.gmra.mxu0 %v3665
      %v4144 = vpop.f32.mrf.mxu0
      %v4145 = vadd.f32 %v4132, %v4144
      %v4146 = vpop.f32.mrf.mxu0
      %4147 = vdwg.mxu0
      %4148 = vmatpush.bf16.msra.mxu0 %v3992
      %4149 = vmatpush.bf16.msra.mxu0 %v3990
      %4150 = vmatpush.bf16.msra.mxu0 %v3988
      %4151 = vmatpush.bf16.msra.mxu0 %v3986
      %4152 = vmatpush.bf16.msra.mxu0 %v3984
      %4153 = vmatpush.bf16.msra.mxu0 %v3982
      %4154 = vmatpush.bf16.msra.mxu0 %v3980
      %4155 = vmatpush.bf16.msra.mxu0 %v3978
      %4156 = vmatmul.bf16.gmra.mxu0 %v3666
      %v4157 = vpop.f32.mrf.mxu0
      %v4158 = vadd.f32 %v4145, %v4157
      %v4159 = vpop.f32.mrf.mxu0
      %4160 = vdwg.mxu0
      %v4161 = vmax.f32 %v4106, 0.0
      %v4162 = vmax.f32 %v4158, 0.0
      %v4163 = vpack.c.bf16 %v4161, %v4161
      %v4164 = vpack.c.bf16 %v4162, %v4162
      %v4165 = vld [vmem:[%s11] sm:$0xff]
      %v4166 = vld [vmem:[%s11 + $0x8] sm:$0xff]
      %v4167 = vld [vmem:[%s11 + $0x10] sm:$0xff]
      %v4168 = vld [vmem:[%s11 + $0x18] sm:$0xff]
      %v4169 = vld [vmem:[%s11 + $0x20] sm:$0xff]
      %v4170 = vld [vmem:[%s11 + $0x28] sm:$0xff]
      %v4171 = vld [vmem:[%s11 + $0x30] sm:$0xff]
      %v4172 = vld [vmem:[%s11 + $0x38] sm:$0xff]
      %v4173 = vld [vmem:[%s11 + $0x40] sm:$0xff]
      %v4174 = vld [vmem:[%s11 + $0x48] sm:$0xff]
      %v4175 = vld [vmem:[%s11 + $0x50] sm:$0xff]
      %v4176 = vld [vmem:[%s11 + $0x58] sm:$0xff]
      %v4177 = vld [vmem:[%s11 + $0x60] sm:$0xff]
      %v4178 = vld [vmem:[%s11 + $0x68] sm:$0xff]
      %v4179 = vld [vmem:[%s11 + $0x70] sm:$0xff]
      %v4180 = vld [vmem:[%s11 + $0x78] sm:$0xff]
      %v4181 = vld [vmem:[%s11 + $0x80] sm:$0xff]
      %v4182 = vld [vmem:[%s11 + $0x88] sm:$0xff]
      %v4183 = vld [vmem:[%s11 + $0x90] sm:$0xff]
      %v4184 = vld [vmem:[%s11 + $0x98] sm:$0xff]
      %v4185 = vld [vmem:[%s11 + $0xa0] sm:$0xff]
      %v4186 = vld [vmem:[%s11 + $0xa8] sm:$0xff]
      %v4187 = vld [vmem:[%s11 + $0xb0] sm:$0xff]
      %v4188 = vld [vmem:[%s11 + $0xb8] sm:$0xff]
      %v4189 = vld [vmem:[%s11 + $0xc0] sm:$0xff]
      %v4190 = vld [vmem:[%s11 + $0xc8] sm:$0xff]
      %v4191 = vld [vmem:[%s11 + $0xd0] sm:$0xff]
      %v4192 = vld [vmem:[%s11 + $0xd8] sm:$0xff]
      %v4193 = vld [vmem:[%s11 + $0xe0] sm:$0xff]
      %v4194 = vld [vmem:[%s11 + $0xe8] sm:$0xff]
      %v4195 = vld [vmem:[%s11 + $0xf0] sm:$0xff]
      %v4196 = vld [vmem:[%s11 + $0xf8] sm:$0xff]
      %v4197 = vld [vmem:[%s11 + $0x100] sm:$0xff]
      %v4198 = vld [vmem:[%s11 + $0x108] sm:$0xff]
      %v4199 = vld [vmem:[%s11 + $0x110] sm:$0xff]
      %v4200 = vld [vmem:[%s11 + $0x118] sm:$0xff]
      %v4201 = vld [vmem:[%s11 + $0x120] sm:$0xff]
      %v4202 = vld [vmem:[%s11 + $0x128] sm:$0xff]
      %v4203 = vld [vmem:[%s11 + $0x130] sm:$0xff]
      %v4204 = vld [vmem:[%s11 + $0x138] sm:$0xff]
      %v4205 = vld [vmem:[%s11 + $0x140] sm:$0xff]
      %v4206 = vld [vmem:[%s11 + $0x148] sm:$0xff]
      %v4207 = vld [vmem:[%s11 + $0x150] sm:$0xff]
      %v4208 = vld [vmem:[%s11 + $0x158] sm:$0xff]
      %v4209 = vld [vmem:[%s11 + $0x160] sm:$0xff]
      %v4210 = vld [vmem:[%s11 + $0x168] sm:$0xff]
      %v4211 = vld [vmem:[%s11 + $0x170] sm:$0xff]
      %v4212 = vld [vmem:[%s11 + $0x178] sm:$0xff]
      %v4213 = vld [vmem:[%s11 + $0x180] sm:$0xff]
      %v4214 = vld [vmem:[%s11 + $0x188] sm:$0xff]
      %v4215 = vld [vmem:[%s11 + $0x190] sm:$0xff]
      %v4216 = vld [vmem:[%s11 + $0x198] sm:$0xff]
      %v4217 = vld [vmem:[%s11 + $0x1a0] sm:$0xff]
      %v4218 = vld [vmem:[%s11 + $0x1a8] sm:$0xff]
      %v4219 = vld [vmem:[%s11 + $0x1b0] sm:$0xff]
      %v4220 = vld [vmem:[%s11 + $0x1b8] sm:$0xff]
      %v4221 = vld [vmem:[%s11 + $0x1c0] sm:$0xff]
      %v4222 = vld [vmem:[%s11 + $0x1c8] sm:$0xff]
      %v4223 = vld [vmem:[%s11 + $0x1d0] sm:$0xff]
      %v4224 = vld [vmem:[%s11 + $0x1d8] sm:$0xff]
      %v4225 = vld [vmem:[%s11 + $0x1e0] sm:$0xff]
      %v4226 = vld [vmem:[%s11 + $0x1e8] sm:$0xff]
      %v4227 = vld [vmem:[%s11 + $0x1f0] sm:$0xff]
      %v4228 = vld [vmem:[%s11 + $0x1f8] sm:$0xff]
      %v4229 = vld [vmem:[%s12] sm:$0xf]
      %v4231 = vperm.slane %v4229, 0
      %v4232 = vperm.slane %v4229, 1
      %v4233 = vperm.slane %v4229, 2
      %v4234 = vperm.slane %v4229, 3
      %v4303 = vunpack.c.l.b16 %v4165
      %v4304 = vunpack.c.h.b16 %v4165
      %v4305 = vunpack.c.l.b16 %v4166
      %v4306 = vunpack.c.h.b16 %v4166
      %v4307 = vunpack.c.l.b16 %v4167
      %v4308 = vunpack.c.h.b16 %v4167
      %v4309 = vunpack.c.l.b16 %v4168
      %v4310 = vunpack.c.h.b16 %v4168
      %v4311 = vunpack.c.l.b16 %v4169
      %v4312 = vunpack.c.h.b16 %v4169
      %v4313 = vunpack.c.l.b16 %v4170
      %v4314 = vunpack.c.h.b16 %v4170
      %v4315 = vunpack.c.l.b16 %v4171
      %v4316 = vunpack.c.h.b16 %v4171
      %v4317 = vunpack.c.l.b16 %v4172
      %v4318 = vunpack.c.h.b16 %v4172
      %v4319 = vunpack.c.l.b16 %v4173
      %v4320 = vunpack.c.h.b16 %v4173
      %v4321 = vunpack.c.l.b16 %v4174
      %v4322 = vunpack.c.h.b16 %v4174
      %v4323 = vunpack.c.l.b16 %v4175
      %v4324 = vunpack.c.h.b16 %v4175
      %v4325 = vunpack.c.l.b16 %v4176
      %v4326 = vunpack.c.h.b16 %v4176
      %v4327 = vunpack.c.l.b16 %v4177
      %v4328 = vunpack.c.h.b16 %v4177
      %v4329 = vunpack.c.l.b16 %v4178
      %v4330 = vunpack.c.h.b16 %v4178
      %v4331 = vunpack.c.l.b16 %v4179
      %v4332 = vunpack.c.h.b16 %v4179
      %v4333 = vunpack.c.l.b16 %v4180
      %v4334 = vunpack.c.h.b16 %v4180
      %v4335 = vunpack.c.l.b16 %v4181
      %v4336 = vunpack.c.h.b16 %v4181
      %v4337 = vunpack.c.l.b16 %v4182
      %v4338 = vunpack.c.h.b16 %v4182
      %v4339 = vunpack.c.l.b16 %v4183
      %v4340 = vunpack.c.h.b16 %v4183
      %v4341 = vunpack.c.l.b16 %v4184
      %v4342 = vunpack.c.h.b16 %v4184
      %v4343 = vunpack.c.l.b16 %v4185
      %v4344 = vunpack.c.h.b16 %v4185
      %v4345 = vunpack.c.l.b16 %v4186
      %v4346 = vunpack.c.h.b16 %v4186
      %v4347 = vunpack.c.l.b16 %v4187
      %v4348 = vunpack.c.h.b16 %v4187
      %v4349 = vunpack.c.l.b16 %v4188
      %v4350 = vunpack.c.h.b16 %v4188
      %v4351 = vunpack.c.l.b16 %v4189
      %v4352 = vunpack.c.h.b16 %v4189
      %v4353 = vunpack.c.l.b16 %v4190
      %v4354 = vunpack.c.h.b16 %v4190
      %v4355 = vunpack.c.l.b16 %v4191
      %v4356 = vunpack.c.h.b16 %v4191
      %v4357 = vunpack.c.l.b16 %v4192
      %v4358 = vunpack.c.h.b16 %v4192
      %v4359 = vunpack.c.l.b16 %v4193
      %v4360 = vunpack.c.h.b16 %v4193
      %v4361 = vunpack.c.l.b16 %v4194
      %v4362 = vunpack.c.h.b16 %v4194
      %v4363 = vunpack.c.l.b16 %v4195
      %v4364 = vunpack.c.h.b16 %v4195
      %v4365 = vunpack.c.l.b16 %v4196
      %v4366 = vunpack.c.h.b16 %v4196
      %v4367 = vunpack.c.l.b16 %v4197
      %v4368 = vunpack.c.h.b16 %v4197
      %v4369 = vunpack.c.l.b16 %v4198
      %v4370 = vunpack.c.h.b16 %v4198
      %v4371 = vunpack.c.l.b16 %v4199
      %v4372 = vunpack.c.h.b16 %v4199
      %v4373 = vunpack.c.l.b16 %v4200
      %v4374 = vunpack.c.h.b16 %v4200
      %v4375 = vunpack.c.l.b16 %v4201
      %v4376 = vunpack.c.h.b16 %v4201
      %v4377 = vunpack.c.l.b16 %v4202
      %v4378 = vunpack.c.h.b16 %v4202
      %v4379 = vunpack.c.l.b16 %v4203
      %v4380 = vunpack.c.h.b16 %v4203
      %v4381 = vunpack.c.l.b16 %v4204
      %v4382 = vunpack.c.h.b16 %v4204
      %v4383 = vunpack.c.l.b16 %v4205
      %v4384 = vunpack.c.h.b16 %v4205
      %v4385 = vunpack.c.l.b16 %v4206
      %v4386 = vunpack.c.h.b16 %v4206
      %v4387 = vunpack.c.l.b16 %v4207
      %v4388 = vunpack.c.h.b16 %v4207
      %v4389 = vunpack.c.l.b16 %v4208
      %v4390 = vunpack.c.h.b16 %v4208
      %v4391 = vunpack.c.l.b16 %v4209
      %v4392 = vunpack.c.h.b16 %v4209
      %v4393 = vunpack.c.l.b16 %v4210
      %v4394 = vunpack.c.h.b16 %v4210
      %v4395 = vunpack.c.l.b16 %v4211
      %v4396 = vunpack.c.h.b16 %v4211
      %v4397 = vunpack.c.l.b16 %v4212
      %v4398 = vunpack.c.h.b16 %v4212
      %v4399 = vunpack.c.l.b16 %v4213
      %v4400 = vunpack.c.h.b16 %v4213
      %v4401 = vunpack.c.l.b16 %v4214
      %v4402 = vunpack.c.h.b16 %v4214
      %v4403 = vunpack.c.l.b16 %v4215
      %v4404 = vunpack.c.h.b16 %v4215
      %v4405 = vunpack.c.l.b16 %v4216
      %v4406 = vunpack.c.h.b16 %v4216
      %v4407 = vunpack.c.l.b16 %v4217
      %v4408 = vunpack.c.h.b16 %v4217
      %v4409 = vunpack.c.l.b16 %v4218
      %v4410 = vunpack.c.h.b16 %v4218
      %v4411 = vunpack.c.l.b16 %v4219
      %v4412 = vunpack.c.h.b16 %v4219
      %v4413 = vunpack.c.l.b16 %v4220
      %v4414 = vunpack.c.h.b16 %v4220
      %v4415 = vunpack.c.l.b16 %v4221
      %v4416 = vunpack.c.h.b16 %v4221
      %v4417 = vunpack.c.l.b16 %v4222
      %v4418 = vunpack.c.h.b16 %v4222
      %v4419 = vunpack.c.l.b16 %v4223
      %v4420 = vunpack.c.h.b16 %v4223
      %v4421 = vunpack.c.l.b16 %v4224
      %v4422 = vunpack.c.h.b16 %v4224
      %v4423 = vunpack.c.l.b16 %v4225
      %v4424 = vunpack.c.h.b16 %v4225
      %v4425 = vunpack.c.l.b16 %v4226
      %v4426 = vunpack.c.h.b16 %v4226
      %v4427 = vunpack.c.l.b16 %v4227
      %v4428 = vunpack.c.h.b16 %v4227
      %v4429 = vunpack.c.l.b16 %v4228
      %v4430 = vunpack.c.h.b16 %v4228
      %v4431 = vpack.c.b16 %v4307, %v4303
      %v4432 = vpack.c.b16 %v4308, %v4304
      %v4433 = vpack.c.b16 %v4309, %v4305
      %v4434 = vpack.c.b16 %v4310, %v4306
      %v4435 = vpack.c.b16 %v4315, %v4311
      %v4436 = vpack.c.b16 %v4316, %v4312
      %v4437 = vpack.c.b16 %v4317, %v4313
      %v4438 = vpack.c.b16 %v4318, %v4314
      %v4439 = vpack.c.b16 %v4323, %v4319
      %v4440 = vpack.c.b16 %v4324, %v4320
      %v4441 = vpack.c.b16 %v4325, %v4321
      %v4442 = vpack.c.b16 %v4326, %v4322
      %v4443 = vpack.c.b16 %v4331, %v4327
      %v4444 = vpack.c.b16 %v4332, %v4328
      %v4445 = vpack.c.b16 %v4333, %v4329
      %v4446 = vpack.c.b16 %v4334, %v4330
      %v4447 = vpack.c.b16 %v4339, %v4335
      %v4448 = vpack.c.b16 %v4340, %v4336
      %v4449 = vpack.c.b16 %v4341, %v4337
      %v4450 = vpack.c.b16 %v4342, %v4338
      %v4451 = vpack.c.b16 %v4347, %v4343
      %v4452 = vpack.c.b16 %v4348, %v4344
      %v4453 = vpack.c.b16 %v4349, %v4345
      %v4454 = vpack.c.b16 %v4350, %v4346
      %v4455 = vpack.c.b16 %v4355, %v4351
      %v4456 = vpack.c.b16 %v4356, %v4352
      %v4457 = vpack.c.b16 %v4357, %v4353
      %v4458 = vpack.c.b16 %v4358, %v4354
      %v4459 = vpack.c.b16 %v4363, %v4359
      %v4460 = vpack.c.b16 %v4364, %v4360
      %v4461 = vpack.c.b16 %v4365, %v4361
      %v4462 = vpack.c.b16 %v4366, %v4362
      %v4463 = vpack.c.b16 %v4371, %v4367
      %v4464 = vpack.c.b16 %v4372, %v4368
      %v4465 = vpack.c.b16 %v4373, %v4369
      %v4466 = vpack.c.b16 %v4374, %v4370
      %v4467 = vpack.c.b16 %v4379, %v4375
      %v4468 = vpack.c.b16 %v4380, %v4376
      %v4469 = vpack.c.b16 %v4381, %v4377
      %v4470 = vpack.c.b16 %v4382, %v4378
      %v4471 = vpack.c.b16 %v4387, %v4383
      %v4472 = vpack.c.b16 %v4388, %v4384
      %v4473 = vpack.c.b16 %v4389, %v4385
      %v4474 = vpack.c.b16 %v4390, %v4386
      %v4475 = vpack.c.b16 %v4395, %v4391
      %v4476 = vpack.c.b16 %v4396, %v4392
      %v4477 = vpack.c.b16 %v4397, %v4393
      %v4478 = vpack.c.b16 %v4398, %v4394
      %v4479 = vpack.c.b16 %v4403, %v4399
      %v4480 = vpack.c.b16 %v4404, %v4400
      %v4481 = vpack.c.b16 %v4405, %v4401
      %v4482 = vpack.c.b16 %v4406, %v4402
      %v4483 = vpack.c.b16 %v4411, %v4407
      %v4484 = vpack.c.b16 %v4412, %v4408
      %v4485 = vpack.c.b16 %v4413, %v4409
      %v4486 = vpack.c.b16 %v4414, %v4410
      %v4487 = vpack.c.b16 %v4419, %v4415
      %v4488 = vpack.c.b16 %v4420, %v4416
      %v4489 = vpack.c.b16 %v4421, %v4417
      %v4490 = vpack.c.b16 %v4422, %v4418
      %v4491 = vpack.c.b16 %v4427, %v4423
      %v4492 = vpack.c.b16 %v4428, %v4424
      %v4493 = vpack.c.b16 %v4429, %v4425
      %v4494 = vpack.c.b16 %v4430, %v4426
      %4559 = vmatpush.bf16.msra.mxu0 %v4459
      %4560 = vmatpush.bf16.msra.mxu0 %v4455
      %4561 = vmatpush.bf16.msra.mxu0 %v4451
      %4562 = vmatpush.bf16.msra.mxu0 %v4447
      %4563 = vmatpush.bf16.msra.mxu0 %v4443
      %4564 = vmatpush.bf16.msra.mxu0 %v4439
      %4565 = vmatpush.bf16.msra.mxu0 %v4435
      %4566 = vmatpush.bf16.msra.mxu0 %v4431
      %4567 = vmatmul.bf16.gmra.mxu0 %v4163
      %v4568 = vpop.f32.mrf.mxu0
      %v4569 = vadd.f32 %v4231, %v4568
      %v4570 = vpop.f32.mrf.mxu0
      %4571 = vdwg.mxu0
      %4572 = vmatpush.bf16.msra.mxu0 %v4491
      %4573 = vmatpush.bf16.msra.mxu0 %v4487
      %4574 = vmatpush.bf16.msra.mxu0 %v4483
      %4575 = vmatpush.bf16.msra.mxu0 %v4479
      %4576 = vmatpush.bf16.msra.mxu0 %v4475
      %4577 = vmatpush.bf16.msra.mxu0 %v4471
      %4578 = vmatpush.bf16.msra.mxu0 %v4467
      %4579 = vmatpush.bf16.msra.mxu0 %v4463
      %4580 = vmatmul.bf16.gmra.mxu0 %v4164
      %v4581 = vpop.f32.mrf.mxu0
      %v4582 = vadd.f32 %v4569, %v4581
      %v4583 = vpop.f32.mrf.mxu0
      %4584 = vdwg.mxu0
      %4585 = vmatpush.bf16.msra.mxu0 %v4460
      %4586 = vmatpush.bf16.msra.mxu0 %v4456
      %4587 = vmatpush.bf16.msra.mxu0 %v4452
      %4588 = vmatpush.bf16.msra.mxu0 %v4448
      %4589 = vmatpush.bf16.msra.mxu0 %v4444
      %4590 = vmatpush.bf16.msra.mxu0 %v4440
      %4591 = vmatpush.bf16.msra.mxu0 %v4436
      %4592 = vmatpush.bf16.msra.mxu0 %v4432
      %4593 = vmatmul.bf16.gmra.mxu0 %v4163
      %v4594 = vpop.f32.mrf.mxu0
      %v4595 = vadd.f32 %v4232, %v4594
      %v4596 = vpop.f32.mrf.mxu0
      %4597 = vdwg.mxu0
      %4598 = vmatpush.bf16.msra.mxu0 %v4492
      %4599 = vmatpush.bf16.msra.mxu0 %v4488
      %4600 = vmatpush.bf16.msra.mxu0 %v4484
      %4601 = vmatpush.bf16.msra.mxu0 %v4480
      %4602 = vmatpush.bf16.msra.mxu0 %v4476
      %4603 = vmatpush.bf16.msra.mxu0 %v4472
      %4604 = vmatpush.bf16.msra.mxu0 %v4468
      %4605 = vmatpush.bf16.msra.mxu0 %v4464
      %4606 = vmatmul.bf16.gmra.mxu0 %v4164
      %v4607 = vpop.f32.mrf.mxu0
      %v4608 = vadd.f32 %v4595, %v4607
      %v4609 = vpop.f32.mrf.mxu0
      %4610 = vdwg.mxu0
      %4611 = vmatpush.bf16.msra.mxu0 %v4461
      %4612 = vmatpush.bf16.msra.mxu0 %v4457
      %4613 = vmatpush.bf16.msra.mxu0 %v4453
      %4614 = vmatpush.bf16.msra.mxu0 %v4449
      %4615 = vmatpush.bf16.msra.mxu0 %v4445
      %4616 = vmatpush.bf16.msra.mxu0 %v4441
      %4617 = vmatpush.bf16.msra.mxu0 %v4437
      %4618 = vmatpush.bf16.msra.mxu0 %v4433
      %4619 = vmatmul.bf16.gmra.mxu0 %v4163
      %v4620 = vpop.f32.mrf.mxu0
      %v4621 = vadd.f32 %v4233, %v4620
      %v4622 = vpop.f32.mrf.mxu0
      %4623 = vdwg.mxu0
      %4624 = vmatpush.bf16.msra.mxu0 %v4493
      %4625 = vmatpush.bf16.msra.mxu0 %v4489
      %4626 = vmatpush.bf16.msra.mxu0 %v4485
      %4627 = vmatpush.bf16.msra.mxu0 %v4481
      %4628 = vmatpush.bf16.msra.mxu0 %v4477
      %4629 = vmatpush.bf16.msra.mxu0 %v4473
      %4630 = vmatpush.bf16.msra.mxu0 %v4469
      %4631 = vmatpush.bf16.msra.mxu0 %v4465
      %4632 = vmatmul.bf16.gmra.mxu0 %v4164
      %v4633 = vpop.f32.mrf.mxu0
      %v4634 = vadd.f32 %v4621, %v4633
      %v4635 = vpop.f32.mrf.mxu0
      %4636 = vdwg.mxu0
      %4637 = vmatpush.bf16.msra.mxu0 %v4462
      %4638 = vmatpush.bf16.msra.mxu0 %v4458
      %4639 = vmatpush.bf16.msra.mxu0 %v4454
      %4640 = vmatpush.bf16.msra.mxu0 %v4450
      %4641 = vmatpush.bf16.msra.mxu0 %v4446
      %4642 = vmatpush.bf16.msra.mxu0 %v4442
      %4643 = vmatpush.bf16.msra.mxu0 %v4438
      %4644 = vmatpush.bf16.msra.mxu0 %v4434
      %4645 = vmatmul.bf16.gmra.mxu0 %v4163
      %v4646 = vpop.f32.mrf.mxu0
      %v4647 = vadd.f32 %v4234, %v4646
      %v4648 = vpop.f32.mrf.mxu0
      %4649 = vdwg.mxu0
      %4650 = vmatpush.bf16.msra.mxu0 %v4494
      %4651 = vmatpush.bf16.msra.mxu0 %v4490
      %4652 = vmatpush.bf16.msra.mxu0 %v4486
      %4653 = vmatpush.bf16.msra.mxu0 %v4482
      %4654 = vmatpush.bf16.msra.mxu0 %v4478
      %4655 = vmatpush.bf16.msra.mxu0 %v4474
      %4656 = vmatpush.bf16.msra.mxu0 %v4470
      %4657 = vmatpush.bf16.msra.mxu0 %v4466
      %4658 = vmatmul.bf16.gmra.mxu0 %v4164
      %v4659 = vpop.f32.mrf.mxu0
      %v4660 = vadd.f32 %v4647, %v4659
      %v4661 = vpop.f32.mrf.mxu0
      %4662 = vdwg.mxu0
      %4663 = vst [vmem:[%s572] sm:$0xff] %v4582
      %4664 = vst [vmem:[%s572 + $0x8] sm:$0xff] %v4608
      %4665 = vst [vmem:[%s572 + $0x10] sm:$0xff] %v4634
      %4666 = vst [vmem:[%s572 + $0x18] sm:$0xff] %v4660
      %v4667 = vpack.c.bf16 %v4582, %v4582
      %v4668 = vpack.c.bf16 %v4608, %v4608
      %v4669 = vpack.c.bf16 %v4634, %v4634
      %v4670 = vpack.c.bf16 %v4660, %v4660
      %v4671 = vld [vmem:[%s13] sm:$0xf]
      %v4672 = vld [vmem:[%s13 + $0x4] sm:$0xf]
      %v4673 = vld [vmem:[%s13 + $0x8] sm:$0xf]
      %v4674 = vld [vmem:[%s13 + $0xc] sm:$0xf]
      %v4675 = vld [vmem:[%s13 + $0x10] sm:$0xf]
      %v4676 = vld [vmem:[%s13 + $0x14] sm:$0xf]
      %v4677 = vld [vmem:[%s13 + $0x18] sm:$0xf]
      %v4678 = vld [vmem:[%s13 + $0x1c] sm:$0xf]
      %v4679 = vld [vmem:[%s13 + $0x20] sm:$0xf]
      %v4680 = vld [vmem:[%s13 + $0x24] sm:$0xf]
      %v4681 = vld [vmem:[%s13 + $0x28] sm:$0xf]
      %v4682 = vld [vmem:[%s13 + $0x2c] sm:$0xf]
      %v4683 = vld [vmem:[%s13 + $0x30] sm:$0xf]
      %v4684 = vld [vmem:[%s13 + $0x34] sm:$0xf]
      %v4685 = vld [vmem:[%s13 + $0x38] sm:$0xf]
      %v4686 = vld [vmem:[%s13 + $0x3c] sm:$0xf]
      %v4687 = vld [vmem:[%s13 + $0x40] sm:$0xf]
      %v4688 = vld [vmem:[%s13 + $0x44] sm:$0xf]
      %v4689 = vld [vmem:[%s13 + $0x48] sm:$0xf]
      %v4690 = vld [vmem:[%s13 + $0x4c] sm:$0xf]
      %v4691 = vld [vmem:[%s13 + $0x50] sm:$0xf]
      %v4692 = vld [vmem:[%s13 + $0x54] sm:$0xf]
      %v4693 = vld [vmem:[%s13 + $0x58] sm:$0xf]
      %v4694 = vld [vmem:[%s13 + $0x5c] sm:$0xf]
      %v4695 = vld [vmem:[%s13 + $0x60] sm:$0xf]
      %v4696 = vld [vmem:[%s13 + $0x64] sm:$0xf]
      %v4697 = vld [vmem:[%s13 + $0x68] sm:$0xf]
      %v4698 = vld [vmem:[%s13 + $0x6c] sm:$0xf]
      %v4699 = vld [vmem:[%s13 + $0x70] sm:$0xf]
      %v4700 = vld [vmem:[%s13 + $0x74] sm:$0xf]
      %v4701 = vld [vmem:[%s13 + $0x78] sm:$0xf]
      %v4702 = vld [vmem:[%s13 + $0x7c] sm:$0xf]
      %v4703 = vld [vmem:[%s13 + $0x80] sm:$0xf]
      %v4704 = vld [vmem:[%s13 + $0x84] sm:$0xf]
      %v4705 = vld [vmem:[%s13 + $0x88] sm:$0xf]
      %v4706 = vld [vmem:[%s13 + $0x8c] sm:$0xf]
      %v4707 = vld [vmem:[%s13 + $0x90] sm:$0xf]
      %v4708 = vld [vmem:[%s13 + $0x94] sm:$0xf]
      %v4709 = vld [vmem:[%s13 + $0x98] sm:$0xf]
      %v4710 = vld [vmem:[%s13 + $0x9c] sm:$0xf]
      %v4711 = vld [vmem:[%s13 + $0xa0] sm:$0xf]
      %v4712 = vld [vmem:[%s13 + $0xa4] sm:$0xf]
      %v4713 = vld [vmem:[%s13 + $0xa8] sm:$0xf]
      %v4714 = vld [vmem:[%s13 + $0xac] sm:$0xf]
      %v4715 = vld [vmem:[%s13 + $0xb0] sm:$0xf]
      %v4716 = vld [vmem:[%s13 + $0xb4] sm:$0xf]
      %v4717 = vld [vmem:[%s13 + $0xb8] sm:$0xf]
      %v4718 = vld [vmem:[%s13 + $0xbc] sm:$0xf]
      %v4719 = vld [vmem:[%s13 + $0xc0] sm:$0xf]
      %v4720 = vld [vmem:[%s13 + $0xc4] sm:$0xf]
      %v4721 = vld [vmem:[%s13 + $0xc8] sm:$0xf]
      %v4722 = vld [vmem:[%s13 + $0xcc] sm:$0xf]
      %v4723 = vld [vmem:[%s13 + $0xd0] sm:$0xf]
      %v4724 = vld [vmem:[%s13 + $0xd4] sm:$0xf]
      %v4725 = vld [vmem:[%s13 + $0xd8] sm:$0xf]
      %v4726 = vld [vmem:[%s13 + $0xdc] sm:$0xf]
      %v4727 = vld [vmem:[%s13 + $0xe0] sm:$0xf]
      %v4728 = vld [vmem:[%s13 + $0xe4] sm:$0xf]
      %v4729 = vld [vmem:[%s13 + $0xe8] sm:$0xf]
      %v4730 = vld [vmem:[%s13 + $0xec] sm:$0xf]
      %v4731 = vld [vmem:[%s13 + $0xf0] sm:$0xf]
      %v4732 = vld [vmem:[%s13 + $0xf4] sm:$0xf]
      %v4733 = vld [vmem:[%s13 + $0xf8] sm:$0xf]
      %v4734 = vld [vmem:[%s13 + $0xfc] sm:$0xf]
      %v4735 = vld [vmem:[%s14] sm:$0x1]
      %v4737 = vperm.slane %v4735, 0
      %v4803 = vunpack.c.l.b16 %v4671
      %v4804 = vunpack.c.l.b16 %v4672
      %v4805 = vunpack.c.l.b16 %v4673
      %v4806 = vunpack.c.l.b16 %v4674
      %v4807 = vunpack.c.l.b16 %v4675
      %v4808 = vunpack.c.l.b16 %v4676
      %v4809 = vunpack.c.l.b16 %v4677
      %v4810 = vunpack.c.l.b16 %v4678
      %v4811 = vunpack.c.l.b16 %v4679
      %v4812 = vunpack.c.l.b16 %v4680
      %v4813 = vunpack.c.l.b16 %v4681
      %v4814 = vunpack.c.l.b16 %v4682
      %v4815 = vunpack.c.l.b16 %v4683
      %v4816 = vunpack.c.l.b16 %v4684
      %v4817 = vunpack.c.l.b16 %v4685
      %v4818 = vunpack.c.l.b16 %v4686
      %v4819 = vunpack.c.l.b16 %v4687
      %v4820 = vunpack.c.l.b16 %v4688
      %v4821 = vunpack.c.l.b16 %v4689
      %v4822 = vunpack.c.l.b16 %v4690
      %v4823 = vunpack.c.l.b16 %v4691
      %v4824 = vunpack.c.l.b16 %v4692
      %v4825 = vunpack.c.l.b16 %v4693
      %v4826 = vunpack.c.l.b16 %v4694
      %v4827 = vunpack.c.l.b16 %v4695
      %v4828 = vunpack.c.l.b16 %v4696
      %v4829 = vunpack.c.l.b16 %v4697
      %v4830 = vunpack.c.l.b16 %v4698
      %v4831 = vunpack.c.l.b16 %v4699
      %v4832 = vunpack.c.l.b16 %v4700
      %v4833 = vunpack.c.l.b16 %v4701
      %v4834 = vunpack.c.l.b16 %v4702
      %v4835 = vunpack.c.l.b16 %v4703
      %v4836 = vunpack.c.l.b16 %v4704
      %v4837 = vunpack.c.l.b16 %v4705
      %v4838 = vunpack.c.l.b16 %v4706
      %v4839 = vunpack.c.l.b16 %v4707
      %v4840 = vunpack.c.l.b16 %v4708
      %v4841 = vunpack.c.l.b16 %v4709
      %v4842 = vunpack.c.l.b16 %v4710
      %v4843 = vunpack.c.l.b16 %v4711
      %v4844 = vunpack.c.l.b16 %v4712
      %v4845 = vunpack.c.l.b16 %v4713
      %v4846 = vunpack.c.l.b16 %v4714
      %v4847 = vunpack.c.l.b16 %v4715
      %v4848 = vunpack.c.l.b16 %v4716
      %v4849 = vunpack.c.l.b16 %v4717
      %v4850 = vunpack.c.l.b16 %v4718
      %v4851 = vunpack.c.l.b16 %v4719
      %v4852 = vunpack.c.l.b16 %v4720
      %v4853 = vunpack.c.l.b16 %v4721
      %v4854 = vunpack.c.l.b16 %v4722
      %v4855 = vunpack.c.l.b16 %v4723
      %v4856 = vunpack.c.l.b16 %v4724
      %v4857 = vunpack.c.l.b16 %v4725
      %v4858 = vunpack.c.l.b16 %v4726
      %v4859 = vunpack.c.l.b16 %v4727
      %v4860 = vunpack.c.l.b16 %v4728
      %v4861 = vunpack.c.l.b16 %v4729
      %v4862 = vunpack.c.l.b16 %v4730
      %v4863 = vunpack.c.l.b16 %v4731
      %v4864 = vunpack.c.l.b16 %v4732
      %v4865 = vunpack.c.l.b16 %v4733
      %v4866 = vunpack.c.l.b16 %v4734
      %v4867 = vpack.c.b16 %v4804, %v4803
      %v4868 = vpack.c.b16 %v4806, %v4805
      %v4869 = vpack.c.b16 %v4808, %v4807
      %v4870 = vpack.c.b16 %v4810, %v4809
      %v4871 = vpack.c.b16 %v4812, %v4811
      %v4872 = vpack.c.b16 %v4814, %v4813
      %v4873 = vpack.c.b16 %v4816, %v4815
      %v4874 = vpack.c.b16 %v4818, %v4817
      %v4875 = vpack.c.b16 %v4820, %v4819
      %v4876 = vpack.c.b16 %v4822, %v4821
      %v4877 = vpack.c.b16 %v4824, %v4823
      %v4878 = vpack.c.b16 %v4826, %v4825
      %v4879 = vpack.c.b16 %v4828, %v4827
      %v4880 = vpack.c.b16 %v4830, %v4829
      %v4881 = vpack.c.b16 %v4832, %v4831
      %v4882 = vpack.c.b16 %v4834, %v4833
      %v4883 = vpack.c.b16 %v4836, %v4835
      %v4884 = vpack.c.b16 %v4838, %v4837
      %v4885 = vpack.c.b16 %v4840, %v4839
      %v4886 = vpack.c.b16 %v4842, %v4841
      %v4887 = vpack.c.b16 %v4844, %v4843
      %v4888 = vpack.c.b16 %v4846, %v4845
      %v4889 = vpack.c.b16 %v4848, %v4847
      %v4890 = vpack.c.b16 %v4850, %v4849
      %v4891 = vpack.c.b16 %v4852, %v4851
      %v4892 = vpack.c.b16 %v4854, %v4853
      %v4893 = vpack.c.b16 %v4856, %v4855
      %v4894 = vpack.c.b16 %v4858, %v4857
      %v4895 = vpack.c.b16 %v4860, %v4859
      %v4896 = vpack.c.b16 %v4862, %v4861
      %v4897 = vpack.c.b16 %v4864, %v4863
      %v4898 = vpack.c.b16 %v4866, %v4865
      %4931 = vmatpush.bf16.msra.mxu0 %v4874
      %4932 = vmatpush.bf16.msra.mxu0 %v4873
      %4933 = vmatpush.bf16.msra.mxu0 %v4872
      %4934 = vmatpush.bf16.msra.mxu0 %v4871
      %4935 = vmatpush.bf16.msra.mxu0 %v4870
      %4936 = vmatpush.bf16.msra.mxu0 %v4869
      %4937 = vmatpush.bf16.msra.mxu0 %v4868
      %4938 = vmatpush.bf16.msra.mxu0 %v4867
      %4939 = vmatmul.bf16.gmra.mxu0 %v4667
      %v4940 = vpop.f32.mrf.mxu0
      %v4941 = vadd.f32 %v4737, %v4940
      %v4942 = vpop.f32.mrf.mxu0
      %4943 = vdwg.mxu0
      %4944 = vmatpush.bf16.msra.mxu0 %v4882
      %4945 = vmatpush.bf16.msra.mxu0 %v4881
      %4946 = vmatpush.bf16.msra.mxu0 %v4880
      %4947 = vmatpush.bf16.msra.mxu0 %v4879
      %4948 = vmatpush.bf16.msra.mxu0 %v4878
      %4949 = vmatpush.bf16.msra.mxu0 %v4877
      %4950 = vmatpush.bf16.msra.mxu0 %v4876
      %4951 = vmatpush.bf16.msra.mxu0 %v4875
      %4952 = vmatmul.bf16.gmra.mxu0 %v4668
      %v4953 = vpop.f32.mrf.mxu0
      %v4954 = vadd.f32 %v4941, %v4953
      %v4955 = vpop.f32.mrf.mxu0
      %4956 = vdwg.mxu0
      %4957 = vmatpush.bf16.msra.mxu0 %v4890
      %4958 = vmatpush.bf16.msra.mxu0 %v4889
      %4959 = vmatpush.bf16.msra.mxu0 %v4888
      %4960 = vmatpush.bf16.msra.mxu0 %v4887
      %4961 = vmatpush.bf16.msra.mxu0 %v4886
      %4962 = vmatpush.bf16.msra.mxu0 %v4885
      %4963 = vmatpush.bf16.msra.mxu0 %v4884
      %4964 = vmatpush.bf16.msra.mxu0 %v4883
      %4965 = vmatmul.bf16.gmra.mxu0 %v4669
      %v4966 = vpop.f32.mrf.mxu0
      %v4967 = vadd.f32 %v4954, %v4966
      %v4968 = vpop.f32.mrf.mxu0
      %4969 = vdwg.mxu0
      %4970 = vmatpush.bf16.msra.mxu0 %v4898
      %4971 = vmatpush.bf16.msra.mxu0 %v4897
      %4972 = vmatpush.bf16.msra.mxu0 %v4896
      %4973 = vmatpush.bf16.msra.mxu0 %v4895
      %4974 = vmatpush.bf16.msra.mxu0 %v4894
      %4975 = vmatpush.bf16.msra.mxu0 %v4893
      %4976 = vmatpush.bf16.msra.mxu0 %v4892
      %4977 = vmatpush.bf16.msra.mxu0 %v4891
      %4978 = vmatmul.bf16.gmra.mxu0 %v4670
      %v4979 = vpop.f32.mrf.mxu0
      %v4980 = vadd.f32 %v4967, %v4979
      %v4981 = vpop.f32.mrf.mxu0
      %4982 = vdwg.mxu0
      %4983 = vst [vmem:[%s576] sm:$0xff] %v4980
      %p4984 = scmp.lt.s32.totalorder %s29, 1
      %s4985 = scalar_select %p4984, %s29, 1
      %s4986 = smul.addr %s4985, 4
      %s4987 = smul.addr %s4986, 8
      %s4988 = scalar_lea.vmem %s15, %s4987
      %p4989 = scmp.lt.s32.totalorder %s29, 1
      %s4990 = scalar_select %p4989, %s29, 1
      %s4991 = smul.addr %s4990, 4
      %s4992 = smul.addr %s4991, 8
      %s4993 = scalar_lea.vmem %s16, %s4992
      %p4994 = scmp.lt.s32.totalorder %s29, 1
      %s4995 = scalar_select %p4994, %s29, 1
      %s4996 = smul.addr %s4995, 8
      %s4997 = scalar_lea.vmem %s17, %s4996
      // Predicated region
      $region81: #{_forward_impl.1} parent=79 // pred_check
        %p4998 = pneg %p367
      $region82: #{_forward_impl.1} parent=79 // pred_check_branch
        %5000 = sbr.rel (%p4998) target = $region84
      $region83: #{_forward_impl.1} parent=79 // pred_region
        _
      $region84: #{_forward_impl.1} parent=79 // pred_fallthru
        _
      // Predicated region
      $region85: #{_forward_impl.1} parent=79 // pred_check
        %p5001 = pneg %p393
      $region86: #{_forward_impl.1} parent=79 // pred_check_branch
        %5003 = sbr.rel (%p5001) target = $region88
      $region87: #{_forward_impl.1} parent=79 // pred_region
        _
      $region88: #{_forward_impl.1} parent=79 // pred_fallthru
        _
      // Predicated region
      $region89: #{_forward_impl.1} parent=79 // pred_check
        %p5004 = pneg %p419
      $region90: #{_forward_impl.1} parent=79 // pred_check_branch
        %5006 = sbr.rel (%p5004) target = $region92
      $region91: #{_forward_impl.1} parent=79 // pred_region
        _
      $region92: #{_forward_impl.1} parent=79 // pred_fallthru
        _
    $region80: #{_forward_impl.1} parent=5 // pred_fallthru
      _
    %p5007 = scmp.le.s32.totalorder 2, %s24
    // Predicated region
    $region93: #{_forward_impl.1} parent=5 // pred_check
      %p5008 = pneg %p5007
    $region94: #{_forward_impl.1} parent=5 // pred_check_branch
      %5010 = sbr.rel (%p5008) target = $region96
    $region95: #{_forward_impl.1} parent=5 // pred_region
      %s5011 = ssub.s32 %s24, 2
      // Predicated region
      $region97: #{_forward_impl.1} parent=95 // pred_check
        %p5012 = pneg %p373
      $region98: #{_forward_impl.1} parent=95 // pred_check_branch
        %5014 = sbr.rel (%p5012) target = $region100
      $region99: #{_forward_impl.1} parent=95 // pred_region
        %p5015 = scmp.lt.s32.totalorder %s30, 1
        %s5016 = scalar_select %p5015, %s30, 1
        %s5017 = smul.addr %s5016, 4
        %s5018 = smul.addr %s5017, 8
        %s5019 = scalar_lea.vmem %s15, %s5018
      $region100: #{_forward_impl.1} parent=95 // pred_fallthru
        _
      // Predicated region
      $region101: #{_forward_impl.1} parent=95 // pred_check
        %p5020 = pneg %p399
      $region102: #{_forward_impl.1} parent=95 // pred_check_branch
        %5022 = sbr.rel (%p5020) target = $region104
      $region103: #{_forward_impl.1} parent=95 // pred_region
        %p5023 = scmp.lt.s32.totalorder %s30, 1
        %s5024 = scalar_select %p5023, %s30, 1
        %s5025 = smul.addr %s5024, 4
        %s5026 = smul.addr %s5025, 8
        %s5027 = scalar_lea.vmem %s16, %s5026
      $region104: #{_forward_impl.1} parent=95 // pred_fallthru
        _
      // Predicated region
      $region105: #{_forward_impl.1} parent=95 // pred_check
        %p5028 = pneg %p425
      $region106: #{_forward_impl.1} parent=95 // pred_check_branch
        %5030 = sbr.rel (%p5028) target = $region108
      $region107: #{_forward_impl.1} parent=95 // pred_region
        %p5031 = scmp.lt.s32.totalorder %s30, 1
        %s5032 = scalar_select %p5031, %s30, 1
        %s5033 = smul.addr %s5032, 8
        %s5034 = scalar_lea.vmem %s17, %s5033
      $region108: #{_forward_impl.1} parent=95 // pred_fallthru
        _
    $region96: #{_forward_impl.1} parent=5 // pred_fallthru
      _
  $region6: #{_forward_impl.1} parent=0 // loop_footer
    %s28 = sadd.s32 1, %s24
  $region7: #{_forward_impl.1} parent=0 // loop_footer_branch
    %23 = sbr.rel target = $region3
  $region8: #{_forward_impl.1} parent=0 // loop_exit
    _

</llo_original>
